<compile_context>
chip_gen: v7x
topology: tpu7x:2x2x1
jax: 0.10.0
libtpu: 0.0.40
codegen_flags: <defaults>
</compile_context>

<pallas_src>
import functools
import math

import jax
import jax.numpy as jnp
from jax import lax
from jax.experimental import pallas as pl
from jax.experimental.pallas import tpu as pltpu

_LN_EPS = 1e-5            # nn.LayerNorm default
_SQRT_HALF = 0.7071067811865476


# ------------------------- in-kernel math helpers -------------------------

def _erf(x):
    # Abramowitz & Stegun 7.1.26 polynomial; |err| <= 1.5e-7 in f32.
    a1, a2, a3, a4, a5 = 0.254829592, -0.284496736, 1.421413741, -1.453152027, 1.061405429
    p = 0.3275911
    ax = jnp.abs(x)
    t = 1.0 / (1.0 + p * ax)
    poly = ((((a5 * t + a4) * t + a3) * t + a2) * t + a1) * t
    y = 1.0 - poly * jnp.exp(-ax * ax)
    return jnp.where(x < 0.0, -y, y)


def _gelu(x):
    # exact (erf-based) GELU, matching torch.nn.GELU() default
    return 0.5 * x * (1.0 + _erf(x * _SQRT_HALF))


# ------------------------------ fused kernel ------------------------------

def _fused_forward_kernel(*refs, T, C, H, has_downsample):
    """Whole SingleClassDecoder forward for block_b batch elements per grid step.

    Activations live as (M, P) row blocks with M = block_b * T and P = 128 lanes;
    padded lanes of every activation stay exactly zero (zero weight columns / biases),
    so only LayerNorm needs a lane mask.
    """
    if has_downsample:
        (x_ref, conv0w_ref, convw_ref, convb_ref, wd_ref, bd_ref,
         linw_ref, linb_ref, lnp_ref, o_ref) = refs
    else:
        (x_ref, conv0w_ref, convw_ref, convb_ref,
         linw_ref, linb_ref, lnp_ref, o_ref) = refs
        wd_ref = bd_ref = None

    f32 = jnp.float32
    Bblk = x_ref.shape[0]
    P = o_ref.shape[-1]
    M = Bblk * T
    wdt = convw_ref.dtype                                       # matmul dtype (f32 / bf16)

    xb = x_ref[...].reshape(M, C).astype(f32)                   # batch folded into rows

    # lane masks for LayerNorm (valid channel lanes)
    lane = lax.broadcasted_iota(jnp.int32, (1, P), 1)
    mask_c = (lane < C).astype(f32)
    mask_h = (lane < H).astype(f32)

    # per-row time index (mod-free: unrolled subtract of the batch offset)
    r_row = lax.broadcasted_iota(jnp.int32, (M, 1), 0)
    t_row = r_row
    for b in range(1, Bblk):
        t_row = jnp.where(r_row >= b * T, r_row - b * T, t_row)

    def mm(a, w):
        # MXU matmul; operands cast to the stored weight dtype, f32 accumulation.
        return jnp.dot(a.astype(wdt), w, preferred_element_type=f32)

    def lin_b(i):
        return linb_ref[pl.ds(i, 1), :]                          # (1, P)

    def conv_bias(i):
        return convb_ref[pl.ds(i, 1), :]                         # (1, P)

    def relu(v):
        return jnp.maximum(v, 0.0)

    def conv_k3(z, d, tap_w, bias_row):
        # Dilated k=3 'same' conv (padding = dilation), taps [z[t-d], z[t], z[t+d]].
        # Shifted taps via XLU sublane rolls; the per-row mask zeroes rows whose
        # shifted source falls outside the same batch element (this also kills the
        # roll wrap-around at the block edges).
        left_ok = (t_row >= d).astype(f32)                       # t-d in range
        right_ok = (t_row < T - d).astype(f32)                   # t+d in range
        zl = pltpu.roll(z, d, axis=0) * left_ok                  # z[t-d]
        zr = pltpu.roll(z, M - d, axis=0) * right_ok             # z[t+d]
        acc = jnp.dot(zl.astype(wdt), tap_w(0), preferred_element_type=f32)
        acc += jnp.dot(z.astype(wdt), tap_w(1), preferred_element_type=f32)
        acc += jnp.dot(zr.astype(wdt), tap_w(2), preferred_element_type=f32)
        return acc + bias_row

    def layer_norm(z, g_row, b_row, n_valid, mask):
        # Masked LayerNorm over the first n_valid lanes (padded lanes stay zero).
        mu = jnp.sum(z * mask, axis=-1, keepdims=True) * (1.0 / n_valid)
        dz = (z - mu) * mask
        var = jnp.sum(dz * dz, axis=-1, keepdims=True) * (1.0 / n_valid)
        gamma = lnp_ref[pl.ds(g_row, 1), :]
        beta = lnp_ref[pl.ds(b_row, 1), :]
        return dz * lax.rsqrt(var + _LN_EPS) * gamma + beta

    # ---- TCN block 0 (dilation 1): conv1 / downsample consume the raw C-lane input ----
    if has_downsample:
        res = mm(xb, wd_ref[...]) + bd_ref[...]                  # fused 1x1 downsample conv
    else:
        # C == H: residual is the input, zero-extended to the padded lanes.
        res = xb if C == P else jnp.concatenate(
            [xb, jnp.zeros((M, P - C), f32)], axis=-1)
    c1 = relu(conv_k3(xb, 1, lambda k: conv0w_ref[k], conv_bias(0)))
    c2 = relu(conv_k3(c1, 1, lambda k: convw_ref[0, k], conv_bias(1)))
    h = relu(c2 + res)

    # ---- TCN blocks 1, 2 (dilations 2, 4); H -> H so the residual is the identity ----
    for blk in (1, 2):
        d = 1 << blk
        l1 = 2 * blk - 1                                         # index into the 5 H->H convs
        c1 = relu(conv_k3(h, d, lambda k, l=l1: convw_ref[l, k], conv_bias(2 * blk)))
        c2 = relu(conv_k3(c1, d, lambda k, l=l1 + 1: convw_ref[l, k], conv_bias(2 * blk + 1)))
        h = relu(c2 + h)

    # ---- head: tcn.linear -> projection -> attention MLP -> LayerNorm -> linear ----
    tcn_out = mm(h, linw_ref[0]) + lin_b(0)                      # (M, P) valid lanes = C
    projected = mm(tcn_out, linw_ref[1]) + lin_b(1)
    a1 = _gelu(mm(projected, linw_ref[2]) + lin_b(2))
    attn_out = mm(a1, linw_ref[3]) + lin_b(3)
    fused = layer_norm(attn_out + tcn_out, 0, 1, float(C), mask_c)
    fused = mm(fused, linw_ref[4]) + lin_b(4)                    # (M, P) valid lanes = H

    # ---- torch: fused.unfold(1,1,1).mean(dim=1).squeeze(-1) == mean over time.
    # Done as a tiny f32 matmul against an in-register (Bblk, M) averaging matrix
    # (segmented mean over each batch element's T rows).
    col = lax.broadcasted_iota(jnp.int32, (Bblk, M), 1)
    row0 = lax.broadcasted_iota(jnp.int32, (Bblk, M), 0) * T
    avg = jnp.logical_and(col >= row0, col < row0 + T).astype(f32) * (1.0 / T)
    last = jnp.dot(avg, fused, preferred_element_type=f32)       # (Bblk, P)

    # ---- fc head: Linear -> LayerNorm -> GELU -> spectral-normed Linear ----
    h1 = mm(last, linw_ref[5]) + lin_b(5)
    h1 = _gelu(layer_norm(h1, 2, 3, float(H), mask_h))
    logits = mm(h1, linw_ref[6]) + lin_b(6)                      # (Bblk, P) valid lanes = n_classes
    o_ref[0] = logits.astype(o_ref.dtype)


# ------------------------------ parameters ------------------------------

def init_params(key, concept_dim, hidden_dim, n_classes, *, pad=128,
                matmul_dtype=jnp.bfloat16):
    """Padded / packed parameters.

    Matmul weights (convs, downsample, linears) are stored in matmul_dtype
    (default bf16: half the weight DMA, native MXU rate on v5e/v6e/v7x); biases,
    LayerNorm params and all accumulation stay f32.  Use matmul_dtype=jnp.float32
    for strict numerical parity with the torch reference.
    """
    C, H, N, P = concept_dim, hidden_dim, n_classes, pad
    assert max(C, H, N) <= P
    keys = iter(jax.random.split(key, 64))

    def kaiming(fan_in, fan_out):   # kaiming_normal_(nonlinearity='relu')
        return jax.random.normal(next(keys), (fan_in, fan_out), jnp.float32) * math.sqrt(2.0 / fan_in)

    def pad_out(w):                 # pad output (lane) dim to P
        return jnp.zeros((w.shape[0], P), jnp.float32).at[:, :w.shape[1]].set(w)

    def pad_mat(w):                 # pad both dims to (P, P)
        return jnp.zeros((P, P), jnp.float32).at[:w.shape[0], :w.shape[1]].set(w)

    def pad_vec(v):
        return jnp.zeros((P,), jnp.float32).at[:v.shape[0]].set(v)

    def weight_norm_conv(cin, cout):
        # weight_norm reparametrization W = g * v / ||v|| per output channel.
        v = jax.random.normal(next(keys), (3, cin, cout), jnp.float32) * 0.1
        g = jnp.abs(jax.random.normal(next(keys), (cout,), jnp.float32)) + 0.5
        norm = jnp.sqrt(jnp.sum(v * v, axis=(0, 1), keepdims=True))
        w = v / norm * g[None, None, :]
        b = jax.random.normal(next(keys), (cout,), jnp.float32) * 0.05
        return w, b

    # conv stack: blk0.conv1 (C->H, kept with raw C input rows so x never needs lane
    # padding), then 5 H->H convs [blk0.conv2, blk1.conv1/2, blk2.conv1/2] per tap (P,P).
    w0, b0 = weight_norm_conv(C, H)
    conv0_w = jnp.stack([pad_out(w0[k]) for k in range(3)])      # (3, C, P)
    conv_bs = [pad_vec(b0)]
    conv_ws = []
    for _ in range(5):
        w, b = weight_norm_conv(H, H)
        conv_ws.append(jnp.stack([pad_mat(w[k]) for k in range(3)]))
        conv_bs.append(pad_vec(b))
    conv_w = jnp.stack(conv_ws)                                  # (5, 3, P, P)
    conv_b = jnp.stack(conv_bs)                                  # (6, P)

    # 1x1 downsample conv in block 0 (only exists iff concept_dim != hidden_dim; when
    # absent it is not DMA'd at all -- no dummy buffer).
    if C != H:
        wd = pad_out(jax.random.normal(next(keys), (C, H), jnp.float32) * 0.01)   # (C, P)
        bd = pad_vec(jax.random.normal(next(keys), (H,), jnp.float32) * 0.05).reshape(1, P)
    else:
        wd = bd = None

    # Linear stack: [tcn.linear(H->C), projection(C->C), attn[0](C->C), attn[2](C->C),
    #                decoder.linear(C->H), fc[0](H->H), fc[-1](H->N, spectral-normed)]
    lin_list = [kaiming(H, C), kaiming(C, C), kaiming(C, C), kaiming(C, C),
                kaiming(C, H), kaiming(H, H)]
    wf2 = kaiming(H, N)
    u = jnp.ones((N,), jnp.float32) / math.sqrt(N)
    for _ in range(3):              # power iteration for sigma (init-time glue)
        v = wf2 @ u
        v = v / (jnp.linalg.norm(v) + 1e-4)
        u = wf2.T @ v
        u = u / (jnp.linalg.norm(u) + 1e-4)
    sigma = v @ wf2 @ u
    lin_list.append(wf2 / sigma)
    lin_w = jnp.stack([pad_mat(w) for w in lin_list])            # (7, P, P)
    lin_b = jnp.zeros((7, P), jnp.float32)                       # Linear biases = 0 (per _init)

    # LayerNorm params: [ln_gamma(C), ln_beta, fc_ln_gamma(H), fc_ln_beta]
    ln_p = jnp.stack([pad_vec(jnp.ones((C,), jnp.float32)),
                      jnp.zeros((P,), jnp.float32),
                      pad_vec(jnp.ones((H,), jnp.float32)),
                      jnp.zeros((P,), jnp.float32)])             # (4, P)

    # padded-lane invariant: weight columns / bias lanes beyond the valid width must be
    # exactly zero (the masked LayerNorms and zero-lane propagation rely on it).
    def _check_pad_zero(arr, width):
        if arr is not None and width < P:
            assert float(jnp.abs(arr[..., width:]).max()) == 0.0, "padded lanes must stay zero"
    for arr, width in [(conv0_w, H), (conv_w, H), (conv_b, H), (wd, H), (bd, H),
                       (lin_b, max(C, H, N)), (ln_p, max(C, H))]:
        _check_pad_zero(arr, width)
    for i, width in enumerate([C, C, C, C, H, H, N]):
        _check_pad_zero(lin_w[i], width)

    return {
        "conv0_w": conv0_w.astype(matmul_dtype),
        "conv_w": conv_w.astype(matmul_dtype),
        "conv_b": conv_b,
        "wd": None if wd is None else wd.astype(matmul_dtype),
        "bd": bd,
        "lin_w": lin_w.astype(matmul_dtype),
        "lin_b": lin_b,
        "ln_p": ln_p,
        "concept_dim": C, "hidden_dim": H, "n_classes": N, "pad": P,
    }


# ------------------------------ forward ------------------------------

def single_class_decoder_forward(params, x, *, pred_step=1, batch_block=None):
    """x: (B, T, concept_dim) float32 -> logits (B, n_classes). pred_step == 1 only."""
    B, T, C_in = x.shape
    C, H, N, P = (params["concept_dim"], params["hidden_dim"],
                  params["n_classes"], params["pad"])
    assert C_in == C
    assert T > 4, "need T > max dilation (4)"

    if pred_step != 1:
        # TODO(synk): pred_step > 1 window branch (averaging-matrix matmul) and the
        # pred_step > T extrapolation branch (pos_encoder embedding + temporal_proj MLP).
        raise NotImplementedError("only pred_step == 1 is implemented")
    # TODO(synk): interp=True second return (attn_out) would need a second kernel output.

    has_downsample = params["wd"] is not None

    # How many batch elements to fold into the matmul M dimension per grid step.
    # Keep >= 2 grid steps when B allows it so v7x's two TensorCores both get work;
    # cap at 16 (M = 16*T rows) which keeps per-step VMEM in the low MiB (<< 64 MiB/TC).
    if batch_block is None:
        batch_block = 1 if B <= 1 else min(16, pl.cdiv(B, 2))
    block_b = max(1, min(batch_block, B))
    num_blocks = pl.cdiv(B, block_b)
    B_pad = num_blocks * block_b

    xf = x.astype(jnp.float32)
    if B_pad != B:
        xf = jnp.concatenate([xf, jnp.zeros((B_pad - B, T, C), jnp.float32)], axis=0)

    kernel = functools.partial(_fused_forward_kernel, T=T, C=C, H=H,
                               has_downsample=has_downsample)

    # NOTE: x is shipped un-padded (B_pad, T, C); weight specs use constant index maps
    # so their DMA is not re-issued across grid steps (pl.Buffered(1) unnecessary here).
    in_specs = [
        pl.BlockSpec((block_b, T, C), lambda b: (b, 0, 0)),      # x (per-step batch tile)
        pl.BlockSpec((3, C, P), lambda b: (0, 0, 0)),            # blk0.conv1 taps (raw C rows)
        pl.BlockSpec((5, 3, P, P), lambda b: (0, 0, 0, 0)),      # other conv taps
        pl.BlockSpec((6, P), lambda b: (0, 0)),                  # conv biases
    ]
    args = [xf, params["conv0_w"], params["conv_w"], params["conv_b"]]
    if has_downsample:
        in_specs += [pl.BlockSpec((C, P), lambda b: (0, 0)),     # downsample weight
                     pl.BlockSpec((1, P), lambda b: (0, 0))]     # downsample bias
        args += [params["wd"], params["bd"]]
    in_specs += [
        pl.BlockSpec((7, P, P), lambda b: (0, 0, 0)),            # linear weights
        pl.BlockSpec((7, P), lambda b: (0, 0)),                  # linear biases
        pl.BlockSpec((4, P), lambda b: (0, 0)),                  # layernorm gamma/beta
    ]
    args += [params["lin_w"], params["lin_b"], params["ln_p"]]

    out = pl.pallas_call(
        kernel,
        grid=(num_blocks,),
        in_specs=in_specs,
        out_specs=pl.BlockSpec((1, block_b, P), lambda b: (b, 0, 0)),
        out_shape=jax.ShapeDtypeStruct((num_blocks, block_b, P), jnp.float32),
        compiler_params=pltpu.CompilerParams(
            dimension_semantics=("parallel",),                   # megacore splits the grid
            vmem_limit_bytes=32 * 1024 * 1024,
        ),
    )(*args)

    return out.reshape(B_pad, P)[:B, :N]                         # drop batch + lane padding


# ------------------------------ demo ------------------------------

if __name__ == "__main__":
    B, T = 2, 16
    concept_dim, hidden_dim, n_classes, pred_step = 16, 32, 8, 1

    key = jax.random.PRNGKey(0)
    kp, kx = jax.random.split(key)
    # bf16 weights by default (f32 accumulation); pass matmul_dtype=jnp.float32 for
    # strict parity with the torch f32 reference.
    params = init_params(kp, concept_dim, hidden_dim, n_classes)
    x = jax.random.normal(kx, (B, T, concept_dim), dtype=jnp.float32)

    out = single_class_decoder_forward(params, x, pred_step=pred_step)
    out = jax.block_until_ready(out)

    assert out.shape == (B, n_classes), out.shape
    assert not bool(jnp.isnan(out).any())
    print("KERNEL_OK")
</pallas_src>

<mosaic_0001>
module attributes {stable_mosaic.version = 11 : i64} {
  func.func @_fused_forward_kernel(%arg0: i32, %arg1: memref<1x16x16xf32, #tpu.memory_space<vmem>>, %arg2: memref<3x16x128xbf16, #tpu.memory_space<vmem>>, %arg3: memref<5x3x128x128xbf16, #tpu.memory_space<vmem>>, %arg4: memref<6x128xf32, #tpu.memory_space<vmem>>, %arg5: memref<16x128xbf16, #tpu.memory_space<vmem>>, %arg6: memref<1x128xf32, #tpu.memory_space<vmem>>, %arg7: memref<7x128x128xbf16, #tpu.memory_space<vmem>>, %arg8: memref<7x128xf32, #tpu.memory_space<vmem>>, %arg9: memref<4x128xf32, #tpu.memory_space<vmem>>, %arg10: memref<1x1x128xf32, #tpu.memory_space<vmem>>) attributes {dimension_semantics = [#tpu.dimension_semantics<parallel>], iteration_bounds = array<i64: 2>, scalar_prefetch = 0 : i64, scratch_operands = 0 : i64, tpu.core_type = #tpu.core_type<tc>, window_params = [{transform_indices = @transform_0, window_bounds = array<i64: 1, 16, 16>}, {pipeline_mode = #tpu.pipeline_mode<synchronous>, transform_indices = @transform_1, window_bounds = array<i64: 3, 16, 128>}, {pipeline_mode = #tpu.pipeline_mode<synchronous>, transform_indices = @transform_2, window_bounds = array<i64: 5, 3, 128, 128>}, {pipeline_mode = #tpu.pipeline_mode<synchronous>, transform_indices = @transform_3, window_bounds = array<i64: 6, 128>}, {pipeline_mode = #tpu.pipeline_mode<synchronous>, transform_indices = @transform_4, window_bounds = array<i64: 16, 128>}, {pipeline_mode = #tpu.pipeline_mode<synchronous>, transform_indices = @transform_5, window_bounds = array<i64: 1, 128>}, {pipeline_mode = #tpu.pipeline_mode<synchronous>, transform_indices = @transform_6, window_bounds = array<i64: 7, 128, 128>}, {pipeline_mode = #tpu.pipeline_mode<synchronous>, transform_indices = @transform_7, window_bounds = array<i64: 7, 128>}, {pipeline_mode = #tpu.pipeline_mode<synchronous>, transform_indices = @transform_8, window_bounds = array<i64: 4, 128>}, {transform_indices = @transform_9, window_bounds = array<i64: 1, 1, 128>}]} {
    %c0 = arith.constant 0 : index
    %c0_0 = arith.constant 0 : index
    %c0_1 = arith.constant 0 : index
    %0 = vector.load %arg1[%c0, %c0_0, %c0_1] : memref<1x16x16xf32, #tpu.memory_space<vmem>>, vector<1x16x16xf32>
    %1 = vector.shape_cast %0 : vector<1x16x16xf32> to vector<16x16xf32>
    %2 = tpu.iota {dimensions = array<i32: 1>} : vector<1x128xi32>
    %c16_i32 = arith.constant 16 : i32
    %3 = vector.broadcast %c16_i32 : i32 to vector<1x128xi32>
    %4 = arith.cmpi slt, %2, %3 : vector<1x128xi32>
    %5 = arith.extui %4 : vector<1x128xi1> to vector<1x128xi32>
    %6 = arith.sitofp %5 : vector<1x128xi32> to vector<1x128xf32>
    %c32_i32 = arith.constant 32 : i32
    %7 = vector.broadcast %c32_i32 : i32 to vector<1x128xi32>
    %8 = arith.cmpi slt, %2, %7 : vector<1x128xi32>
    %9 = arith.extui %8 : vector<1x128xi1> to vector<1x128xi32>
    %10 = arith.sitofp %9 : vector<1x128xi32> to vector<1x128xf32>
    %11 = tpu.iota {dimensions = array<i32: 0>} : vector<16x1xi32>
    %c0_2 = arith.constant 0 : index
    %c0_3 = arith.constant 0 : index
    %12 = vector.load %arg5[%c0_2, %c0_3] : memref<16x128xbf16, #tpu.memory_space<vmem>>, vector<16x128xbf16>
    %13 = arith.truncf %1 : vector<16x16xf32> to vector<16x16xbf16>
    %cst = arith.constant dense<0.000000e+00> : vector<16x128xf32>
    %14 = tpu.matmul %13, %12, %cst {dimension_numbers = #tpu.dot_dimension_numbers<[1], [0], [0], [1], [0, 0, 1, 1], [], []>} : vector<16x16xbf16>, vector<16x128xbf16>, vector<16x128xf32> -> vector<16x128xf32>
    %c0_4 = arith.constant 0 : index
    %c0_5 = arith.constant 0 : index
    %15 = vector.load %arg6[%c0_4, %c0_5] : memref<1x128xf32, #tpu.memory_space<vmem>>, vector<1x128xf32>
    %16 = vector.broadcast %15 : vector<1x128xf32> to vector<16x128xf32>
    %17 = arith.addf %14, %16 : vector<16x128xf32>
    %c0_6 = arith.constant 0 : index
    %c0_7 = arith.constant 0 : index
    %18 = vector.load %arg4[%c0_6, %c0_7] : memref<6x128xf32, #tpu.memory_space<vmem>>, vector<1x128xf32>
    %c1_i32 = arith.constant 1 : i32
    %19 = vector.broadcast %c1_i32 : i32 to vector<16x1xi32>
    %20 = arith.cmpi sge, %11, %19 : vector<16x1xi32>
    %21 = arith.extui %20 : vector<16x1xi1> to vector<16x1xi32>
    %22 = arith.sitofp %21 : vector<16x1xi32> to vector<16x1xf32>
    %c15_i32 = arith.constant 15 : i32
    %23 = vector.broadcast %c15_i32 : i32 to vector<16x1xi32>
    %24 = arith.cmpi slt, %11, %23 : vector<16x1xi32>
    %25 = arith.extui %24 : vector<16x1xi1> to vector<16x1xi32>
    %26 = arith.sitofp %25 : vector<16x1xi32> to vector<16x1xf32>
    %c1_i32_8 = arith.constant 1 : i32
    %27 = tpu.dynamic_rotate %1 by %c1_i32_8 dim 0 : vector<16x16xf32>, i32 -> vector<16x16xf32>
    %28 = vector.broadcast %22 : vector<16x1xf32> to vector<16x16xf32>
    %29 = arith.mulf %27, %28 : vector<16x16xf32>
    %c15_i32_9 = arith.constant 15 : i32
    %30 = tpu.dynamic_rotate %1 by %c15_i32_9 dim 0 : vector<16x16xf32>, i32 -> vector<16x16xf32>
    %31 = vector.broadcast %26 : vector<16x1xf32> to vector<16x16xf32>
    %32 = arith.mulf %30, %31 : vector<16x16xf32>
    %33 = arith.truncf %29 : vector<16x16xf32> to vector<16x16xbf16>
    %c0_10 = arith.constant 0 : index
    %c0_11 = arith.constant 0 : index
    %c0_12 = arith.constant 0 : index
    %34 = vector.load %arg2[%c0_10, %c0_11, %c0_12] : memref<3x16x128xbf16, #tpu.memory_space<vmem>>, vector<1x16x128xbf16>
    %35 = vector.shape_cast %34 : vector<1x16x128xbf16> to vector<16x128xbf16>
    %cst_13 = arith.constant dense<0.000000e+00> : vector<16x128xf32>
    %36 = tpu.matmul %33, %35, %cst_13 {dimension_numbers = #tpu.dot_dimension_numbers<[1], [0], [0], [1], [0, 0, 1, 1], [], []>} : vector<16x16xbf16>, vector<16x128xbf16>, vector<16x128xf32> -> vector<16x128xf32>
    %37 = arith.truncf %1 : vector<16x16xf32> to vector<16x16xbf16>
    %c1 = arith.constant 1 : index
    %c0_14 = arith.constant 0 : index
    %c0_15 = arith.constant 0 : index
    %38 = vector.load %arg2[%c1, %c0_14, %c0_15] : memref<3x16x128xbf16, #tpu.memory_space<vmem>>, vector<1x16x128xbf16>
    %39 = vector.shape_cast %38 : vector<1x16x128xbf16> to vector<16x128xbf16>
    %cst_16 = arith.constant dense<0.000000e+00> : vector<16x128xf32>
    %40 = tpu.matmul %37, %39, %cst_16 {dimension_numbers = #tpu.dot_dimension_numbers<[1], [0], [0], [1], [0, 0, 1, 1], [], []>} : vector<16x16xbf16>, vector<16x128xbf16>, vector<16x128xf32> -> vector<16x128xf32>
    %41 = arith.addf %36, %40 : vector<16x128xf32>
    %42 = arith.truncf %32 : vector<16x16xf32> to vector<16x16xbf16>
    %c2 = arith.constant 2 : index
    %c0_17 = arith.constant 0 : index
    %c0_18 = arith.constant 0 : index
    %43 = vector.load %arg2[%c2, %c0_17, %c0_18] : memref<3x16x128xbf16, #tpu.memory_space<vmem>>, vector<1x16x128xbf16>
    %44 = vector.shape_cast %43 : vector<1x16x128xbf16> to vector<16x128xbf16>
    %cst_19 = arith.constant dense<0.000000e+00> : vector<16x128xf32>
    %45 = tpu.matmul %42, %44, %cst_19 {dimension_numbers = #tpu.dot_dimension_numbers<[1], [0], [0], [1], [0, 0, 1, 1], [], []>} : vector<16x16xbf16>, vector<16x128xbf16>, vector<16x128xf32> -> vector<16x128xf32>
    %46 = arith.addf %41, %45 : vector<16x128xf32>
    %47 = vector.broadcast %18 : vector<1x128xf32> to vector<16x128xf32>
    %48 = arith.addf %46, %47 : vector<16x128xf32>
    %cst_20 = arith.constant 0.000000e+00 : f32
    %49 = vector.broadcast %cst_20 : f32 to vector<16x128xf32>
    %50 = arith.maximumf %48, %49 : vector<16x128xf32>
    %c1_21 = arith.constant 1 : index
    %c0_22 = arith.constant 0 : index
    %51 = vector.load %arg4[%c1_21, %c0_22] : memref<6x128xf32, #tpu.memory_space<vmem>>, vector<1x128xf32>
    %c1_i32_23 = arith.constant 1 : i32
    %52 = vector.broadcast %c1_i32_23 : i32 to vector<16x1xi32>
    %53 = arith.cmpi sge, %11, %52 : vector<16x1xi32>
    %54 = arith.extui %53 : vector<16x1xi1> to vector<16x1xi32>
    %55 = arith.sitofp %54 : vector<16x1xi32> to vector<16x1xf32>
    %c15_i32_24 = arith.constant 15 : i32
    %56 = vector.broadcast %c15_i32_24 : i32 to vector<16x1xi32>
    %57 = arith.cmpi slt, %11, %56 : vector<16x1xi32>
    %58 = arith.extui %57 : vector<16x1xi1> to vector<16x1xi32>
    %59 = arith.sitofp %58 : vector<16x1xi32> to vector<16x1xf32>
    %c1_i32_25 = arith.constant 1 : i32
    %60 = tpu.dynamic_rotate %50 by %c1_i32_25 dim 0 : vector<16x128xf32>, i32 -> vector<16x128xf32>
    %61 = vector.broadcast %55 : vector<16x1xf32> to vector<16x128xf32>
    %62 = arith.mulf %60, %61 : vector<16x128xf32>
    %c15_i32_26 = arith.constant 15 : i32
    %63 = tpu.dynamic_rotate %50 by %c15_i32_26 dim 0 : vector<16x128xf32>, i32 -> vector<16x128xf32>
    %64 = vector.broadcast %59 : vector<16x1xf32> to vector<16x128xf32>
    %65 = arith.mulf %63, %64 : vector<16x128xf32>
    %66 = arith.truncf %62 : vector<16x128xf32> to vector<16x128xbf16>
    %c0_27 = arith.constant 0 : index
    %c0_28 = arith.constant 0 : index
    %c0_29 = arith.constant 0 : index
    %c0_30 = arith.constant 0 : index
    %67 = vector.load %arg3[%c0_27, %c0_28, %c0_29, %c0_30] : memref<5x3x128x128xbf16, #tpu.memory_space<vmem>>, vector<1x1x128x128xbf16>
    %68 = vector.shape_cast %67 : vector<1x1x128x128xbf16> to vector<128x128xbf16>
    %cst_31 = arith.constant dense<0.000000e+00> : vector<16x128xf32>
    %69 = tpu.matmul %66, %68, %cst_31 {dimension_numbers = #tpu.dot_dimension_numbers<[1], [0], [0], [1], [0, 0, 1, 1], [], []>} : vector<16x128xbf16>, vector<128x128xbf16>, vector<16x128xf32> -> vector<16x128xf32>
    %70 = arith.truncf %50 : vector<16x128xf32> to vector<16x128xbf16>
    %c0_32 = arith.constant 0 : index
    %c1_33 = arith.constant 1 : index
    %c0_34 = arith.constant 0 : index
    %c0_35 = arith.constant 0 : index
    %71 = vector.load %arg3[%c0_32, %c1_33, %c0_34, %c0_35] : memref<5x3x128x128xbf16, #tpu.memory_space<vmem>>, vector<1x1x128x128xbf16>
    %72 = vector.shape_cast %71 : vector<1x1x128x128xbf16> to vector<128x128xbf16>
    %cst_36 = arith.constant dense<0.000000e+00> : vector<16x128xf32>
    %73 = tpu.matmul %70, %72, %cst_36 {dimension_numbers = #tpu.dot_dimension_numbers<[1], [0], [0], [1], [0, 0, 1, 1], [], []>} : vector<16x128xbf16>, vector<128x128xbf16>, vector<16x128xf32> -> vector<16x128xf32>
    %74 = arith.addf %69, %73 : vector<16x128xf32>
    %75 = arith.truncf %65 : vector<16x128xf32> to vector<16x128xbf16>
    %c0_37 = arith.constant 0 : index
    %c2_38 = arith.constant 2 : index
    %c0_39 = arith.constant 0 : index
    %c0_40 = arith.constant 0 : index
    %76 = vector.load %arg3[%c0_37, %c2_38, %c0_39, %c0_40] : memref<5x3x128x128xbf16, #tpu.memory_space<vmem>>, vector<1x1x128x128xbf16>
    %77 = vector.shape_cast %76 : vector<1x1x128x128xbf16> to vector<128x128xbf16>
    %cst_41 = arith.constant dense<0.000000e+00> : vector<16x128xf32>
    %78 = tpu.matmul %75, %77, %cst_41 {dimension_numbers = #tpu.dot_dimension_numbers<[1], [0], [0], [1], [0, 0, 1, 1], [], []>} : vector<16x128xbf16>, vector<128x128xbf16>, vector<16x128xf32> -> vector<16x128xf32>
    %79 = arith.addf %74, %78 : vector<16x128xf32>
    %80 = vector.broadcast %51 : vector<1x128xf32> to vector<16x128xf32>
    %81 = arith.addf %79, %80 : vector<16x128xf32>
    %cst_42 = arith.constant 0.000000e+00 : f32
    %82 = vector.broadcast %cst_42 : f32 to vector<16x128xf32>
    %83 = arith.maximumf %81, %82 : vector<16x128xf32>
    %84 = arith.addf %83, %17 : vector<16x128xf32>
    %cst_43 = arith.constant 0.000000e+00 : f32
    %85 = vector.broadcast %cst_43 : f32 to vector<16x128xf32>
    %86 = arith.maximumf %84, %85 : vector<16x128xf32>
    %c2_44 = arith.constant 2 : index
    %c0_45 = arith.constant 0 : index
    %87 = vector.load %arg4[%c2_44, %c0_45] : memref<6x128xf32, #tpu.memory_space<vmem>>, vector<1x128xf32>
    %c2_i32 = arith.constant 2 : i32
    %88 = vector.broadcast %c2_i32 : i32 to vector<16x1xi32>
    %89 = arith.cmpi sge, %11, %88 : vector<16x1xi32>
    %90 = arith.extui %89 : vector<16x1xi1> to vector<16x1xi32>
    %91 = arith.sitofp %90 : vector<16x1xi32> to vector<16x1xf32>
    %c14_i32 = arith.constant 14 : i32
    %92 = vector.broadcast %c14_i32 : i32 to vector<16x1xi32>
    %93 = arith.cmpi slt, %11, %92 : vector<16x1xi32>
    %94 = arith.extui %93 : vector<16x1xi1> to vector<16x1xi32>
    %95 = arith.sitofp %94 : vector<16x1xi32> to vector<16x1xf32>
    %c2_i32_46 = arith.constant 2 : i32
    %96 = tpu.dynamic_rotate %86 by %c2_i32_46 dim 0 : vector<16x128xf32>, i32 -> vector<16x128xf32>
    %97 = vector.broadcast %91 : vector<16x1xf32> to vector<16x128xf32>
    %98 = arith.mulf %96, %97 : vector<16x128xf32>
    %c14_i32_47 = arith.constant 14 : i32
    %99 = tpu.dynamic_rotate %86 by %c14_i32_47 dim 0 : vector<16x128xf32>, i32 -> vector<16x128xf32>
    %100 = vector.broadcast %95 : vector<16x1xf32> to vector<16x128xf32>
    %101 = arith.mulf %99, %100 : vector<16x128xf32>
    %102 = arith.truncf %98 : vector<16x128xf32> to vector<16x128xbf16>
    %c1_48 = arith.constant 1 : index
    %c0_49 = arith.constant 0 : index
    %c0_50 = arith.constant 0 : index
    %c0_51 = arith.constant 0 : index
    %103 = vector.load %arg3[%c1_48, %c0_49, %c0_50, %c0_51] : memref<5x3x128x128xbf16, #tpu.memory_space<vmem>>, vector<1x1x128x128xbf16>
    %104 = vector.shape_cast %103 : vector<1x1x128x128xbf16> to vector<128x128xbf16>
    %cst_52 = arith.constant dense<0.000000e+00> : vector<16x128xf32>
    %105 = tpu.matmul %102, %104, %cst_52 {dimension_numbers = #tpu.dot_dimension_numbers<[1], [0], [0], [1], [0, 0, 1, 1], [], []>} : vector<16x128xbf16>, vector<128x128xbf16>, vector<16x128xf32> -> vector<16x128xf32>
    %106 = arith.truncf %86 : vector<16x128xf32> to vector<16x128xbf16>
    %c1_53 = arith.constant 1 : index
    %c1_54 = arith.constant 1 : index
    %c0_55 = arith.constant 0 : index
    %c0_56 = arith.constant 0 : index
    %107 = vector.load %arg3[%c1_53, %c1_54, %c0_55, %c0_56] : memref<5x3x128x128xbf16, #tpu.memory_space<vmem>>, vector<1x1x128x128xbf16>
    %108 = vector.shape_cast %107 : vector<1x1x128x128xbf16> to vector<128x128xbf16>
    %cst_57 = arith.constant dense<0.000000e+00> : vector<16x128xf32>
    %109 = tpu.matmul %106, %108, %cst_57 {dimension_numbers = #tpu.dot_dimension_numbers<[1], [0], [0], [1], [0, 0, 1, 1], [], []>} : vector<16x128xbf16>, vector<128x128xbf16>, vector<16x128xf32> -> vector<16x128xf32>
    %110 = arith.addf %105, %109 : vector<16x128xf32>
    %111 = arith.truncf %101 : vector<16x128xf32> to vector<16x128xbf16>
    %c1_58 = arith.constant 1 : index
    %c2_59 = arith.constant 2 : index
    %c0_60 = arith.constant 0 : index
    %c0_61 = arith.constant 0 : index
    %112 = vector.load %arg3[%c1_58, %c2_59, %c0_60, %c0_61] : memref<5x3x128x128xbf16, #tpu.memory_space<vmem>>, vector<1x1x128x128xbf16>
    %113 = vector.shape_cast %112 : vector<1x1x128x128xbf16> to vector<128x128xbf16>
    %cst_62 = arith.constant dense<0.000000e+00> : vector<16x128xf32>
    %114 = tpu.matmul %111, %113, %cst_62 {dimension_numbers = #tpu.dot_dimension_numbers<[1], [0], [0], [1], [0, 0, 1, 1], [], []>} : vector<16x128xbf16>, vector<128x128xbf16>, vector<16x128xf32> -> vector<16x128xf32>
    %115 = arith.addf %110, %114 : vector<16x128xf32>
    %116 = vector.broadcast %87 : vector<1x128xf32> to vector<16x128xf32>
    %117 = arith.addf %115, %116 : vector<16x128xf32>
    %cst_63 = arith.constant 0.000000e+00 : f32
    %118 = vector.broadcast %cst_63 : f32 to vector<16x128xf32>
    %119 = arith.maximumf %117, %118 : vector<16x128xf32>
    %c3 = arith.constant 3 : index
    %c0_64 = arith.constant 0 : index
    %120 = vector.load %arg4[%c3, %c0_64] : memref<6x128xf32, #tpu.memory_space<vmem>>, vector<1x128xf32>
    %c2_i32_65 = arith.constant 2 : i32
    %121 = vector.broadcast %c2_i32_65 : i32 to vector<16x1xi32>
    %122 = arith.cmpi sge, %11, %121 : vector<16x1xi32>
    %123 = arith.extui %122 : vector<16x1xi1> to vector<16x1xi32>
    %124 = arith.sitofp %123 : vector<16x1xi32> to vector<16x1xf32>
    %c14_i32_66 = arith.constant 14 : i32
    %125 = vector.broadcast %c14_i32_66 : i32 to vector<16x1xi32>
    %126 = arith.cmpi slt, %11, %125 : vector<16x1xi32>
    %127 = arith.extui %126 : vector<16x1xi1> to vector<16x1xi32>
    %128 = arith.sitofp %127 : vector<16x1xi32> to vector<16x1xf32>
    %c2_i32_67 = arith.constant 2 : i32
    %129 = tpu.dynamic_rotate %119 by %c2_i32_67 dim 0 : vector<16x128xf32>, i32 -> vector<16x128xf32>
    %130 = vector.broadcast %124 : vector<16x1xf32> to vector<16x128xf32>
    %131 = arith.mulf %129, %130 : vector<16x128xf32>
    %c14_i32_68 = arith.constant 14 : i32
    %132 = tpu.dynamic_rotate %119 by %c14_i32_68 dim 0 : vector<16x128xf32>, i32 -> vector<16x128xf32>
    %133 = vector.broadcast %128 : vector<16x1xf32> to vector<16x128xf32>
    %134 = arith.mulf %132, %133 : vector<16x128xf32>
    %135 = arith.truncf %131 : vector<16x128xf32> to vector<16x128xbf16>
    %c2_69 = arith.constant 2 : index
    %c0_70 = arith.constant 0 : index
    %c0_71 = arith.constant 0 : index
    %c0_72 = arith.constant 0 : index
    %136 = vector.load %arg3[%c2_69, %c0_70, %c0_71, %c0_72] : memref<5x3x128x128xbf16, #tpu.memory_space<vmem>>, vector<1x1x128x128xbf16>
    %137 = vector.shape_cast %136 : vector<1x1x128x128xbf16> to vector<128x128xbf16>
    %cst_73 = arith.constant dense<0.000000e+00> : vector<16x128xf32>
    %138 = tpu.matmul %135, %137, %cst_73 {dimension_numbers = #tpu.dot_dimension_numbers<[1], [0], [0], [1], [0, 0, 1, 1], [], []>} : vector<16x128xbf16>, vector<128x128xbf16>, vector<16x128xf32> -> vector<16x128xf32>
    %139 = arith.truncf %119 : vector<16x128xf32> to vector<16x128xbf16>
    %c2_74 = arith.constant 2 : index
    %c1_75 = arith.constant 1 : index
    %c0_76 = arith.constant 0 : index
    %c0_77 = arith.constant 0 : index
    %140 = vector.load %arg3[%c2_74, %c1_75, %c0_76, %c0_77] : memref<5x3x128x128xbf16, #tpu.memory_space<vmem>>, vector<1x1x128x128xbf16>
    %141 = vector.shape_cast %140 : vector<1x1x128x128xbf16> to vector<128x128xbf16>
    %cst_78 = arith.constant dense<0.000000e+00> : vector<16x128xf32>
    %142 = tpu.matmul %139, %141, %cst_78 {dimension_numbers = #tpu.dot_dimension_numbers<[1], [0], [0], [1], [0, 0, 1, 1], [], []>} : vector<16x128xbf16>, vector<128x128xbf16>, vector<16x128xf32> -> vector<16x128xf32>
    %143 = arith.addf %138, %142 : vector<16x128xf32>
    %144 = arith.truncf %134 : vector<16x128xf32> to vector<16x128xbf16>
    %c2_79 = arith.constant 2 : index
    %c2_80 = arith.constant 2 : index
    %c0_81 = arith.constant 0 : index
    %c0_82 = arith.constant 0 : index
    %145 = vector.load %arg3[%c2_79, %c2_80, %c0_81, %c0_82] : memref<5x3x128x128xbf16, #tpu.memory_space<vmem>>, vector<1x1x128x128xbf16>
    %146 = vector.shape_cast %145 : vector<1x1x128x128xbf16> to vector<128x128xbf16>
    %cst_83 = arith.constant dense<0.000000e+00> : vector<16x128xf32>
    %147 = tpu.matmul %144, %146, %cst_83 {dimension_numbers = #tpu.dot_dimension_numbers<[1], [0], [0], [1], [0, 0, 1, 1], [], []>} : vector<16x128xbf16>, vector<128x128xbf16>, vector<16x128xf32> -> vector<16x128xf32>
    %148 = arith.addf %143, %147 : vector<16x128xf32>
    %149 = vector.broadcast %120 : vector<1x128xf32> to vector<16x128xf32>
    %150 = arith.addf %148, %149 : vector<16x128xf32>
    %cst_84 = arith.constant 0.000000e+00 : f32
    %151 = vector.broadcast %cst_84 : f32 to vector<16x128xf32>
    %152 = arith.maximumf %150, %151 : vector<16x128xf32>
    %153 = arith.addf %152, %86 : vector<16x128xf32>
    %cst_85 = arith.constant 0.000000e+00 : f32
    %154 = vector.broadcast %cst_85 : f32 to vector<16x128xf32>
    %155 = arith.maximumf %153, %154 : vector<16x128xf32>
    %c4 = arith.constant 4 : index
    %c0_86 = arith.constant 0 : index
    %156 = vector.load %arg4[%c4, %c0_86] : memref<6x128xf32, #tpu.memory_space<vmem>>, vector<1x128xf32>
    %c4_i32 = arith.constant 4 : i32
    %157 = vector.broadcast %c4_i32 : i32 to vector<16x1xi32>
    %158 = arith.cmpi sge, %11, %157 : vector<16x1xi32>
    %159 = arith.extui %158 : vector<16x1xi1> to vector<16x1xi32>
    %160 = arith.sitofp %159 : vector<16x1xi32> to vector<16x1xf32>
    %c12_i32 = arith.constant 12 : i32
    %161 = vector.broadcast %c12_i32 : i32 to vector<16x1xi32>
    %162 = arith.cmpi slt, %11, %161 : vector<16x1xi32>
    %163 = arith.extui %162 : vector<16x1xi1> to vector<16x1xi32>
    %164 = arith.sitofp %163 : vector<16x1xi32> to vector<16x1xf32>
    %c4_i32_87 = arith.constant 4 : i32
    %165 = tpu.dynamic_rotate %155 by %c4_i32_87 dim 0 : vector<16x128xf32>, i32 -> vector<16x128xf32>
    %166 = vector.broadcast %160 : vector<16x1xf32> to vector<16x128xf32>
    %167 = arith.mulf %165, %166 : vector<16x128xf32>
    %c12_i32_88 = arith.constant 12 : i32
    %168 = tpu.dynamic_rotate %155 by %c12_i32_88 dim 0 : vector<16x128xf32>, i32 -> vector<16x128xf32>
    %169 = vector.broadcast %164 : vector<16x1xf32> to vector<16x128xf32>
    %170 = arith.mulf %168, %169 : vector<16x128xf32>
    %171 = arith.truncf %167 : vector<16x128xf32> to vector<16x128xbf16>
    %c3_89 = arith.constant 3 : index
    %c0_90 = arith.constant 0 : index
    %c0_91 = arith.constant 0 : index
    %c0_92 = arith.constant 0 : index
    %172 = vector.load %arg3[%c3_89, %c0_90, %c0_91, %c0_92] : memref<5x3x128x128xbf16, #tpu.memory_space<vmem>>, vector<1x1x128x128xbf16>
    %173 = vector.shape_cast %172 : vector<1x1x128x128xbf16> to vector<128x128xbf16>
    %cst_93 = arith.constant dense<0.000000e+00> : vector<16x128xf32>
    %174 = tpu.matmul %171, %173, %cst_93 {dimension_numbers = #tpu.dot_dimension_numbers<[1], [0], [0], [1], [0, 0, 1, 1], [], []>} : vector<16x128xbf16>, vector<128x128xbf16>, vector<16x128xf32> -> vector<16x128xf32>
    %175 = arith.truncf %155 : vector<16x128xf32> to vector<16x128xbf16>
    %c3_94 = arith.constant 3 : index
    %c1_95 = arith.constant 1 : index
    %c0_96 = arith.constant 0 : index
    %c0_97 = arith.constant 0 : index
    %176 = vector.load %arg3[%c3_94, %c1_95, %c0_96, %c0_97] : memref<5x3x128x128xbf16, #tpu.memory_space<vmem>>, vector<1x1x128x128xbf16>
    %177 = vector.shape_cast %176 : vector<1x1x128x128xbf16> to vector<128x128xbf16>
    %cst_98 = arith.constant dense<0.000000e+00> : vector<16x128xf32>
    %178 = tpu.matmul %175, %177, %cst_98 {dimension_numbers = #tpu.dot_dimension_numbers<[1], [0], [0], [1], [0, 0, 1, 1], [], []>} : vector<16x128xbf16>, vector<128x128xbf16>, vector<16x128xf32> -> vector<16x128xf32>
    %179 = arith.addf %174, %178 : vector<16x128xf32>
    %180 = arith.truncf %170 : vector<16x128xf32> to vector<16x128xbf16>
    %c3_99 = arith.constant 3 : index
    %c2_100 = arith.constant 2 : index
    %c0_101 = arith.constant 0 : index
    %c0_102 = arith.constant 0 : index
    %181 = vector.load %arg3[%c3_99, %c2_100, %c0_101, %c0_102] : memref<5x3x128x128xbf16, #tpu.memory_space<vmem>>, vector<1x1x128x128xbf16>
    %182 = vector.shape_cast %181 : vector<1x1x128x128xbf16> to vector<128x128xbf16>
    %cst_103 = arith.constant dense<0.000000e+00> : vector<16x128xf32>
    %183 = tpu.matmul %180, %182, %cst_103 {dimension_numbers = #tpu.dot_dimension_numbers<[1], [0], [0], [1], [0, 0, 1, 1], [], []>} : vector<16x128xbf16>, vector<128x128xbf16>, vector<16x128xf32> -> vector<16x128xf32>
    %184 = arith.addf %179, %183 : vector<16x128xf32>
    %185 = vector.broadcast %156 : vector<1x128xf32> to vector<16x128xf32>
    %186 = arith.addf %184, %185 : vector<16x128xf32>
    %cst_104 = arith.constant 0.000000e+00 : f32
    %187 = vector.broadcast %cst_104 : f32 to vector<16x128xf32>
    %188 = arith.maximumf %186, %187 : vector<16x128xf32>
    %c5 = arith.constant 5 : index
    %c0_105 = arith.constant 0 : index
    %189 = vector.load %arg4[%c5, %c0_105] : memref<6x128xf32, #tpu.memory_space<vmem>>, vector<1x128xf32>
    %c4_i32_106 = arith.constant 4 : i32
    %190 = vector.broadcast %c4_i32_106 : i32 to vector<16x1xi32>
    %191 = arith.cmpi sge, %11, %190 : vector<16x1xi32>
    %192 = arith.extui %191 : vector<16x1xi1> to vector<16x1xi32>
    %193 = arith.sitofp %192 : vector<16x1xi32> to vector<16x1xf32>
    %c12_i32_107 = arith.constant 12 : i32
    %194 = vector.broadcast %c12_i32_107 : i32 to vector<16x1xi32>
    %195 = arith.cmpi slt, %11, %194 : vector<16x1xi32>
    %196 = arith.extui %195 : vector<16x1xi1> to vector<16x1xi32>
    %197 = arith.sitofp %196 : vector<16x1xi32> to vector<16x1xf32>
    %c4_i32_108 = arith.constant 4 : i32
    %198 = tpu.dynamic_rotate %188 by %c4_i32_108 dim 0 : vector<16x128xf32>, i32 -> vector<16x128xf32>
    %199 = vector.broadcast %193 : vector<16x1xf32> to vector<16x128xf32>
    %200 = arith.mulf %198, %199 : vector<16x128xf32>
    %c12_i32_109 = arith.constant 12 : i32
    %201 = tpu.dynamic_rotate %188 by %c12_i32_109 dim 0 : vector<16x128xf32>, i32 -> vector<16x128xf32>
    %202 = vector.broadcast %197 : vector<16x1xf32> to vector<16x128xf32>
    %203 = arith.mulf %201, %202 : vector<16x128xf32>
    %204 = arith.truncf %200 : vector<16x128xf32> to vector<16x128xbf16>
    %c4_110 = arith.constant 4 : index
    %c0_111 = arith.constant 0 : index
    %c0_112 = arith.constant 0 : index
    %c0_113 = arith.constant 0 : index
    %205 = vector.load %arg3[%c4_110, %c0_111, %c0_112, %c0_113] : memref<5x3x128x128xbf16, #tpu.memory_space<vmem>>, vector<1x1x128x128xbf16>
    %206 = vector.shape_cast %205 : vector<1x1x128x128xbf16> to vector<128x128xbf16>
    %cst_114 = arith.constant dense<0.000000e+00> : vector<16x128xf32>
    %207 = tpu.matmul %204, %206, %cst_114 {dimension_numbers = #tpu.dot_dimension_numbers<[1], [0], [0], [1], [0, 0, 1, 1], [], []>} : vector<16x128xbf16>, vector<128x128xbf16>, vector<16x128xf32> -> vector<16x128xf32>
    %208 = arith.truncf %188 : vector<16x128xf32> to vector<16x128xbf16>
    %c4_115 = arith.constant 4 : index
    %c1_116 = arith.constant 1 : index
    %c0_117 = arith.constant 0 : index
    %c0_118 = arith.constant 0 : index
    %209 = vector.load %arg3[%c4_115, %c1_116, %c0_117, %c0_118] : memref<5x3x128x128xbf16, #tpu.memory_space<vmem>>, vector<1x1x128x128xbf16>
    %210 = vector.shape_cast %209 : vector<1x1x128x128xbf16> to vector<128x128xbf16>
    %cst_119 = arith.constant dense<0.000000e+00> : vector<16x128xf32>
    %211 = tpu.matmul %208, %210, %cst_119 {dimension_numbers = #tpu.dot_dimension_numbers<[1], [0], [0], [1], [0, 0, 1, 1], [], []>} : vector<16x128xbf16>, vector<128x128xbf16>, vector<16x128xf32> -> vector<16x128xf32>
    %212 = arith.addf %207, %211 : vector<16x128xf32>
    %213 = arith.truncf %203 : vector<16x128xf32> to vector<16x128xbf16>
    %c4_120 = arith.constant 4 : index
    %c2_121 = arith.constant 2 : index
    %c0_122 = arith.constant 0 : index
    %c0_123 = arith.constant 0 : index
    %214 = vector.load %arg3[%c4_120, %c2_121, %c0_122, %c0_123] : memref<5x3x128x128xbf16, #tpu.memory_space<vmem>>, vector<1x1x128x128xbf16>
    %215 = vector.shape_cast %214 : vector<1x1x128x128xbf16> to vector<128x128xbf16>
    %cst_124 = arith.constant dense<0.000000e+00> : vector<16x128xf32>
    %216 = tpu.matmul %213, %215, %cst_124 {dimension_numbers = #tpu.dot_dimension_numbers<[1], [0], [0], [1], [0, 0, 1, 1], [], []>} : vector<16x128xbf16>, vector<128x128xbf16>, vector<16x128xf32> -> vector<16x128xf32>
    %217 = arith.addf %212, %216 : vector<16x128xf32>
    %218 = vector.broadcast %189 : vector<1x128xf32> to vector<16x128xf32>
    %219 = arith.addf %217, %218 : vector<16x128xf32>
    %cst_125 = arith.constant 0.000000e+00 : f32
    %220 = vector.broadcast %cst_125 : f32 to vector<16x128xf32>
    %221 = arith.maximumf %219, %220 : vector<16x128xf32>
    %222 = arith.addf %221, %155 : vector<16x128xf32>
    %cst_126 = arith.constant 0.000000e+00 : f32
    %223 = vector.broadcast %cst_126 : f32 to vector<16x128xf32>
    %224 = arith.maximumf %222, %223 : vector<16x128xf32>
    %c0_127 = arith.constant 0 : index
    %c0_128 = arith.constant 0 : index
    %c0_129 = arith.constant 0 : index
    %225 = vector.load %arg7[%c0_127, %c0_128, %c0_129] : memref<7x128x128xbf16, #tpu.memory_space<vmem>>, vector<1x128x128xbf16>
    %226 = vector.shape_cast %225 : vector<1x128x128xbf16> to vector<128x128xbf16>
    %227 = arith.truncf %224 : vector<16x128xf32> to vector<16x128xbf16>
    %cst_130 = arith.constant dense<0.000000e+00> : vector<16x128xf32>
    %228 = tpu.matmul %227, %226, %cst_130 {dimension_numbers = #tpu.dot_dimension_numbers<[1], [0], [0], [1], [0, 0, 1, 1], [], []>} : vector<16x128xbf16>, vector<128x128xbf16>, vector<16x128xf32> -> vector<16x128xf32>
    %c0_131 = arith.constant 0 : index
    %c0_132 = arith.constant 0 : index
    %229 = vector.load %arg8[%c0_131, %c0_132] : memref<7x128xf32, #tpu.memory_space<vmem>>, vector<1x128xf32>
    %230 = vector.broadcast %229 : vector<1x128xf32> to vector<16x128xf32>
    %231 = arith.addf %228, %230 : vector<16x128xf32>
    %c1_133 = arith.constant 1 : index
    %c0_134 = arith.constant 0 : index
    %c0_135 = arith.constant 0 : index
    %232 = vector.load %arg7[%c1_133, %c0_134, %c0_135] : memref<7x128x128xbf16, #tpu.memory_space<vmem>>, vector<1x128x128xbf16>
    %233 = vector.shape_cast %232 : vector<1x128x128xbf16> to vector<128x128xbf16>
    %234 = arith.truncf %231 : vector<16x128xf32> to vector<16x128xbf16>
    %cst_136 = arith.constant dense<0.000000e+00> : vector<16x128xf32>
    %235 = tpu.matmul %234, %233, %cst_136 {dimension_numbers = #tpu.dot_dimension_numbers<[1], [0], [0], [1], [0, 0, 1, 1], [], []>} : vector<16x128xbf16>, vector<128x128xbf16>, vector<16x128xf32> -> vector<16x128xf32>
    %c1_137 = arith.constant 1 : index
    %c0_138 = arith.constant 0 : index
    %236 = vector.load %arg8[%c1_137, %c0_138] : memref<7x128xf32, #tpu.memory_space<vmem>>, vector<1x128xf32>
    %237 = vector.broadcast %236 : vector<1x128xf32> to vector<16x128xf32>
    %238 = arith.addf %235, %237 : vector<16x128xf32>
    %c2_139 = arith.constant 2 : index
    %c0_140 = arith.constant 0 : index
    %c0_141 = arith.constant 0 : index
    %239 = vector.load %arg7[%c2_139, %c0_140, %c0_141] : memref<7x128x128xbf16, #tpu.memory_space<vmem>>, vector<1x128x128xbf16>
    %240 = vector.shape_cast %239 : vector<1x128x128xbf16> to vector<128x128xbf16>
    %241 = arith.truncf %238 : vector<16x128xf32> to vector<16x128xbf16>
    %cst_142 = arith.constant dense<0.000000e+00> : vector<16x128xf32>
    %242 = tpu.matmul %241, %240, %cst_142 {dimension_numbers = #tpu.dot_dimension_numbers<[1], [0], [0], [1], [0, 0, 1, 1], [], []>} : vector<16x128xbf16>, vector<128x128xbf16>, vector<16x128xf32> -> vector<16x128xf32>
    %c2_143 = arith.constant 2 : index
    %c0_144 = arith.constant 0 : index
    %243 = vector.load %arg8[%c2_143, %c0_144] : memref<7x128xf32, #tpu.memory_space<vmem>>, vector<1x128xf32>
    %244 = vector.broadcast %243 : vector<1x128xf32> to vector<16x128xf32>
    %245 = arith.addf %242, %244 : vector<16x128xf32>
    %cst_145 = arith.constant 5.000000e-01 : f32
    %246 = vector.broadcast %cst_145 : f32 to vector<16x128xf32>
    %247 = arith.mulf %246, %245 : vector<16x128xf32>
    %cst_146 = arith.constant 0.707106769 : f32
    %248 = vector.broadcast %cst_146 : f32 to vector<16x128xf32>
    %249 = arith.mulf %245, %248 : vector<16x128xf32>
    %250 = math.absf %249 : vector<16x128xf32>
    %cst_147 = arith.constant 0.327591091 : f32
    %251 = vector.broadcast %cst_147 : f32 to vector<16x128xf32>
    %252 = arith.mulf %251, %250 : vector<16x128xf32>
    %cst_148 = arith.constant 1.000000e+00 : f32
    %253 = vector.broadcast %cst_148 : f32 to vector<16x128xf32>
    %254 = arith.addf %253, %252 : vector<16x128xf32>
    %cst_149 = arith.constant 1.000000e+00 : f32
    %255 = vector.broadcast %cst_149 : f32 to vector<16x128xf32>
    %256 = arith.divf %255, %254 : vector<16x128xf32>
    %cst_150 = arith.constant 1.06140542 : f32
    %257 = vector.broadcast %cst_150 : f32 to vector<16x128xf32>
    %258 = arith.mulf %257, %256 : vector<16x128xf32>
    %cst_151 = arith.constant -1.45315206 : f32
    %259 = vector.broadcast %cst_151 : f32 to vector<16x128xf32>
    %260 = arith.addf %258, %259 : vector<16x128xf32>
    %261 = arith.mulf %260, %256 : vector<16x128xf32>
    %cst_152 = arith.constant 1.42141378 : f32
    %262 = vector.broadcast %cst_152 : f32 to vector<16x128xf32>
    %263 = arith.addf %261, %262 : vector<16x128xf32>
    %264 = arith.mulf %263, %256 : vector<16x128xf32>
    %cst_153 = arith.constant -0.284496725 : f32
    %265 = vector.broadcast %cst_153 : f32 to vector<16x128xf32>
    %266 = arith.addf %264, %265 : vector<16x128xf32>
    %267 = arith.mulf %266, %256 : vector<16x128xf32>
    %cst_154 = arith.constant 0.254829586 : f32
    %268 = vector.broadcast %cst_154 : f32 to vector<16x128xf32>
    %269 = arith.addf %267, %268 : vector<16x128xf32>
    %270 = arith.mulf %269, %256 : vector<16x128xf32>
    %cst_155 = arith.constant 0.000000e+00 : f32
    %271 = vector.broadcast %cst_155 : f32 to vector<16x128xf32>
    %272 = arith.subf %271, %250 : vector<16x128xf32>
    %273 = arith.mulf %272, %250 : vector<16x128xf32>
    %274 = math.exp %273 : vector<16x128xf32>
    %275 = arith.mulf %270, %274 : vector<16x128xf32>
    %cst_156 = arith.constant 1.000000e+00 : f32
    %276 = vector.broadcast %cst_156 : f32 to vector<16x128xf32>
    %277 = arith.subf %276, %275 : vector<16x128xf32>
    %cst_157 = arith.constant 0.000000e+00 : f32
    %278 = vector.broadcast %cst_157 : f32 to vector<16x128xf32>
    %279 = arith.cmpf olt, %249, %278 : vector<16x128xf32>
    %cst_158 = arith.constant 0.000000e+00 : f32
    %280 = vector.broadcast %cst_158 : f32 to vector<16x128xf32>
    %281 = arith.subf %280, %277 : vector<16x128xf32>
    %282 = arith.select %279, %281, %277 : vector<16x128xi1>, vector<16x128xf32>
    %cst_159 = arith.constant 1.000000e+00 : f32
    %283 = vector.broadcast %cst_159 : f32 to vector<16x128xf32>
    %284 = arith.addf %283, %282 : vector<16x128xf32>
    %285 = arith.mulf %247, %284 : vector<16x128xf32>
    %c3_160 = arith.constant 3 : index
    %c0_161 = arith.constant 0 : index
    %c0_162 = arith.constant 0 : index
    %286 = vector.load %arg7[%c3_160, %c0_161, %c0_162] : memref<7x128x128xbf16, #tpu.memory_space<vmem>>, vector<1x128x128xbf16>
    %287 = vector.shape_cast %286 : vector<1x128x128xbf16> to vector<128x128xbf16>
    %288 = arith.truncf %285 : vector<16x128xf32> to vector<16x128xbf16>
    %cst_163 = arith.constant dense<0.000000e+00> : vector<16x128xf32>
    %289 = tpu.matmul %288, %287, %cst_163 {dimension_numbers = #tpu.dot_dimension_numbers<[1], [0], [0], [1], [0, 0, 1, 1], [], []>} : vector<16x128xbf16>, vector<128x128xbf16>, vector<16x128xf32> -> vector<16x128xf32>
    %c3_164 = arith.constant 3 : index
    %c0_165 = arith.constant 0 : index
    %290 = vector.load %arg8[%c3_164, %c0_165] : memref<7x128xf32, #tpu.memory_space<vmem>>, vector<1x128xf32>
    %291 = vector.broadcast %290 : vector<1x128xf32> to vector<16x128xf32>
    %292 = arith.addf %289, %291 : vector<16x128xf32>
    %293 = arith.addf %292, %231 : vector<16x128xf32>
    %294 = vector.broadcast %6 : vector<1x128xf32> to vector<16x128xf32>
    %295 = arith.mulf %293, %294 : vector<16x128xf32>
    %cst_166 = arith.constant dense<0.000000e+00> : vector<16xf32>
    %296 = vector.multi_reduction <add>, %295, %cst_166 [1] : vector<16x128xf32> to vector<16xf32>
    %297 = vector.shape_cast %296 : vector<16xf32> to vector<16x1xf32>
    %cst_167 = arith.constant 6.250000e-02 : f32
    %298 = vector.broadcast %cst_167 : f32 to vector<16x1xf32>
    %299 = arith.mulf %297, %298 : vector<16x1xf32>
    %300 = vector.broadcast %299 : vector<16x1xf32> to vector<16x128xf32>
    %301 = arith.subf %293, %300 : vector<16x128xf32>
    %302 = vector.broadcast %6 : vector<1x128xf32> to vector<16x128xf32>
    %303 = arith.mulf %301, %302 : vector<16x128xf32>
    %304 = arith.mulf %303, %303 : vector<16x128xf32>
    %cst_168 = arith.constant dense<0.000000e+00> : vector<16xf32>
    %305 = vector.multi_reduction <add>, %304, %cst_168 [1] : vector<16x128xf32> to vector<16xf32>
    %306 = vector.shape_cast %305 : vector<16xf32> to vector<16x1xf32>
    %cst_169 = arith.constant 6.250000e-02 : f32
    %307 = vector.broadcast %cst_169 : f32 to vector<16x1xf32>
    %308 = arith.mulf %306, %307 : vector<16x1xf32>
    %c0_170 = arith.constant 0 : index
    %c0_171 = arith.constant 0 : index
    %309 = vector.load %arg9[%c0_170, %c0_171] : memref<4x128xf32, #tpu.memory_space<vmem>>, vector<1x128xf32>
    %c1_172 = arith.constant 1 : index
    %c0_173 = arith.constant 0 : index
    %310 = vector.load %arg9[%c1_172, %c0_173] : memref<4x128xf32, #tpu.memory_space<vmem>>, vector<1x128xf32>
    %cst_174 = arith.constant 9.99999974E-6 : f32
    %311 = vector.broadcast %cst_174 : f32 to vector<16x1xf32>
    %312 = arith.addf %308, %311 : vector<16x1xf32>
    %313 = math.rsqrt %312 : vector<16x1xf32>
    %314 = vector.broadcast %313 : vector<16x1xf32> to vector<16x128xf32>
    %315 = arith.mulf %303, %314 : vector<16x128xf32>
    %316 = vector.broadcast %309 : vector<1x128xf32> to vector<16x128xf32>
    %317 = arith.mulf %315, %316 : vector<16x128xf32>
    %318 = vector.broadcast %310 : vector<1x128xf32> to vector<16x128xf32>
    %319 = arith.addf %317, %318 : vector<16x128xf32>
    %c4_175 = arith.constant 4 : index
    %c0_176 = arith.constant 0 : index
    %c0_177 = arith.constant 0 : index
    %320 = vector.load %arg7[%c4_175, %c0_176, %c0_177] : memref<7x128x128xbf16, #tpu.memory_space<vmem>>, vector<1x128x128xbf16>
    %321 = vector.shape_cast %320 : vector<1x128x128xbf16> to vector<128x128xbf16>
    %322 = arith.truncf %319 : vector<16x128xf32> to vector<16x128xbf16>
    %cst_178 = arith.constant dense<0.000000e+00> : vector<16x128xf32>
    %323 = tpu.matmul %322, %321, %cst_178 {dimension_numbers = #tpu.dot_dimension_numbers<[1], [0], [0], [1], [0, 0, 1, 1], [], []>} : vector<16x128xbf16>, vector<128x128xbf16>, vector<16x128xf32> -> vector<16x128xf32>
    %c4_179 = arith.constant 4 : index
    %c0_180 = arith.constant 0 : index
    %324 = vector.load %arg8[%c4_179, %c0_180] : memref<7x128xf32, #tpu.memory_space<vmem>>, vector<1x128xf32>
    %325 = vector.broadcast %324 : vector<1x128xf32> to vector<16x128xf32>
    %326 = arith.addf %323, %325 : vector<16x128xf32>
    %327 = tpu.iota {dimensions = array<i32: 1>} : vector<1x16xi32>
    %328 = tpu.iota {dimensions = array<i32: 0>} : vector<1x16xi32>
    %c16_i32_181 = arith.constant 16 : i32
    %329 = vector.broadcast %c16_i32_181 : i32 to vector<1x16xi32>
    %330 = arith.muli %328, %329 : vector<1x16xi32>
    %331 = arith.cmpi sge, %327, %330 : vector<1x16xi32>
    %c16_i32_182 = arith.constant 16 : i32
    %332 = vector.broadcast %c16_i32_182 : i32 to vector<1x16xi32>
    %333 = arith.addi %330, %332 : vector<1x16xi32>
    %334 = arith.cmpi slt, %327, %333 : vector<1x16xi32>
    %335 = arith.andi %331, %334 : vector<1x16xi1>
    %336 = arith.extui %335 : vector<1x16xi1> to vector<1x16xi32>
    %337 = arith.sitofp %336 : vector<1x16xi32> to vector<1x16xf32>
    %cst_183 = arith.constant 6.250000e-02 : f32
    %338 = vector.broadcast %cst_183 : f32 to vector<1x16xf32>
    %339 = arith.mulf %337, %338 : vector<1x16xf32>
    %cst_184 = arith.constant dense<0.000000e+00> : vector<1x128xf32>
    %340 = tpu.matmul %339, %326, %cst_184 {dimension_numbers = #tpu.dot_dimension_numbers<[1], [0], [0], [1], [0, 0, 1, 1], [], []>} : vector<1x16xf32>, vector<16x128xf32>, vector<1x128xf32> -> vector<1x128xf32>
    %c5_185 = arith.constant 5 : index
    %c0_186 = arith.constant 0 : index
    %c0_187 = arith.constant 0 : index
    %341 = vector.load %arg7[%c5_185, %c0_186, %c0_187] : memref<7x128x128xbf16, #tpu.memory_space<vmem>>, vector<1x128x128xbf16>
    %342 = vector.shape_cast %341 : vector<1x128x128xbf16> to vector<128x128xbf16>
    %343 = arith.truncf %340 : vector<1x128xf32> to vector<1x128xbf16>
    %cst_188 = arith.constant dense<0.000000e+00> : vector<1x128xf32>
    %344 = tpu.matmul %343, %342, %cst_188 {dimension_numbers = #tpu.dot_dimension_numbers<[1], [0], [0], [1], [0, 0, 1, 1], [], []>} : vector<1x128xbf16>, vector<128x128xbf16>, vector<1x128xf32> -> vector<1x128xf32>
    %c5_189 = arith.constant 5 : index
    %c0_190 = arith.constant 0 : index
    %345 = vector.load %arg8[%c5_189, %c0_190] : memref<7x128xf32, #tpu.memory_space<vmem>>, vector<1x128xf32>
    %346 = arith.addf %344, %345 : vector<1x128xf32>
    %347 = arith.mulf %346, %10 : vector<1x128xf32>
    %cst_191 = arith.constant dense<0.000000e+00> : vector<1xf32>
    %348 = vector.multi_reduction <add>, %347, %cst_191 [1] : vector<1x128xf32> to vector<1xf32>
    %349 = vector.shape_cast %348 : vector<1xf32> to vector<1x1xf32>
    %cst_192 = arith.constant 3.125000e-02 : f32
    %350 = vector.broadcast %cst_192 : f32 to vector<1x1xf32>
    %351 = arith.mulf %349, %350 : vector<1x1xf32>
    %352 = vector.broadcast %351 : vector<1x1xf32> to vector<1x128xf32>
    %353 = arith.subf %346, %352 : vector<1x128xf32>
    %354 = arith.mulf %353, %10 : vector<1x128xf32>
    %355 = arith.mulf %354, %354 : vector<1x128xf32>
    %cst_193 = arith.constant dense<0.000000e+00> : vector<1xf32>
    %356 = vector.multi_reduction <add>, %355, %cst_193 [1] : vector<1x128xf32> to vector<1xf32>
    %357 = vector.shape_cast %356 : vector<1xf32> to vector<1x1xf32>
    %cst_194 = arith.constant 3.125000e-02 : f32
    %358 = vector.broadcast %cst_194 : f32 to vector<1x1xf32>
    %359 = arith.mulf %357, %358 : vector<1x1xf32>
    %c2_195 = arith.constant 2 : index
    %c0_196 = arith.constant 0 : index
    %360 = vector.load %arg9[%c2_195, %c0_196] : memref<4x128xf32, #tpu.memory_space<vmem>>, vector<1x128xf32>
    %c3_197 = arith.constant 3 : index
    %c0_198 = arith.constant 0 : index
    %361 = vector.load %arg9[%c3_197, %c0_198] : memref<4x128xf32, #tpu.memory_space<vmem>>, vector<1x128xf32>
    %cst_199 = arith.constant 9.99999974E-6 : f32
    %362 = vector.broadcast %cst_199 : f32 to vector<1x1xf32>
    %363 = arith.addf %359, %362 : vector<1x1xf32>
    %364 = math.rsqrt %363 : vector<1x1xf32>
    %365 = vector.broadcast %364 : vector<1x1xf32> to vector<1x128xf32>
    %366 = arith.mulf %354, %365 : vector<1x128xf32>
    %367 = arith.mulf %366, %360 : vector<1x128xf32>
    %368 = arith.addf %367, %361 : vector<1x128xf32>
    %cst_200 = arith.constant 5.000000e-01 : f32
    %369 = vector.broadcast %cst_200 : f32 to vector<1x128xf32>
    %370 = arith.mulf %369, %368 : vector<1x128xf32>
    %cst_201 = arith.constant 0.707106769 : f32
    %371 = vector.broadcast %cst_201 : f32 to vector<1x128xf32>
    %372 = arith.mulf %368, %371 : vector<1x128xf32>
    %373 = math.absf %372 : vector<1x128xf32>
    %cst_202 = arith.constant 0.327591091 : f32
    %374 = vector.broadcast %cst_202 : f32 to vector<1x128xf32>
    %375 = arith.mulf %374, %373 : vector<1x128xf32>
    %cst_203 = arith.constant 1.000000e+00 : f32
    %376 = vector.broadcast %cst_203 : f32 to vector<1x128xf32>
    %377 = arith.addf %376, %375 : vector<1x128xf32>
    %cst_204 = arith.constant 1.000000e+00 : f32
    %378 = vector.broadcast %cst_204 : f32 to vector<1x128xf32>
    %379 = arith.divf %378, %377 : vector<1x128xf32>
    %cst_205 = arith.constant 1.06140542 : f32
    %380 = vector.broadcast %cst_205 : f32 to vector<1x128xf32>
    %381 = arith.mulf %380, %379 : vector<1x128xf32>
    %cst_206 = arith.constant -1.45315206 : f32
    %382 = vector.broadcast %cst_206 : f32 to vector<1x128xf32>
    %383 = arith.addf %381, %382 : vector<1x128xf32>
    %384 = arith.mulf %383, %379 : vector<1x128xf32>
    %cst_207 = arith.constant 1.42141378 : f32
    %385 = vector.broadcast %cst_207 : f32 to vector<1x128xf32>
    %386 = arith.addf %384, %385 : vector<1x128xf32>
    %387 = arith.mulf %386, %379 : vector<1x128xf32>
    %cst_208 = arith.constant -0.284496725 : f32
    %388 = vector.broadcast %cst_208 : f32 to vector<1x128xf32>
    %389 = arith.addf %387, %388 : vector<1x128xf32>
    %390 = arith.mulf %389, %379 : vector<1x128xf32>
    %cst_209 = arith.constant 0.254829586 : f32
    %391 = vector.broadcast %cst_209 : f32 to vector<1x128xf32>
    %392 = arith.addf %390, %391 : vector<1x128xf32>
    %393 = arith.mulf %392, %379 : vector<1x128xf32>
    %cst_210 = arith.constant 0.000000e+00 : f32
    %394 = vector.broadcast %cst_210 : f32 to vector<1x128xf32>
    %395 = arith.subf %394, %373 : vector<1x128xf32>
    %396 = arith.mulf %395, %373 : vector<1x128xf32>
    %397 = math.exp %396 : vector<1x128xf32>
    %398 = arith.mulf %393, %397 : vector<1x128xf32>
    %cst_211 = arith.constant 1.000000e+00 : f32
    %399 = vector.broadcast %cst_211 : f32 to vector<1x128xf32>
    %400 = arith.subf %399, %398 : vector<1x128xf32>
    %cst_212 = arith.constant 0.000000e+00 : f32
    %401 = vector.broadcast %cst_212 : f32 to vector<1x128xf32>
    %402 = arith.cmpf olt, %372, %401 : vector<1x128xf32>
    %cst_213 = arith.constant 0.000000e+00 : f32
    %403 = vector.broadcast %cst_213 : f32 to vector<1x128xf32>
    %404 = arith.subf %403, %400 : vector<1x128xf32>
    %405 = arith.select %402, %404, %400 : vector<1x128xi1>, vector<1x128xf32>
    %cst_214 = arith.constant 1.000000e+00 : f32
    %406 = vector.broadcast %cst_214 : f32 to vector<1x128xf32>
    %407 = arith.addf %406, %405 : vector<1x128xf32>
    %408 = arith.mulf %370, %407 : vector<1x128xf32>
    %c6 = arith.constant 6 : index
    %c0_215 = arith.constant 0 : index
    %c0_216 = arith.constant 0 : index
    %409 = vector.load %arg7[%c6, %c0_215, %c0_216] : memref<7x128x128xbf16, #tpu.memory_space<vmem>>, vector<1x128x128xbf16>
    %410 = vector.shape_cast %409 : vector<1x128x128xbf16> to vector<128x128xbf16>
    %411 = arith.truncf %408 : vector<1x128xf32> to vector<1x128xbf16>
    %cst_217 = arith.constant dense<0.000000e+00> : vector<1x128xf32>
    %412 = tpu.matmul %411, %410, %cst_217 {dimension_numbers = #tpu.dot_dimension_numbers<[1], [0], [0], [1], [0, 0, 1, 1], [], []>} : vector<1x128xbf16>, vector<128x128xbf16>, vector<1x128xf32> -> vector<1x128xf32>
    %c6_218 = arith.constant 6 : index
    %c0_219 = arith.constant 0 : index
    %413 = vector.load %arg8[%c6_218, %c0_219] : memref<7x128xf32, #tpu.memory_space<vmem>>, vector<1x128xf32>
    %414 = arith.addf %412, %413 : vector<1x128xf32>
    %c0_220 = arith.constant 0 : index
    %c0_221 = arith.constant 0 : index
    %c0_222 = arith.constant 0 : index
    %415 = vector.load %arg10[%c0_220, %c0_221, %c0_222] : memref<1x1x128xf32, #tpu.memory_space<vmem>>, vector<1x1x128xf32>
    %416 = vector.shape_cast %415 : vector<1x1x128xf32> to vector<1x128xf32>
    %417 = vector.shape_cast %414 : vector<1x128xf32> to vector<1x1x128xf32>
    tpu.vector_store %arg10[%c0_220, %c0_221, %c0_222], %417 {strides = array<i32>} : memref<1x1x128xf32, #tpu.memory_space<vmem>>, vector<1x1x128xf32>,
    return
  }
  func.func @transform_0(%arg0: i32) -> (i32, i32, i32) {
    %c0_i32 = arith.constant 0 : i32
    %c0_i32_0 = arith.constant 0 : i32
    %c0_i32_1 = arith.constant 0 : i32
    return %arg0, %c0_i32, %c0_i32_0 : i32, i32, i32
  }
  func.func @transform_1(%arg0: i32) -> (i32, i32, i32) {
    %c0_i32 = arith.constant 0 : i32
    %c0_i32_0 = arith.constant 0 : i32
    %c0_i32_1 = arith.constant 0 : i32
    %c0_i32_2 = arith.constant 0 : i32
    return %c0_i32, %c0_i32_0, %c0_i32_1 : i32, i32, i32
  }
  func.func @transform_2(%arg0: i32) -> (i32, i32, i32, i32) {
    %c0_i32 = arith.constant 0 : i32
    %c0_i32_0 = arith.constant 0 : i32
    %c0_i32_1 = arith.constant 0 : i32
    %c0_i32_2 = arith.constant 0 : i32
    %c0_i32_3 = arith.constant 0 : i32
    return %c0_i32, %c0_i32_0, %c0_i32_1, %c0_i32_2 : i32, i32, i32, i32
  }
  func.func @transform_3(%arg0: i32) -> (i32, i32) {
    %c0_i32 = arith.constant 0 : i32
    %c0_i32_0 = arith.constant 0 : i32
    %c0_i32_1 = arith.constant 0 : i32
    return %c0_i32, %c0_i32_0 : i32, i32
  }
  func.func @transform_4(%arg0: i32) -> (i32, i32) {
    %c0_i32 = arith.constant 0 : i32
    %c0_i32_0 = arith.constant 0 : i32
    %c0_i32_1 = arith.constant 0 : i32
    return %c0_i32, %c0_i32_0 : i32, i32
  }
  func.func @transform_5(%arg0: i32) -> (i32, i32) {
    %c0_i32 = arith.constant 0 : i32
    %c0_i32_0 = arith.constant 0 : i32
    %c0_i32_1 = arith.constant 0 : i32
    return %c0_i32, %c0_i32_0 : i32, i32
  }
  func.func @transform_6(%arg0: i32) -> (i32, i32, i32) {
    %c0_i32 = arith.constant 0 : i32
    %c0_i32_0 = arith.constant 0 : i32
    %c0_i32_1 = arith.constant 0 : i32
    %c0_i32_2 = arith.constant 0 : i32
    return %c0_i32, %c0_i32_0, %c0_i32_1 : i32, i32, i32
  }
  func.func @transform_7(%arg0: i32) -> (i32, i32) {
    %c0_i32 = arith.constant 0 : i32
    %c0_i32_0 = arith.constant 0 : i32
    %c0_i32_1 = arith.constant 0 : i32
    return %c0_i32, %c0_i32_0 : i32, i32
  }
  func.func @transform_8(%arg0: i32) -> (i32, i32) {
    %c0_i32 = arith.constant 0 : i32
    %c0_i32_0 = arith.constant 0 : i32
    %c0_i32_1 = arith.constant 0 : i32
    return %c0_i32, %c0_i32_0 : i32, i32
  }
  func.func @transform_9(%arg0: i32) -> (i32, i32, i32) {
    %c0_i32 = arith.constant 0 : i32
    %c0_i32_0 = arith.constant 0 : i32
    %c0_i32_1 = arith.constant 0 : i32
    return %arg0, %c0_i32, %c0_i32_0 : i32, i32, i32
  }
}

</mosaic_0001>

<llo_original>
// kernel: tpu_custom_call.1
$region0: #{tpu_custom_call.1}
  #allocation0 [shape = 'u32[]', space=smem, size = 0x4, offset = 0x4, fixed_abs, tag = 'smem constant byte address 0x4 - core index']
  #allocation1 [shape = 'u32[144,128]{1,0:T(1,128)}', space=vmem, size = 0x12000, scoped, tag = 'internal scratch']
  %s0 = inlined_call_operand.hbm [shape: f32[2,16,16], index: 0, kind: input, shape index: {}]
  %s1 = inlined_call_operand.hbm [shape: bf16[3,16,128], index: 1, kind: input, shape index: {}]
  %s2 = inlined_call_operand.hbm [shape: bf16[5,3,128,128], index: 2, kind: input, shape index: {}]
  %s3 = inlined_call_operand.vmem [shape: f32[6,128], index: 3, kind: input, shape index: {}]
  %s4 = inlined_call_operand.hbm [shape: bf16[16,128], index: 4, kind: input, shape index: {}]
  %s5 = inlined_call_operand.vmem [shape: f32[1,128], index: 5, kind: input, shape index: {}]
  %s6 = inlined_call_operand.hbm [shape: bf16[7,128,128], index: 6, kind: input, shape index: {}]
  %s7 = inlined_call_operand.vmem [shape: f32[7,128], index: 7, kind: input, shape index: {}]
  %s8 = inlined_call_operand.vmem [shape: f32[4,128], index: 8, kind: input, shape index: {}]
  %s9 = inlined_call_operand.hbm [shape: f32[2,1,128], index: 9, kind: output, shape index: {}]
  %s10 = sld [smem:[#allocation0]]
  $region89: #{tpu_custom_call.1} parent=0
    _
  %s12 = ssub.s32 1, %s10
  %s13 = scalar_select 0, %s12, %s10
  $region1: #{tpu_custom_call.1} parent=0
    #allocation2 [shape = 'u8[16384]{0}', space=vmem, size = 0x4000, scoped, tag = 'input window, operand 0']
    #allocation3 [shape = 's32[2]{0}', space=sflag, size = 0x8, scoped, tag = 'scoped memory for tpu_custom_call.1']
    #allocation4 [shape = 's32[2]{0}', space=sflag, size = 0x8, scoped, tag = 'scoped memory for tpu_custom_call.1']
    #allocation5 [shape = 'u8[12288]{0}', space=vmem, size = 0x3000, scoped, tag = 'input window, operand 1, single buffered']
    #allocation6 [shape = 's32[1]{0}', space=sflag, size = 0x4, scoped, tag = 'scoped memory for tpu_custom_call.1']
    #allocation7 [shape = 'u8[491520]{0}', space=vmem, size = 0x78000, scoped, tag = 'input window, operand 2, single buffered']
    #allocation8 [shape = 'u8[4096]{0}', space=vmem, size = 0x1000, scoped, tag = 'input window, operand 4, single buffered']
    #allocation9 [shape = 's32[1]{0}', space=sflag, size = 0x4, scoped, tag = 'scoped memory for tpu_custom_call.1']
    #allocation10 [shape = 'u8[229376]{0}', space=vmem, size = 0x38000, scoped, tag = 'input window, operand 6, single buffered']
    #allocation11 [shape = 'u8[1024]{0}', space=vmem, size = 0x400, scoped, tag = 'output window, operand 0']
    %14 = vsyncpa [#allocation3], 0
    %s15 = scalar_lea.sflag [#allocation3], 1
    %16 = vsyncpa %s15, 0
    %17 = vsyncpa [#allocation6], 0
    %18 = vsyncpa [#allocation9], 0
    %19 = vsyncpa [#allocation4], 0
    %s20 = scalar_lea.sflag [#allocation4], 1
    %21 = vsyncpa %s20, 0
    loop: start=0, step=1, limit=4
    $region2: #{tpu_custom_call.1} parent=1 // loop_pre_header
      _
    $region3: #{tpu_custom_call.1} parent=1 // loop_header
      %s23 = sphi 0, %s27
      %p24 = scmp.ge.s32.totalorder %s23, 4
      %s33 = sphi 0, %s35
      %s36 = sphi 0, %s33
      %s37 = sphi 0, %s36
      %s53 = sphi 0, %s37
      %s57 = sphi 0, %s57
      %s59 = sphi 0, %s57
      %s60 = sphi 0, %s59
      %s74 = sphi 0, %s60
      %s78 = sphi 0, %s78
      %s80 = sphi 0, %s78
      %s81 = sphi 0, %s80
      %s95 = sphi 0, %s81
      %s99 = sphi 0, %s99
      %s101 = sphi 0, %s99
      %s102 = sphi 0, %s101
      %s116 = sphi 0, %s102
      %s120 = sphi 0, %s120
      %s122 = sphi 0, %s120
      %s123 = sphi 0, %s122
      %s137 = sphi 0, %s123
      %s141 = sphi 0, %s141
      %s143 = sphi 0, %s141
      %s144 = sphi 0, %s143
      %s158 = sphi 0, %s144
      %s162 = sphi 0, %s162
      %s164 = sphi 0, %s162
      %s165 = sphi 0, %s164
      %s179 = sphi 0, %s165
      %s183 = sphi 0, %s183
      %s185 = sphi 0, %s183
      %s186 = sphi 0, %s185
      %s200 = sphi 0, %s186
      %s204 = sphi 0, %s204
      %s206 = sphi 0, %s204
      %s207 = sphi 0, %s206
      %s221 = sphi 0, %s207
      %s227 = sphi 0, %s229
      %s230 = sphi 0, %s227
      %s231 = sphi 0, %s230
      %s247 = sphi 0, %s231
    $region4: #{tpu_custom_call.1} parent=1 // loop_header_branch
      %26 = sbr.rel (%p24) target = $region8
    $region5: #{tpu_custom_call.1} parent=1 // loop_body
      %s28 = ssub.s32 %s23, 1
      %s29 = ssub.s32 %s23, 2
      %s30 = sadd.s32 %s23, 1
      %s31 = ssub.s32 %s23, %s30
      %p32 = scmp.eq.s32.totalorder %s31, 0
      %s34 = sadd.s32 %s33, 1
      %s35 = scalar_select %p32, %s33, %s34
      %p38 = pneg %p32
      %p39 = scmp.eq.s32.totalorder %s23, 1
      %p40 = por %p38, %p39
      %p41 = scmp.ne.s32.totalorder %s33, %s36
      %p42 = scmp.eq.s32.totalorder %s23, 0
      %p43 = por %p41, %p42
      %p44 = scmp.ne.s32.totalorder %s33, %s36
      %p45 = scmp.eq.s32.totalorder %s28, 1
      %p46 = por %p44, %p45
      %p47 = scmp.ne.s32.totalorder %s36, %s37
      %p48 = scmp.eq.s32.totalorder %s28, 0
      %p49 = por %p47, %p48
      %p50 = scmp.ne.s32.totalorder %s36, %s37
      %p51 = scmp.eq.s32.totalorder %s29, 1
      %p52 = por %p50, %p51
      %p54 = scmp.ne.s32.totalorder %s37, %s53
      %p55 = scmp.eq.s32.totalorder %s29, 0
      %p56 = por %p54, %p55
      %s58 = sadd.s32 %s57, 1
      %p61 = scmp.eq.s32.totalorder %s23, 1
      %p62 = scmp.ne.s32.totalorder %s57, %s59
      %p63 = scmp.eq.s32.totalorder %s23, 0
      %p64 = por %p62, %p63
      %p65 = scmp.ne.s32.totalorder %s57, %s59
      %p66 = scmp.eq.s32.totalorder %s28, 1
      %p67 = por %p65, %p66
      %p68 = scmp.ne.s32.totalorder %s59, %s60
      %p69 = scmp.eq.s32.totalorder %s28, 0
      %p70 = por %p68, %p69
      %p71 = scmp.ne.s32.totalorder %s59, %s60
      %p72 = scmp.eq.s32.totalorder %s29, 1
      %p73 = por %p71, %p72
      %p75 = scmp.ne.s32.totalorder %s60, %s74
      %p76 = scmp.eq.s32.totalorder %s29, 0
      %p77 = por %p75, %p76
      %s79 = sadd.s32 %s78, 1
      %p82 = scmp.eq.s32.totalorder %s23, 1
      %p83 = scmp.ne.s32.totalorder %s78, %s80
      %p84 = scmp.eq.s32.totalorder %s23, 0
      %p85 = por %p83, %p84
      %p86 = scmp.ne.s32.totalorder %s78, %s80
      %p87 = scmp.eq.s32.totalorder %s28, 1
      %p88 = por %p86, %p87
      %p89 = scmp.ne.s32.totalorder %s80, %s81
      %p90 = scmp.eq.s32.totalorder %s28, 0
      %p91 = por %p89, %p90
      %p92 = scmp.ne.s32.totalorder %s80, %s81
      %p93 = scmp.eq.s32.totalorder %s29, 1
      %p94 = por %p92, %p93
      %p96 = scmp.ne.s32.totalorder %s81, %s95
      %p97 = scmp.eq.s32.totalorder %s29, 0
      %p98 = por %p96, %p97
      %s100 = sadd.s32 %s99, 1
      %p103 = scmp.eq.s32.totalorder %s23, 1
      %p104 = scmp.ne.s32.totalorder %s99, %s101
      %p105 = scmp.eq.s32.totalorder %s23, 0
      %p106 = por %p104, %p105
      %p107 = scmp.ne.s32.totalorder %s99, %s101
      %p108 = scmp.eq.s32.totalorder %s28, 1
      %p109 = por %p107, %p108
      %p110 = scmp.ne.s32.totalorder %s101, %s102
      %p111 = scmp.eq.s32.totalorder %s28, 0
      %p112 = por %p110, %p111
      %p113 = scmp.ne.s32.totalorder %s101, %s102
      %p114 = scmp.eq.s32.totalorder %s29, 1
      %p115 = por %p113, %p114
      %p117 = scmp.ne.s32.totalorder %s102, %s116
      %p118 = scmp.eq.s32.totalorder %s29, 0
      %p119 = por %p117, %p118
      %s121 = sadd.s32 %s120, 1
      %p124 = scmp.eq.s32.totalorder %s23, 1
      %p125 = scmp.ne.s32.totalorder %s120, %s122
      %p126 = scmp.eq.s32.totalorder %s23, 0
      %p127 = por %p125, %p126
      %p128 = scmp.ne.s32.totalorder %s120, %s122
      %p129 = scmp.eq.s32.totalorder %s28, 1
      %p130 = por %p128, %p129
      %p131 = scmp.ne.s32.totalorder %s122, %s123
      %p132 = scmp.eq.s32.totalorder %s28, 0
      %p133 = por %p131, %p132
      %p134 = scmp.ne.s32.totalorder %s122, %s123
      %p135 = scmp.eq.s32.totalorder %s29, 1
      %p136 = por %p134, %p135
      %p138 = scmp.ne.s32.totalorder %s123, %s137
      %p139 = scmp.eq.s32.totalorder %s29, 0
      %p140 = por %p138, %p139
      %s142 = sadd.s32 %s141, 1
      %p145 = scmp.eq.s32.totalorder %s23, 1
      %p146 = scmp.ne.s32.totalorder %s141, %s143
      %p147 = scmp.eq.s32.totalorder %s23, 0
      %p148 = por %p146, %p147
      %p149 = scmp.ne.s32.totalorder %s141, %s143
      %p150 = scmp.eq.s32.totalorder %s28, 1
      %p151 = por %p149, %p150
      %p152 = scmp.ne.s32.totalorder %s143, %s144
      %p153 = scmp.eq.s32.totalorder %s28, 0
      %p154 = por %p152, %p153
      %p155 = scmp.ne.s32.totalorder %s143, %s144
      %p156 = scmp.eq.s32.totalorder %s29, 1
      %p157 = por %p155, %p156
      %p159 = scmp.ne.s32.totalorder %s144, %s158
      %p160 = scmp.eq.s32.totalorder %s29, 0
      %p161 = por %p159, %p160
      %s163 = sadd.s32 %s162, 1
      %p166 = scmp.eq.s32.totalorder %s23, 1
      %p167 = scmp.ne.s32.totalorder %s162, %s164
      %p168 = scmp.eq.s32.totalorder %s23, 0
      %p169 = por %p167, %p168
      %p170 = scmp.ne.s32.totalorder %s162, %s164
      %p171 = scmp.eq.s32.totalorder %s28, 1
      %p172 = por %p170, %p171
      %p173 = scmp.ne.s32.totalorder %s164, %s165
      %p174 = scmp.eq.s32.totalorder %s28, 0
      %p175 = por %p173, %p174
      %p176 = scmp.ne.s32.totalorder %s164, %s165
      %p177 = scmp.eq.s32.totalorder %s29, 1
      %p178 = por %p176, %p177
      %p180 = scmp.ne.s32.totalorder %s165, %s179
      %p181 = scmp.eq.s32.totalorder %s29, 0
      %p182 = por %p180, %p181
      %s184 = sadd.s32 %s183, 1
      %p187 = scmp.eq.s32.totalorder %s23, 1
      %p188 = scmp.ne.s32.totalorder %s183, %s185
      %p189 = scmp.eq.s32.totalorder %s23, 0
      %p190 = por %p188, %p189
      %p191 = scmp.ne.s32.totalorder %s183, %s185
      %p192 = scmp.eq.s32.totalorder %s28, 1
      %p193 = por %p191, %p192
      %p194 = scmp.ne.s32.totalorder %s185, %s186
      %p195 = scmp.eq.s32.totalorder %s28, 0
      %p196 = por %p194, %p195
      %p197 = scmp.ne.s32.totalorder %s185, %s186
      %p198 = scmp.eq.s32.totalorder %s29, 1
      %p199 = por %p197, %p198
      %p201 = scmp.ne.s32.totalorder %s186, %s200
      %p202 = scmp.eq.s32.totalorder %s29, 0
      %p203 = por %p201, %p202
      %s205 = sadd.s32 %s204, 1
      %p208 = scmp.eq.s32.totalorder %s23, 1
      %p209 = scmp.ne.s32.totalorder %s204, %s206
      %p210 = scmp.eq.s32.totalorder %s23, 0
      %p211 = por %p209, %p210
      %p212 = scmp.ne.s32.totalorder %s204, %s206
      %p213 = scmp.eq.s32.totalorder %s28, 1
      %p214 = por %p212, %p213
      %p215 = scmp.ne.s32.totalorder %s206, %s207
      %p216 = scmp.eq.s32.totalorder %s28, 0
      %p217 = por %p215, %p216
      %p218 = scmp.ne.s32.totalorder %s206, %s207
      %p219 = scmp.eq.s32.totalorder %s29, 1
      %p220 = por %p218, %p219
      %p222 = scmp.ne.s32.totalorder %s207, %s221
      %p223 = scmp.eq.s32.totalorder %s29, 0
      %p224 = por %p222, %p223
      %s225 = ssub.s32 %s23, %s30
      %p226 = scmp.eq.s32.totalorder %s225, 0
      %s228 = sadd.s32 %s227, 1
      %s229 = scalar_select %p226, %s227, %s228
      %p232 = pneg %p226
      %p233 = scmp.eq.s32.totalorder %s23, 1
      %p234 = por %p232, %p233
      %p235 = scmp.ne.s32.totalorder %s227, %s230
      %p236 = scmp.eq.s32.totalorder %s23, 0
      %p237 = por %p235, %p236
      %p238 = scmp.ne.s32.totalorder %s227, %s230
      %p239 = scmp.eq.s32.totalorder %s28, 1
      %p240 = por %p238, %p239
      %p241 = scmp.ne.s32.totalorder %s230, %s231
      %p242 = scmp.eq.s32.totalorder %s28, 0
      %p243 = por %p241, %p242
      %p244 = scmp.ne.s32.totalorder %s230, %s231
      %p245 = scmp.eq.s32.totalorder %s29, 1
      %p246 = por %p244, %p245
      %p248 = scmp.ne.s32.totalorder %s231, %s247
      %p249 = scmp.eq.s32.totalorder %s29, 0
      %p250 = por %p248, %p249
      %p251 = scmp.le.s32.totalorder 1, %s23
      %p252 = scmp.lt.s32.totalorder %s23, 3
      %p253 = pnand %p251, %p252
      %p254 = pneg %p253
      // Predicated region
      $region9: #{tpu_custom_call.1} parent=5 // pred_check
        _
      $region10: #{tpu_custom_call.1} parent=5 // pred_check_branch
        %256 = sbr.rel (%p253) target = $region12
      $region11: #{tpu_custom_call.1} parent=5 // pred_region
        %s257 = ssub.s32 %s23, 1
        // Predicated region
        $region13: #{tpu_custom_call.1} parent=11 // pred_check
          %p258 = pneg %p70
        $region14: #{tpu_custom_call.1} parent=11 // pred_check_branch
          %260 = sbr.rel (%p258) target = $region16
        $region15: #{tpu_custom_call.1} parent=11 // pred_region
          %s262 = ssub.s32 384, 384
          %263 = vsyncadd [#allocation6], %s262
          %s264 = sshll.u32 [#allocation5], 4
          %s265 = int_to_ptr.vmem [resolvable:$true] %s264
          %270 = dma.hbm_to_vmem [thread:$0]  %s1, 384, %s265, [#allocation6], 64, 64, 4
        $region16: #{tpu_custom_call.1} parent=11 // pred_fallthru
          _
        // Predicated region
        $region17: #{tpu_custom_call.1} parent=11 // pred_check
          %p271 = pneg %p91
        $region18: #{tpu_custom_call.1} parent=11 // pred_check_branch
          %273 = sbr.rel (%p271) target = $region20
        $region19: #{tpu_custom_call.1} parent=11 // pred_region
          %s275 = ssub.s32 15360, 15360
          %276 = vsyncadd [#allocation6], %s275
          %s277 = sshll.u32 [#allocation7], 4
          %s278 = int_to_ptr.vmem [resolvable:$true] %s277
          %283 = dma.hbm_to_vmem [thread:$0]  %s2, 15360, %s278, [#allocation6], 64, 64, 4
        $region20: #{tpu_custom_call.1} parent=11 // pred_fallthru
          _
        // Predicated region
        $region21: #{tpu_custom_call.1} parent=11 // pred_check
          %p284 = pneg %p112
        $region22: #{tpu_custom_call.1} parent=11 // pred_check_branch
          %286 = sbr.rel (%p284) target = $region24
        $region23: #{tpu_custom_call.1} parent=11 // pred_region
          _
        $region24: #{tpu_custom_call.1} parent=11 // pred_fallthru
          _
        // Predicated region
        $region25: #{tpu_custom_call.1} parent=11 // pred_check
          %p287 = pneg %p133
        $region26: #{tpu_custom_call.1} parent=11 // pred_check_branch
          %289 = sbr.rel (%p287) target = $region28
        $region27: #{tpu_custom_call.1} parent=11 // pred_region
          %s291 = ssub.s32 128, 128
          %292 = vsyncadd [#allocation9], %s291
          %s293 = sshll.u32 [#allocation8], 4
          %s294 = int_to_ptr.vmem [resolvable:$true] %s293
          %299 = dma.hbm_to_vmem [thread:$0]  %s4, 128, %s294, [#allocation9], 64, 64, 4
        $region28: #{tpu_custom_call.1} parent=11 // pred_fallthru
          _
        // Predicated region
        $region29: #{tpu_custom_call.1} parent=11 // pred_check
          %p300 = pneg %p154
        $region30: #{tpu_custom_call.1} parent=11 // pred_check_branch
          %302 = sbr.rel (%p300) target = $region32
        $region31: #{tpu_custom_call.1} parent=11 // pred_region
          _
        $region32: #{tpu_custom_call.1} parent=11 // pred_fallthru
          _
        // Predicated region
        $region33: #{tpu_custom_call.1} parent=11 // pred_check
          %p303 = pneg %p175
        $region34: #{tpu_custom_call.1} parent=11 // pred_check_branch
          %305 = sbr.rel (%p303) target = $region36
        $region35: #{tpu_custom_call.1} parent=11 // pred_region
          %s307 = ssub.s32 7168, 7168
          %308 = vsyncadd [#allocation9], %s307
          %s309 = sshll.u32 [#allocation10], 4
          %s310 = int_to_ptr.vmem [resolvable:$true] %s309
          %315 = dma.hbm_to_vmem [thread:$0]  %s6, 7168, %s310, [#allocation9], 64, 64, 4
        $region36: #{tpu_custom_call.1} parent=11 // pred_fallthru
          _
        // Predicated region
        $region37: #{tpu_custom_call.1} parent=11 // pred_check
          %p316 = pneg %p196
        $region38: #{tpu_custom_call.1} parent=11 // pred_check_branch
          %318 = sbr.rel (%p316) target = $region40
        $region39: #{tpu_custom_call.1} parent=11 // pred_region
          _
        $region40: #{tpu_custom_call.1} parent=11 // pred_fallthru
          _
        // Predicated region
        $region41: #{tpu_custom_call.1} parent=11 // pred_check
          %p319 = pneg %p217
        $region42: #{tpu_custom_call.1} parent=11 // pred_check_branch
          %321 = sbr.rel (%p319) target = $region44
        $region43: #{tpu_custom_call.1} parent=11 // pred_region
          _
        $region44: #{tpu_custom_call.1} parent=11 // pred_fallthru
          _
      $region12: #{tpu_custom_call.1} parent=5 // pred_fallthru
        _
      %p322 = scmp.lt.s32.totalorder %s23, 2
      // Predicated region
      $region45: #{tpu_custom_call.1} parent=5 // pred_check
        %p323 = pneg %p322
      $region46: #{tpu_custom_call.1} parent=5 // pred_check_branch
        %325 = sbr.rel (%p323) target = $region48
      $region47: #{tpu_custom_call.1} parent=5 // pred_region
        // Predicated region
        $region49: #{tpu_custom_call.1} parent=47 // pred_check
          %p326 = pneg %p43
        $region50: #{tpu_custom_call.1} parent=47 // pred_check_branch
          %328 = sbr.rel (%p326) target = $region52
        $region51: #{tpu_custom_call.1} parent=47 // pred_region
          %s329 = sand.u32 %s33, 1
          %s330 = scalar_lea.sflag [#allocation3], %s329
          %s331 = sand.u32 %s33, 1
          %s332 = smul.addr %s331, 16
          %s333 = scalar_lea.vmem [#allocation2], %s332
          %s335 = ssub.s32 256, 256
          %336 = vsyncadd %s330, %s335
          %s337 = smul.addr %s23, 2
          %s338 = smul.addr %s337, 128
          %s339 = scalar_lea.hbm %s0, %s338
          %s340 = sshll.u32 %s333, 4
          %s341 = int_to_ptr.vmem [resolvable:$true] %s340
          %346 = dma.hbm_to_vmem [thread:$0]  %s339, 256, %s341, %s330, 128, 128, 8
        $region52: #{tpu_custom_call.1} parent=47 // pred_fallthru
          _
      $region48: #{tpu_custom_call.1} parent=5 // pred_fallthru
        _
      %p347 = scmp.le.s32.totalorder 1, %s23
      %p348 = scmp.lt.s32.totalorder %s23, 3
      %p349 = pnand %p347, %p348
      %p350 = pneg %p349
      // Predicated region
      $region53: #{tpu_custom_call.1} parent=5 // pred_check
        _
      $region54: #{tpu_custom_call.1} parent=5 // pred_check_branch
        %352 = sbr.rel (%p349) target = $region56
      $region55: #{tpu_custom_call.1} parent=5 // pred_region
        %s353 = ssub.s32 %s23, 1
        %s354 = sand.u32 %s36, 1
        %s355 = scalar_lea.sflag [#allocation3], %s354
        %s356 = sand.u32 %s36, 1
        %s357 = smul.addr %s356, 16
        %s358 = scalar_lea.vmem [#allocation2], %s357
        // Predicated region
        $region57: #{tpu_custom_call.1} parent=55 // pred_check
          %p359 = pneg %p49
        $region58: #{tpu_custom_call.1} parent=55 // pred_check_branch
          %361 = sbr.rel (%p359) target = $region60
        $region59: #{tpu_custom_call.1} parent=55 // pred_region
          %362 = dma.done %s355, 256
        $region60: #{tpu_custom_call.1} parent=55 // pred_fallthru
          _
        // Predicated region
        $region61: #{tpu_custom_call.1} parent=55 // pred_check
          %p363 = pneg %p70
        $region62: #{tpu_custom_call.1} parent=55 // pred_check_branch
          %365 = sbr.rel (%p363) target = $region64
        $region63: #{tpu_custom_call.1} parent=55 // pred_region
          %366 = dma.done [#allocation6], 384
        $region64: #{tpu_custom_call.1} parent=55 // pred_fallthru
          _
        // Predicated region
        $region65: #{tpu_custom_call.1} parent=55 // pred_check
          %p367 = pneg %p91
        $region66: #{tpu_custom_call.1} parent=55 // pred_check_branch
          %369 = sbr.rel (%p367) target = $region68
        $region67: #{tpu_custom_call.1} parent=55 // pred_region
          %370 = dma.done [#allocation6], 15360
        $region68: #{tpu_custom_call.1} parent=55 // pred_fallthru
          _
        // Predicated region
        $region69: #{tpu_custom_call.1} parent=55 // pred_check
          %p371 = pneg %p133
        $region70: #{tpu_custom_call.1} parent=55 // pred_check_branch
          %373 = sbr.rel (%p371) target = $region72
        $region71: #{tpu_custom_call.1} parent=55 // pred_region
          %374 = dma.done [#allocation9], 128
        $region72: #{tpu_custom_call.1} parent=55 // pred_fallthru
          _
        // Predicated region
        $region73: #{tpu_custom_call.1} parent=55 // pred_check
          %p375 = pneg %p175
        $region74: #{tpu_custom_call.1} parent=55 // pred_check_branch
          %377 = sbr.rel (%p375) target = $region76
        $region75: #{tpu_custom_call.1} parent=55 // pred_region
          %378 = dma.done [#allocation9], 7168
        $region76: #{tpu_custom_call.1} parent=55 // pred_fallthru
          _
        %s379 = sand.u32 %s36, 1
        %s380 = scalar_lea.sflag [#allocation3], %s379
        %s381 = sand.u32 %s36, 1
        %s382 = smul.addr %s381, 16
        %s383 = scalar_lea.vmem [#allocation2], %s382
        %p384 = pneg %p49
        %p385 = pneg %p46
        %p386 = pneg %p70
        %p387 = pneg %p67
        %p388 = pneg %p91
        %p389 = pneg %p88
        %p390 = pneg %p112
        %p391 = pneg %p109
        %p392 = pneg %p133
        %p393 = pneg %p130
        %p394 = pneg %p154
        %p395 = pneg %p151
        %p396 = pneg %p175
        %p397 = pneg %p172
        %p398 = pneg %p196
        %p399 = pneg %p193
        %p400 = pneg %p217
        %p401 = pneg %p214
        %p402 = pneg %p243
        %p403 = pneg %p240
        %s404 = sand.u32 %s230, 1
        %s405 = scalar_lea.sflag [#allocation4], %s404
        %s406 = sand.u32 %s230, 1
        %s407 = scalar_lea.vmem [#allocation11], %s406
        %v409 = vld [vmem:[%s358] sm:$0xff]
        %v410 = vld [vmem:[%s358 + $0x8] sm:$0xff]
        %v411 = vlaneseq
        %v412 = vand.u32 %v411, 127
        %vm413 = vcmp.lt.s32.totalorder %v412, 16
        %v414 = vsel %vm413, 1, 0
        %v415 = vcvt.s32.f32 %v414
        %vm416 = vcmp.lt.s32.totalorder %v412, 32
        %v417 = vsel %vm416, 1, 0
        %v418 = vcvt.s32.f32 %v417
        %v419 = vlaneseq
        %v420 = vshrl.u32 %v419, 7
        %v421 = vadd.s32 %v420, 8
        %v422 = vld [vmem:[#allocation8] sm:$0xf]
        %v423 = vld [vmem:[#allocation8 + $0x4] sm:$0xf]
        %v424 = vpack.c.bf16 %v410, %v409
        %v425 = vld [vmem:[%s5] sm:$0x1]
        %v427 = vlaneseq
        %v428 = vshrl.u32 %v427, 7
        %v429 = vsub.s32 0, %v428
        %v430 = vrot.slane %v425, %v429
        %v434 = vunpack.c.l.b16 %v422
        %v435 = vunpack.c.l.b16 %v423
        %v436 = vpack.c.b16 %v435, %v434
        %vm438 = vcmask 130048
        %v440 = vsel %vm438, %v424, 0
        %442 = vmatprep.subr.bf16.mxu0 0
        %443 = vmatpush1.bf16.msra.mxu0 %v436
        %444 = vmatprep.subr.bf16.mxu0 0
        %445 = vmatpush1.bf16.msra.mxu0 0
        %446 = vmatprep.subr.bf16.mxu0 0
        %447 = vmatpush1.bf16.msra.mxu0 0
        %448 = vmatprep.subr.bf16.mxu0 0
        %449 = vmatpush1.bf16.msra.mxu0 0
        %450 = vmatprep.subr.bf16.mxu0 0
        %451 = vmatpush1.bf16.msra.mxu0 0
        %452 = vmatprep.subr.bf16.mxu0 0
        %453 = vmatpush1.bf16.msra.mxu0 0
        %454 = vmatprep.subr.bf16.mxu0 0
        %455 = vmatpush1.bf16.msra.mxu0 0
        %456 = vmatprep.subr.bf16.mxu0 0
        %457 = vmatpush1.bf16.msra.mxu0 0
        %458 = vmatprep.subr.bf16.mxu0 0
        %459 = vmatpush1.bf16.msra.mxu0 0
        %460 = vmatprep.subr.bf16.mxu0 0
        %461 = vmatpush1.bf16.msra.mxu0 0
        %462 = vmatprep.subr.bf16.mxu0 0
        %463 = vmatpush1.bf16.msra.mxu0 0
        %464 = vmatprep.subr.bf16.mxu0 0
        %465 = vmatpush1.bf16.msra.mxu0 0
        %466 = vmatprep.subr.bf16.mxu0 0
        %467 = vmatpush1.bf16.msra.mxu0 0
        %468 = vmatprep.subr.bf16.mxu0 0
        %469 = vmatpush1.bf16.msra.mxu0 0
        %470 = vmatprep.subr.bf16.mxu0 0
        %471 = vmatpush1.bf16.msra.mxu0 0
        %472 = vmatprep.subr.bf16.mxu0 0
        %473 = vmatpush1.bf16.msra.mxu0 0
        %474 = vmatprep.mubr.bf16.mxu0 0
        %475 = vmatmul.mubr.bf16.gmra.mrb[0].mxu0 %v440
        %v476 = vpop.f32.mrb[0].mxu0
        %v477 = vadd.f32 %v430, %v476
        %v478 = vpop.f32.mrb[0].mxu0
        %v479 = vpop.f32.mrb[0].mxu0
        %v480 = vadd.f32 %v430, %v479
        %v481 = vpop.f32.mrb[0].mxu0
        %482 = vdwg.mxu0
        %v483 = vld [vmem:[%s3] sm:$0x1]
        %vm484 = vcmp.ge.s32.totalorder %v420, 1
        %vm485 = vcmp.ge.s32.totalorder %v421, 1
        %v486 = vsel %vm484, 1, 0
        %v487 = vsel %vm485, 1, 0
        %v488 = vcvt.s32.f32 %v486
        %v489 = vcvt.s32.f32 %v487
        %vm490 = vcmp.lt.s32.totalorder %v420, 15
        %vm491 = vcmp.lt.s32.totalorder %v421, 15
        %v492 = vsel %vm490, 1, 0
        %v493 = vsel %vm491, 1, 0
        %v494 = vcvt.s32.f32 %v492
        %v495 = vcvt.s32.f32 %v493
        %v496 = vrot.slane %v409, 7
        %v497 = vrot.slane %v410, 7
        %vm498 = vcmp.lt.s32.totalorder %v420, 1
        %v499 = vsel %vm498, %v496, %v497
        %v500 = vsel %vm498, %v497, %v496
        %v501 = vmul.f32 %v500, %v488
        %v502 = vmul.f32 %v499, %v489
        %v503 = vrot.slane %v409, 1
        %v504 = vrot.slane %v410, 1
        %vm505 = vcmp.lt.s32.totalorder %v420, 7
        %v506 = vsel %vm505, %v503, %v504
        %v507 = vsel %vm505, %v504, %v503
        %v508 = vmul.f32 %v506, %v494
        %v509 = vmul.f32 %v507, %v495
        %v510 = vpack.c.bf16 %v502, %v501
        %v511 = vld [vmem:[#allocation5] sm:$0xf]
        %v512 = vld [vmem:[#allocation5 + $0x4] sm:$0xf]
        %s513 = scalar_lea.vmem [#allocation5], 8
        %v514 = vld [vmem:[%s513] sm:$0xf]
        %v515 = vld [vmem:[%s513 + $0x4] sm:$0xf]
        %v518 = vunpack.c.l.b16 %v514
        %v519 = vunpack.c.l.b16 %v515
        %v520 = vpack.c.b16 %v519, %v518
        %522 = vmatprep.subr.bf16.mxu0 0
        %523 = vmatpush1.bf16.msra.mxu0 %v520
        %524 = vmatprep.subr.bf16.mxu0 0
        %525 = vmatpush1.bf16.msra.mxu0 0
        %526 = vmatprep.subr.bf16.mxu0 0
        %527 = vmatpush1.bf16.msra.mxu0 0
        %528 = vmatprep.subr.bf16.mxu0 0
        %529 = vmatpush1.bf16.msra.mxu0 0
        %530 = vmatprep.subr.bf16.mxu0 0
        %531 = vmatpush1.bf16.msra.mxu0 0
        %532 = vmatprep.subr.bf16.mxu0 0
        %533 = vmatpush1.bf16.msra.mxu0 0
        %534 = vmatprep.subr.bf16.mxu0 0
        %535 = vmatpush1.bf16.msra.mxu0 0
        %536 = vmatprep.subr.bf16.mxu0 0
        %537 = vmatpush1.bf16.msra.mxu0 0
        %538 = vmatprep.subr.bf16.mxu0 0
        %539 = vmatpush1.bf16.msra.mxu0 0
        %540 = vmatprep.subr.bf16.mxu0 0
        %541 = vmatpush1.bf16.msra.mxu0 0
        %542 = vmatprep.subr.bf16.mxu0 0
        %543 = vmatpush1.bf16.msra.mxu0 0
        %544 = vmatprep.subr.bf16.mxu0 0
        %545 = vmatpush1.bf16.msra.mxu0 0
        %546 = vmatprep.subr.bf16.mxu0 0
        %547 = vmatpush1.bf16.msra.mxu0 0
        %548 = vmatprep.subr.bf16.mxu0 0
        %549 = vmatpush1.bf16.msra.mxu0 0
        %550 = vmatprep.subr.bf16.mxu0 0
        %551 = vmatpush1.bf16.msra.mxu0 0
        %552 = vmatprep.subr.bf16.mxu0 0
        %553 = vmatpush1.bf16.msra.mxu0 0
        %554 = vmatprep.mubr.bf16.mxu0 0
        %555 = vmatmul.mubr.bf16.gmra.mrb[0].mxu0 %v440
        %v556 = vpop.f32.mrb[0].mxu0
        %v557 = vadd.f32 0.0, %v556
        %v558 = vpop.f32.mrb[0].mxu0
        %v559 = vpop.f32.mrb[0].mxu0
        %v560 = vadd.f32 0.0, %v559
        %v561 = vpop.f32.mrb[0].mxu0
        %562 = vdwg.mxu0
        %v565 = vunpack.c.l.b16 %v511
        %v566 = vunpack.c.l.b16 %v512
        %v567 = vpack.c.b16 %v566, %v565
        %v570 = vsel %vm438, %v510, 0
        %572 = vmatprep.subr.bf16.mxu0 0
        %573 = vmatpush1.bf16.msra.mxu0 %v567
        %574 = vmatprep.subr.bf16.mxu0 0
        %575 = vmatpush1.bf16.msra.mxu0 0
        %576 = vmatprep.subr.bf16.mxu0 0
        %577 = vmatpush1.bf16.msra.mxu0 0
        %578 = vmatprep.subr.bf16.mxu0 0
        %579 = vmatpush1.bf16.msra.mxu0 0
        %580 = vmatprep.subr.bf16.mxu0 0
        %581 = vmatpush1.bf16.msra.mxu0 0
        %582 = vmatprep.subr.bf16.mxu0 0
        %583 = vmatpush1.bf16.msra.mxu0 0
        %584 = vmatprep.subr.bf16.mxu0 0
        %585 = vmatpush1.bf16.msra.mxu0 0
        %586 = vmatprep.subr.bf16.mxu0 0
        %587 = vmatpush1.bf16.msra.mxu0 0
        %588 = vmatprep.subr.bf16.mxu0 0
        %589 = vmatpush1.bf16.msra.mxu0 0
        %590 = vmatprep.subr.bf16.mxu0 0
        %591 = vmatpush1.bf16.msra.mxu0 0
        %592 = vmatprep.subr.bf16.mxu0 0
        %593 = vmatpush1.bf16.msra.mxu0 0
        %594 = vmatprep.subr.bf16.mxu0 0
        %595 = vmatpush1.bf16.msra.mxu0 0
        %596 = vmatprep.subr.bf16.mxu0 0
        %597 = vmatpush1.bf16.msra.mxu0 0
        %598 = vmatprep.subr.bf16.mxu0 0
        %599 = vmatpush1.bf16.msra.mxu0 0
        %600 = vmatprep.subr.bf16.mxu0 0
        %601 = vmatpush1.bf16.msra.mxu0 0
        %602 = vmatprep.subr.bf16.mxu0 0
        %603 = vmatpush1.bf16.msra.mxu0 0
        %604 = vmatprep.mubr.bf16.mxu0 0
        %605 = vmatmul.mubr.bf16.gmra.mrb[0].mxu0 %v570
        %v606 = vpop.f32.mrb[0].mxu0
        %v607 = vadd.f32 %v557, %v606
        %v608 = vpop.f32.mrb[0].mxu0
        %v609 = vpop.f32.mrb[0].mxu0
        %v610 = vadd.f32 %v560, %v609
        %v611 = vpop.f32.mrb[0].mxu0
        %612 = vdwg.mxu0
        %v613 = vpack.c.bf16 %v509, %v508
        %s614 = scalar_lea.vmem [#allocation5], 16
        %v615 = vld [vmem:[%s614] sm:$0xf]
        %v616 = vld [vmem:[%s614 + $0x4] sm:$0xf]
        %v619 = vunpack.c.l.b16 %v615
        %v620 = vunpack.c.l.b16 %v616
        %v621 = vpack.c.b16 %v620, %v619
        %v624 = vsel %vm438, %v613, 0
        %626 = vmatprep.subr.bf16.mxu0 0
        %627 = vmatpush1.bf16.msra.mxu0 %v621
        %628 = vmatprep.subr.bf16.mxu0 0
        %629 = vmatpush1.bf16.msra.mxu0 0
        %630 = vmatprep.subr.bf16.mxu0 0
        %631 = vmatpush1.bf16.msra.mxu0 0
        %632 = vmatprep.subr.bf16.mxu0 0
        %633 = vmatpush1.bf16.msra.mxu0 0
        %634 = vmatprep.subr.bf16.mxu0 0
        %635 = vmatpush1.bf16.msra.mxu0 0
        %636 = vmatprep.subr.bf16.mxu0 0
        %637 = vmatpush1.bf16.msra.mxu0 0
        %638 = vmatprep.subr.bf16.mxu0 0
        %639 = vmatpush1.bf16.msra.mxu0 0
        %640 = vmatprep.subr.bf16.mxu0 0
        %641 = vmatpush1.bf16.msra.mxu0 0
        %642 = vmatprep.subr.bf16.mxu0 0
        %643 = vmatpush1.bf16.msra.mxu0 0
        %644 = vmatprep.subr.bf16.mxu0 0
        %645 = vmatpush1.bf16.msra.mxu0 0
        %646 = vmatprep.subr.bf16.mxu0 0
        %647 = vmatpush1.bf16.msra.mxu0 0
        %648 = vmatprep.subr.bf16.mxu0 0
        %649 = vmatpush1.bf16.msra.mxu0 0
        %650 = vmatprep.subr.bf16.mxu0 0
        %651 = vmatpush1.bf16.msra.mxu0 0
        %652 = vmatprep.subr.bf16.mxu0 0
        %653 = vmatpush1.bf16.msra.mxu0 0
        %654 = vmatprep.subr.bf16.mxu0 0
        %655 = vmatpush1.bf16.msra.mxu0 0
        %656 = vmatprep.subr.bf16.mxu0 0
        %657 = vmatpush1.bf16.msra.mxu0 0
        %658 = vmatprep.mubr.bf16.mxu0 0
        %659 = vmatmul.mubr.bf16.gmra.mrb[0].mxu0 %v624
        %v660 = vpop.f32.mrb[0].mxu0
        %v661 = vadd.f32 0.0, %v660
        %v662 = vpop.f32.mrb[0].mxu0
        %v663 = vpop.f32.mrb[0].mxu0
        %v664 = vadd.f32 0.0, %v663
        %v665 = vpop.f32.mrb[0].mxu0
        %666 = vdwg.mxu0
        %v667 = vadd.f32 %v607, %v661
        %v668 = vadd.f32 %v610, %v664
        %v669 = vlaneseq
        %v670 = vshrl.u32 %v669, 7
        %v671 = vsub.s32 0, %v670
        %v672 = vrot.slane %v483, %v671
        %v673 = vadd.f32 %v667, %v672
        %v674 = vadd.f32 %v668, %v672
        %v675 = vmax.f32 %v673, 0.0
        %v676 = vmax.f32 %v674, 0.0
        %v677 = vld [vmem:[%s3 + $0x1] sm:$0x1]
        %v678 = vrot.slane %v675, 7
        %v679 = vrot.slane %v676, 7
        %v680 = vsel %vm498, %v678, %v679
        %v681 = vsel %vm498, %v679, %v678
        %v682 = vmul.f32 %v681, %v488
        %v683 = vmul.f32 %v680, %v489
        %v684 = vrot.slane %v675, 1
        %v685 = vrot.slane %v676, 1
        %v686 = vsel %vm505, %v684, %v685
        %v687 = vsel %vm505, %v685, %v684
        %v688 = vmul.f32 %v686, %v494
        %v689 = vmul.f32 %v687, %v495
        %v690 = vpack.c.bf16 %v683, %v682
        %v691 = vld [vmem:[#allocation7] sm:$0xf]
        %v692 = vld [vmem:[#allocation7 + $0x4] sm:$0xf]
        %v693 = vld [vmem:[#allocation7 + $0x8] sm:$0xf]
        %v694 = vld [vmem:[#allocation7 + $0xc] sm:$0xf]
        %v695 = vld [vmem:[#allocation7 + $0x10] sm:$0xf]
        %v696 = vld [vmem:[#allocation7 + $0x14] sm:$0xf]
        %v697 = vld [vmem:[#allocation7 + $0x18] sm:$0xf]
        %v698 = vld [vmem:[#allocation7 + $0x1c] sm:$0xf]
        %v699 = vld [vmem:[#allocation7 + $0x20] sm:$0xf]
        %v700 = vld [vmem:[#allocation7 + $0x24] sm:$0xf]
        %v701 = vld [vmem:[#allocation7 + $0x28] sm:$0xf]
        %v702 = vld [vmem:[#allocation7 + $0x2c] sm:$0xf]
        %v703 = vld [vmem:[#allocation7 + $0x30] sm:$0xf]
        %v704 = vld [vmem:[#allocation7 + $0x34] sm:$0xf]
        %v705 = vld [vmem:[#allocation7 + $0x38] sm:$0xf]
        %v706 = vld [vmem:[#allocation7 + $0x3c] sm:$0xf]
        %v707 = vpack.c.bf16 %v676, %v675
        %s708 = scalar_lea.vmem [#allocation7], 64
        %v709 = vld [vmem:[%s708] sm:$0xf]
        %v710 = vld [vmem:[%s708 + $0x4] sm:$0xf]
        %v711 = vld [vmem:[%s708 + $0x8] sm:$0xf]
        %v712 = vld [vmem:[%s708 + $0xc] sm:$0xf]
        %v713 = vld [vmem:[%s708 + $0x10] sm:$0xf]
        %v714 = vld [vmem:[%s708 + $0x14] sm:$0xf]
        %v715 = vld [vmem:[%s708 + $0x18] sm:$0xf]
        %v716 = vld [vmem:[%s708 + $0x1c] sm:$0xf]
        %v717 = vld [vmem:[%s708 + $0x20] sm:$0xf]
        %v718 = vld [vmem:[%s708 + $0x24] sm:$0xf]
        %v719 = vld [vmem:[%s708 + $0x28] sm:$0xf]
        %v720 = vld [vmem:[%s708 + $0x2c] sm:$0xf]
        %v721 = vld [vmem:[%s708 + $0x30] sm:$0xf]
        %v722 = vld [vmem:[%s708 + $0x34] sm:$0xf]
        %v723 = vld [vmem:[%s708 + $0x38] sm:$0xf]
        %v724 = vld [vmem:[%s708 + $0x3c] sm:$0xf]
        %v741 = vunpack.c.l.b16 %v709
        %v742 = vunpack.c.l.b16 %v710
        %v743 = vunpack.c.l.b16 %v711
        %v744 = vunpack.c.l.b16 %v712
        %v745 = vunpack.c.l.b16 %v713
        %v746 = vunpack.c.l.b16 %v714
        %v747 = vunpack.c.l.b16 %v715
        %v748 = vunpack.c.l.b16 %v716
        %v749 = vunpack.c.l.b16 %v717
        %v750 = vunpack.c.l.b16 %v718
        %v751 = vunpack.c.l.b16 %v719
        %v752 = vunpack.c.l.b16 %v720
        %v753 = vunpack.c.l.b16 %v721
        %v754 = vunpack.c.l.b16 %v722
        %v755 = vunpack.c.l.b16 %v723
        %v756 = vunpack.c.l.b16 %v724
        %v757 = vpack.c.b16 %v742, %v741
        %v758 = vpack.c.b16 %v744, %v743
        %v759 = vpack.c.b16 %v746, %v745
        %v760 = vpack.c.b16 %v748, %v747
        %v761 = vpack.c.b16 %v750, %v749
        %v762 = vpack.c.b16 %v752, %v751
        %v763 = vpack.c.b16 %v754, %v753
        %v764 = vpack.c.b16 %v756, %v755
        %773 = vmatprep.subr.bf16.mxu0 0
        %774 = vmatpush1.bf16.msra.mxu0 %v757
        %775 = vmatprep.subr.bf16.mxu0 0
        %776 = vmatpush1.bf16.msra.mxu0 %v758
        %777 = vmatprep.subr.bf16.mxu0 0
        %778 = vmatpush1.bf16.msra.mxu0 %v759
        %779 = vmatprep.subr.bf16.mxu0 0
        %780 = vmatpush1.bf16.msra.mxu0 %v760
        %781 = vmatprep.subr.bf16.mxu0 0
        %782 = vmatpush1.bf16.msra.mxu0 %v761
        %783 = vmatprep.subr.bf16.mxu0 0
        %784 = vmatpush1.bf16.msra.mxu0 %v762
        %785 = vmatprep.subr.bf16.mxu0 0
        %786 = vmatpush1.bf16.msra.mxu0 %v763
        %787 = vmatprep.subr.bf16.mxu0 0
        %788 = vmatpush1.bf16.msra.mxu0 %v764
        %789 = vmatprep.subr.bf16.mxu0 0
        %790 = vmatpush1.bf16.msra.mxu0 0
        %791 = vmatprep.subr.bf16.mxu0 0
        %792 = vmatpush1.bf16.msra.mxu0 0
        %793 = vmatprep.subr.bf16.mxu0 0
        %794 = vmatpush1.bf16.msra.mxu0 0
        %795 = vmatprep.subr.bf16.mxu0 0
        %796 = vmatpush1.bf16.msra.mxu0 0
        %797 = vmatprep.subr.bf16.mxu0 0
        %798 = vmatpush1.bf16.msra.mxu0 0
        %799 = vmatprep.subr.bf16.mxu0 0
        %800 = vmatpush1.bf16.msra.mxu0 0
        %801 = vmatprep.subr.bf16.mxu0 0
        %802 = vmatpush1.bf16.msra.mxu0 0
        %803 = vmatprep.subr.bf16.mxu0 0
        %804 = vmatpush1.bf16.msra.mxu0 0
        %805 = vmatprep.mubr.bf16.mxu0 0
        %806 = vmatmul.mubr.bf16.gmra.mrb[0].mxu0 %v707
        %v807 = vpop.f32.mrb[0].mxu0
        %v808 = vadd.f32 0.0, %v807
        %v809 = vpop.f32.mrb[0].mxu0
        %v810 = vpop.f32.mrb[0].mxu0
        %v811 = vadd.f32 0.0, %v810
        %v812 = vpop.f32.mrb[0].mxu0
        %813 = vdwg.mxu0
        %v830 = vunpack.c.l.b16 %v691
        %v831 = vunpack.c.l.b16 %v692
        %v832 = vunpack.c.l.b16 %v693
        %v833 = vunpack.c.l.b16 %v694
        %v834 = vunpack.c.l.b16 %v695
        %v835 = vunpack.c.l.b16 %v696
        %v836 = vunpack.c.l.b16 %v697
        %v837 = vunpack.c.l.b16 %v698
        %v838 = vunpack.c.l.b16 %v699
        %v839 = vunpack.c.l.b16 %v700
        %v840 = vunpack.c.l.b16 %v701
        %v841 = vunpack.c.l.b16 %v702
        %v842 = vunpack.c.l.b16 %v703
        %v843 = vunpack.c.l.b16 %v704
        %v844 = vunpack.c.l.b16 %v705
        %v845 = vunpack.c.l.b16 %v706
        %v846 = vpack.c.b16 %v831, %v830
        %v847 = vpack.c.b16 %v833, %v832
        %v848 = vpack.c.b16 %v835, %v834
        %v849 = vpack.c.b16 %v837, %v836
        %v850 = vpack.c.b16 %v839, %v838
        %v851 = vpack.c.b16 %v841, %v840
        %v852 = vpack.c.b16 %v843, %v842
        %v853 = vpack.c.b16 %v845, %v844
        %862 = vmatprep.subr.bf16.mxu0 0
        %863 = vmatpush1.bf16.msra.mxu0 %v846
        %864 = vmatprep.subr.bf16.mxu0 0
        %865 = vmatpush1.bf16.msra.mxu0 %v847
        %866 = vmatprep.subr.bf16.mxu0 0
        %867 = vmatpush1.bf16.msra.mxu0 %v848
        %868 = vmatprep.subr.bf16.mxu0 0
        %869 = vmatpush1.bf16.msra.mxu0 %v849
        %870 = vmatprep.subr.bf16.mxu0 0
        %871 = vmatpush1.bf16.msra.mxu0 %v850
        %872 = vmatprep.subr.bf16.mxu0 0
        %873 = vmatpush1.bf16.msra.mxu0 %v851
        %874 = vmatprep.subr.bf16.mxu0 0
        %875 = vmatpush1.bf16.msra.mxu0 %v852
        %876 = vmatprep.subr.bf16.mxu0 0
        %877 = vmatpush1.bf16.msra.mxu0 %v853
        %878 = vmatprep.subr.bf16.mxu0 0
        %879 = vmatpush1.bf16.msra.mxu0 0
        %880 = vmatprep.subr.bf16.mxu0 0
        %881 = vmatpush1.bf16.msra.mxu0 0
        %882 = vmatprep.subr.bf16.mxu0 0
        %883 = vmatpush1.bf16.msra.mxu0 0
        %884 = vmatprep.subr.bf16.mxu0 0
        %885 = vmatpush1.bf16.msra.mxu0 0
        %886 = vmatprep.subr.bf16.mxu0 0
        %887 = vmatpush1.bf16.msra.mxu0 0
        %888 = vmatprep.subr.bf16.mxu0 0
        %889 = vmatpush1.bf16.msra.mxu0 0
        %890 = vmatprep.subr.bf16.mxu0 0
        %891 = vmatpush1.bf16.msra.mxu0 0
        %892 = vmatprep.subr.bf16.mxu0 0
        %893 = vmatpush1.bf16.msra.mxu0 0
        %894 = vmatprep.mubr.bf16.mxu0 0
        %895 = vmatmul.mubr.bf16.gmra.mrb[0].mxu0 %v690
        %v896 = vpop.f32.mrb[0].mxu0
        %v897 = vadd.f32 %v808, %v896
        %v898 = vpop.f32.mrb[0].mxu0
        %v899 = vpop.f32.mrb[0].mxu0
        %v900 = vadd.f32 %v811, %v899
        %v901 = vpop.f32.mrb[0].mxu0
        %902 = vdwg.mxu0
        %v903 = vpack.c.bf16 %v689, %v688
        %s904 = scalar_lea.vmem [#allocation7], 128
        %v905 = vld [vmem:[%s904] sm:$0xf]
        %v906 = vld [vmem:[%s904 + $0x4] sm:$0xf]
        %v907 = vld [vmem:[%s904 + $0x8] sm:$0xf]
        %v908 = vld [vmem:[%s904 + $0xc] sm:$0xf]
        %v909 = vld [vmem:[%s904 + $0x10] sm:$0xf]
        %v910 = vld [vmem:[%s904 + $0x14] sm:$0xf]
        %v911 = vld [vmem:[%s904 + $0x18] sm:$0xf]
        %v912 = vld [vmem:[%s904 + $0x1c] sm:$0xf]
        %v913 = vld [vmem:[%s904 + $0x20] sm:$0xf]
        %v914 = vld [vmem:[%s904 + $0x24] sm:$0xf]
        %v915 = vld [vmem:[%s904 + $0x28] sm:$0xf]
        %v916 = vld [vmem:[%s904 + $0x2c] sm:$0xf]
        %v917 = vld [vmem:[%s904 + $0x30] sm:$0xf]
        %v918 = vld [vmem:[%s904 + $0x34] sm:$0xf]
        %v919 = vld [vmem:[%s904 + $0x38] sm:$0xf]
        %v920 = vld [vmem:[%s904 + $0x3c] sm:$0xf]
        %v937 = vunpack.c.l.b16 %v905
        %v938 = vunpack.c.l.b16 %v906
        %v939 = vunpack.c.l.b16 %v907
        %v940 = vunpack.c.l.b16 %v908
        %v941 = vunpack.c.l.b16 %v909
        %v942 = vunpack.c.l.b16 %v910
        %v943 = vunpack.c.l.b16 %v911
        %v944 = vunpack.c.l.b16 %v912
        %v945 = vunpack.c.l.b16 %v913
        %v946 = vunpack.c.l.b16 %v914
        %v947 = vunpack.c.l.b16 %v915
        %v948 = vunpack.c.l.b16 %v916
        %v949 = vunpack.c.l.b16 %v917
        %v950 = vunpack.c.l.b16 %v918
        %v951 = vunpack.c.l.b16 %v919
        %v952 = vunpack.c.l.b16 %v920
        %v953 = vpack.c.b16 %v938, %v937
        %v954 = vpack.c.b16 %v940, %v939
        %v955 = vpack.c.b16 %v942, %v941
        %v956 = vpack.c.b16 %v944, %v943
        %v957 = vpack.c.b16 %v946, %v945
        %v958 = vpack.c.b16 %v948, %v947
        %v959 = vpack.c.b16 %v950, %v949
        %v960 = vpack.c.b16 %v952, %v951
        %969 = vmatprep.subr.bf16.mxu0 0
        %970 = vmatpush1.bf16.msra.mxu0 %v953
        %971 = vmatprep.subr.bf16.mxu0 0
        %972 = vmatpush1.bf16.msra.mxu0 %v954
        %973 = vmatprep.subr.bf16.mxu0 0
        %974 = vmatpush1.bf16.msra.mxu0 %v955
        %975 = vmatprep.subr.bf16.mxu0 0
        %976 = vmatpush1.bf16.msra.mxu0 %v956
        %977 = vmatprep.subr.bf16.mxu0 0
        %978 = vmatpush1.bf16.msra.mxu0 %v957
        %979 = vmatprep.subr.bf16.mxu0 0
        %980 = vmatpush1.bf16.msra.mxu0 %v958
        %981 = vmatprep.subr.bf16.mxu0 0
        %982 = vmatpush1.bf16.msra.mxu0 %v959
        %983 = vmatprep.subr.bf16.mxu0 0
        %984 = vmatpush1.bf16.msra.mxu0 %v960
        %985 = vmatprep.subr.bf16.mxu0 0
        %986 = vmatpush1.bf16.msra.mxu0 0
        %987 = vmatprep.subr.bf16.mxu0 0
        %988 = vmatpush1.bf16.msra.mxu0 0
        %989 = vmatprep.subr.bf16.mxu0 0
        %990 = vmatpush1.bf16.msra.mxu0 0
        %991 = vmatprep.subr.bf16.mxu0 0
        %992 = vmatpush1.bf16.msra.mxu0 0
        %993 = vmatprep.subr.bf16.mxu0 0
        %994 = vmatpush1.bf16.msra.mxu0 0
        %995 = vmatprep.subr.bf16.mxu0 0
        %996 = vmatpush1.bf16.msra.mxu0 0
        %997 = vmatprep.subr.bf16.mxu0 0
        %998 = vmatpush1.bf16.msra.mxu0 0
        %999 = vmatprep.subr.bf16.mxu0 0
        %1000 = vmatpush1.bf16.msra.mxu0 0
        %1001 = vmatprep.mubr.bf16.mxu0 0
        %1002 = vmatmul.mubr.bf16.gmra.mrb[0].mxu0 %v903
        %v1003 = vpop.f32.mrb[0].mxu0
        %v1004 = vadd.f32 0.0, %v1003
        %v1005 = vpop.f32.mrb[0].mxu0
        %v1006 = vpop.f32.mrb[0].mxu0
        %v1007 = vadd.f32 0.0, %v1006
        %v1008 = vpop.f32.mrb[0].mxu0
        %1009 = vdwg.mxu0
        %v1010 = vadd.f32 %v897, %v1004
        %v1011 = vadd.f32 %v900, %v1007
        %v1012 = vlaneseq
        %v1013 = vshrl.u32 %v1012, 7
        %v1014 = vsub.s32 0, %v1013
        %v1015 = vrot.slane %v677, %v1014
        %v1016 = vadd.f32 %v1010, %v1015
        %v1017 = vadd.f32 %v1011, %v1015
        %v1018 = vmax.f32 %v1016, 0.0
        %v1019 = vmax.f32 %v1017, 0.0
        %v1020 = vadd.f32 %v1018, %v477
        %v1021 = vadd.f32 %v1019, %v480
        %v1022 = vmax.f32 %v1020, 0.0
        %v1023 = vmax.f32 %v1021, 0.0
        %v1024 = vld [vmem:[%s3 + $0x2] sm:$0x1]
        %vm1025 = vcmp.ge.s32.totalorder %v420, 2
        %vm1026 = vcmp.ge.s32.totalorder %v421, 2
        %v1027 = vsel %vm1025, 1, 0
        %v1028 = vsel %vm1026, 1, 0
        %v1029 = vcvt.s32.f32 %v1027
        %v1030 = vcvt.s32.f32 %v1028
        %vm1031 = vcmp.lt.s32.totalorder %v420, 14
        %vm1032 = vcmp.lt.s32.totalorder %v421, 14
        %v1033 = vsel %vm1031, 1, 0
        %v1034 = vsel %vm1032, 1, 0
        %v1035 = vcvt.s32.f32 %v1033
        %v1036 = vcvt.s32.f32 %v1034
        %v1037 = vrot.slane %v1022, 6
        %v1038 = vrot.slane %v1023, 6
        %vm1039 = vcmp.lt.s32.totalorder %v420, 2
        %v1040 = vsel %vm1039, %v1037, %v1038
        %v1041 = vsel %vm1039, %v1038, %v1037
        %v1042 = vmul.f32 %v1041, %v1029
        %v1043 = vmul.f32 %v1040, %v1030
        %v1044 = vrot.slane %v1022, 2
        %v1045 = vrot.slane %v1023, 2
        %vm1046 = vcmp.lt.s32.totalorder %v420, 6
        %v1047 = vsel %vm1046, %v1044, %v1045
        %v1048 = vsel %vm1046, %v1045, %v1044
        %v1049 = vmul.f32 %v1047, %v1035
        %v1050 = vmul.f32 %v1048, %v1036
        %v1051 = vpack.c.bf16 %v1043, %v1042
        %s1052 = scalar_lea.vmem [#allocation7], 192
        %v1053 = vld [vmem:[%s1052] sm:$0xf]
        %v1054 = vld [vmem:[%s1052 + $0x4] sm:$0xf]
        %v1055 = vld [vmem:[%s1052 + $0x8] sm:$0xf]
        %v1056 = vld [vmem:[%s1052 + $0xc] sm:$0xf]
        %v1057 = vld [vmem:[%s1052 + $0x10] sm:$0xf]
        %v1058 = vld [vmem:[%s1052 + $0x14] sm:$0xf]
        %v1059 = vld [vmem:[%s1052 + $0x18] sm:$0xf]
        %v1060 = vld [vmem:[%s1052 + $0x1c] sm:$0xf]
        %v1061 = vld [vmem:[%s1052 + $0x20] sm:$0xf]
        %v1062 = vld [vmem:[%s1052 + $0x24] sm:$0xf]
        %v1063 = vld [vmem:[%s1052 + $0x28] sm:$0xf]
        %v1064 = vld [vmem:[%s1052 + $0x2c] sm:$0xf]
        %v1065 = vld [vmem:[%s1052 + $0x30] sm:$0xf]
        %v1066 = vld [vmem:[%s1052 + $0x34] sm:$0xf]
        %v1067 = vld [vmem:[%s1052 + $0x38] sm:$0xf]
        %v1068 = vld [vmem:[%s1052 + $0x3c] sm:$0xf]
        %v1069 = vpack.c.bf16 %v1023, %v1022
        %s1070 = scalar_lea.vmem [#allocation7], 256
        %v1071 = vld [vmem:[%s1070] sm:$0xf]
        %v1072 = vld [vmem:[%s1070 + $0x4] sm:$0xf]
        %v1073 = vld [vmem:[%s1070 + $0x8] sm:$0xf]
        %v1074 = vld [vmem:[%s1070 + $0xc] sm:$0xf]
        %v1075 = vld [vmem:[%s1070 + $0x10] sm:$0xf]
        %v1076 = vld [vmem:[%s1070 + $0x14] sm:$0xf]
        %v1077 = vld [vmem:[%s1070 + $0x18] sm:$0xf]
        %v1078 = vld [vmem:[%s1070 + $0x1c] sm:$0xf]
        %v1079 = vld [vmem:[%s1070 + $0x20] sm:$0xf]
        %v1080 = vld [vmem:[%s1070 + $0x24] sm:$0xf]
        %v1081 = vld [vmem:[%s1070 + $0x28] sm:$0xf]
        %v1082 = vld [vmem:[%s1070 + $0x2c] sm:$0xf]
        %v1083 = vld [vmem:[%s1070 + $0x30] sm:$0xf]
        %v1084 = vld [vmem:[%s1070 + $0x34] sm:$0xf]
        %v1085 = vld [vmem:[%s1070 + $0x38] sm:$0xf]
        %v1086 = vld [vmem:[%s1070 + $0x3c] sm:$0xf]
        %v1103 = vunpack.c.l.b16 %v1071
        %v1104 = vunpack.c.l.b16 %v1072
        %v1105 = vunpack.c.l.b16 %v1073
        %v1106 = vunpack.c.l.b16 %v1074
        %v1107 = vunpack.c.l.b16 %v1075
        %v1108 = vunpack.c.l.b16 %v1076
        %v1109 = vunpack.c.l.b16 %v1077
        %v1110 = vunpack.c.l.b16 %v1078
        %v1111 = vunpack.c.l.b16 %v1079
        %v1112 = vunpack.c.l.b16 %v1080
        %v1113 = vunpack.c.l.b16 %v1081
        %v1114 = vunpack.c.l.b16 %v1082
        %v1115 = vunpack.c.l.b16 %v1083
        %v1116 = vunpack.c.l.b16 %v1084
        %v1117 = vunpack.c.l.b16 %v1085
        %v1118 = vunpack.c.l.b16 %v1086
        %v1119 = vpack.c.b16 %v1104, %v1103
        %v1120 = vpack.c.b16 %v1106, %v1105
        %v1121 = vpack.c.b16 %v1108, %v1107
        %v1122 = vpack.c.b16 %v1110, %v1109
        %v1123 = vpack.c.b16 %v1112, %v1111
        %v1124 = vpack.c.b16 %v1114, %v1113
        %v1125 = vpack.c.b16 %v1116, %v1115
        %v1126 = vpack.c.b16 %v1118, %v1117
        %1135 = vmatprep.subr.bf16.mxu0 0
        %1136 = vmatpush1.bf16.msra.mxu0 %v1119
        %1137 = vmatprep.subr.bf16.mxu0 0
        %1138 = vmatpush1.bf16.msra.mxu0 %v1120
        %1139 = vmatprep.subr.bf16.mxu0 0
        %1140 = vmatpush1.bf16.msra.mxu0 %v1121
        %1141 = vmatprep.subr.bf16.mxu0 0
        %1142 = vmatpush1.bf16.msra.mxu0 %v1122
        %1143 = vmatprep.subr.bf16.mxu0 0
        %1144 = vmatpush1.bf16.msra.mxu0 %v1123
        %1145 = vmatprep.subr.bf16.mxu0 0
        %1146 = vmatpush1.bf16.msra.mxu0 %v1124
        %1147 = vmatprep.subr.bf16.mxu0 0
        %1148 = vmatpush1.bf16.msra.mxu0 %v1125
        %1149 = vmatprep.subr.bf16.mxu0 0
        %1150 = vmatpush1.bf16.msra.mxu0 %v1126
        %1151 = vmatprep.subr.bf16.mxu0 0
        %1152 = vmatpush1.bf16.msra.mxu0 0
        %1153 = vmatprep.subr.bf16.mxu0 0
        %1154 = vmatpush1.bf16.msra.mxu0 0
        %1155 = vmatprep.subr.bf16.mxu0 0
        %1156 = vmatpush1.bf16.msra.mxu0 0
        %1157 = vmatprep.subr.bf16.mxu0 0
        %1158 = vmatpush1.bf16.msra.mxu0 0
        %1159 = vmatprep.subr.bf16.mxu0 0
        %1160 = vmatpush1.bf16.msra.mxu0 0
        %1161 = vmatprep.subr.bf16.mxu0 0
        %1162 = vmatpush1.bf16.msra.mxu0 0
        %1163 = vmatprep.subr.bf16.mxu0 0
        %1164 = vmatpush1.bf16.msra.mxu0 0
        %1165 = vmatprep.subr.bf16.mxu0 0
        %1166 = vmatpush1.bf16.msra.mxu0 0
        %1167 = vmatprep.mubr.bf16.mxu0 0
        %1168 = vmatmul.mubr.bf16.gmra.mrb[0].mxu0 %v1069
        %v1169 = vpop.f32.mrb[0].mxu0
        %v1170 = vadd.f32 0.0, %v1169
        %v1171 = vpop.f32.mrb[0].mxu0
        %v1172 = vpop.f32.mrb[0].mxu0
        %v1173 = vadd.f32 0.0, %v1172
        %v1174 = vpop.f32.mrb[0].mxu0
        %1175 = vdwg.mxu0
        %v1192 = vunpack.c.l.b16 %v1053
        %v1193 = vunpack.c.l.b16 %v1054
        %v1194 = vunpack.c.l.b16 %v1055
        %v1195 = vunpack.c.l.b16 %v1056
        %v1196 = vunpack.c.l.b16 %v1057
        %v1197 = vunpack.c.l.b16 %v1058
        %v1198 = vunpack.c.l.b16 %v1059
        %v1199 = vunpack.c.l.b16 %v1060
        %v1200 = vunpack.c.l.b16 %v1061
        %v1201 = vunpack.c.l.b16 %v1062
        %v1202 = vunpack.c.l.b16 %v1063
        %v1203 = vunpack.c.l.b16 %v1064
        %v1204 = vunpack.c.l.b16 %v1065
        %v1205 = vunpack.c.l.b16 %v1066
        %v1206 = vunpack.c.l.b16 %v1067
        %v1207 = vunpack.c.l.b16 %v1068
        %v1208 = vpack.c.b16 %v1193, %v1192
        %v1209 = vpack.c.b16 %v1195, %v1194
        %v1210 = vpack.c.b16 %v1197, %v1196
        %v1211 = vpack.c.b16 %v1199, %v1198
        %v1212 = vpack.c.b16 %v1201, %v1200
        %v1213 = vpack.c.b16 %v1203, %v1202
        %v1214 = vpack.c.b16 %v1205, %v1204
        %v1215 = vpack.c.b16 %v1207, %v1206
        %1224 = vmatprep.subr.bf16.mxu0 0
        %1225 = vmatpush1.bf16.msra.mxu0 %v1208
        %1226 = vmatprep.subr.bf16.mxu0 0
        %1227 = vmatpush1.bf16.msra.mxu0 %v1209
        %1228 = vmatprep.subr.bf16.mxu0 0
        %1229 = vmatpush1.bf16.msra.mxu0 %v1210
        %1230 = vmatprep.subr.bf16.mxu0 0
        %1231 = vmatpush1.bf16.msra.mxu0 %v1211
        %1232 = vmatprep.subr.bf16.mxu0 0
        %1233 = vmatpush1.bf16.msra.mxu0 %v1212
        %1234 = vmatprep.subr.bf16.mxu0 0
        %1235 = vmatpush1.bf16.msra.mxu0 %v1213
        %1236 = vmatprep.subr.bf16.mxu0 0
        %1237 = vmatpush1.bf16.msra.mxu0 %v1214
        %1238 = vmatprep.subr.bf16.mxu0 0
        %1239 = vmatpush1.bf16.msra.mxu0 %v1215
        %1240 = vmatprep.subr.bf16.mxu0 0
        %1241 = vmatpush1.bf16.msra.mxu0 0
        %1242 = vmatprep.subr.bf16.mxu0 0
        %1243 = vmatpush1.bf16.msra.mxu0 0
        %1244 = vmatprep.subr.bf16.mxu0 0
        %1245 = vmatpush1.bf16.msra.mxu0 0
        %1246 = vmatprep.subr.bf16.mxu0 0
        %1247 = vmatpush1.bf16.msra.mxu0 0
        %1248 = vmatprep.subr.bf16.mxu0 0
        %1249 = vmatpush1.bf16.msra.mxu0 0
        %1250 = vmatprep.subr.bf16.mxu0 0
        %1251 = vmatpush1.bf16.msra.mxu0 0
        %1252 = vmatprep.subr.bf16.mxu0 0
        %1253 = vmatpush1.bf16.msra.mxu0 0
        %1254 = vmatprep.subr.bf16.mxu0 0
        %1255 = vmatpush1.bf16.msra.mxu0 0
        %1256 = vmatprep.mubr.bf16.mxu0 0
        %1257 = vmatmul.mubr.bf16.gmra.mrb[0].mxu0 %v1051
        %v1258 = vpop.f32.mrb[0].mxu0
        %v1259 = vadd.f32 %v1170, %v1258
        %v1260 = vpop.f32.mrb[0].mxu0
        %v1261 = vpop.f32.mrb[0].mxu0
        %v1262 = vadd.f32 %v1173, %v1261
        %v1263 = vpop.f32.mrb[0].mxu0
        %1264 = vdwg.mxu0
        %v1265 = vpack.c.bf16 %v1050, %v1049
        %s1266 = scalar_lea.vmem [#allocation7], 320
        %v1267 = vld [vmem:[%s1266] sm:$0xf]
        %v1268 = vld [vmem:[%s1266 + $0x4] sm:$0xf]
        %v1269 = vld [vmem:[%s1266 + $0x8] sm:$0xf]
        %v1270 = vld [vmem:[%s1266 + $0xc] sm:$0xf]
        %v1271 = vld [vmem:[%s1266 + $0x10] sm:$0xf]
        %v1272 = vld [vmem:[%s1266 + $0x14] sm:$0xf]
        %v1273 = vld [vmem:[%s1266 + $0x18] sm:$0xf]
        %v1274 = vld [vmem:[%s1266 + $0x1c] sm:$0xf]
        %v1275 = vld [vmem:[%s1266 + $0x20] sm:$0xf]
        %v1276 = vld [vmem:[%s1266 + $0x24] sm:$0xf]
        %v1277 = vld [vmem:[%s1266 + $0x28] sm:$0xf]
        %v1278 = vld [vmem:[%s1266 + $0x2c] sm:$0xf]
        %v1279 = vld [vmem:[%s1266 + $0x30] sm:$0xf]
        %v1280 = vld [vmem:[%s1266 + $0x34] sm:$0xf]
        %v1281 = vld [vmem:[%s1266 + $0x38] sm:$0xf]
        %v1282 = vld [vmem:[%s1266 + $0x3c] sm:$0xf]
        %v1299 = vunpack.c.l.b16 %v1267
        %v1300 = vunpack.c.l.b16 %v1268
        %v1301 = vunpack.c.l.b16 %v1269
        %v1302 = vunpack.c.l.b16 %v1270
        %v1303 = vunpack.c.l.b16 %v1271
        %v1304 = vunpack.c.l.b16 %v1272
        %v1305 = vunpack.c.l.b16 %v1273
        %v1306 = vunpack.c.l.b16 %v1274
        %v1307 = vunpack.c.l.b16 %v1275
        %v1308 = vunpack.c.l.b16 %v1276
        %v1309 = vunpack.c.l.b16 %v1277
        %v1310 = vunpack.c.l.b16 %v1278
        %v1311 = vunpack.c.l.b16 %v1279
        %v1312 = vunpack.c.l.b16 %v1280
        %v1313 = vunpack.c.l.b16 %v1281
        %v1314 = vunpack.c.l.b16 %v1282
        %v1315 = vpack.c.b16 %v1300, %v1299
        %v1316 = vpack.c.b16 %v1302, %v1301
        %v1317 = vpack.c.b16 %v1304, %v1303
        %v1318 = vpack.c.b16 %v1306, %v1305
        %v1319 = vpack.c.b16 %v1308, %v1307
        %v1320 = vpack.c.b16 %v1310, %v1309
        %v1321 = vpack.c.b16 %v1312, %v1311
        %v1322 = vpack.c.b16 %v1314, %v1313
        %1331 = vmatprep.subr.bf16.mxu0 0
        %1332 = vmatpush1.bf16.msra.mxu0 %v1315
        %1333 = vmatprep.subr.bf16.mxu0 0
        %1334 = vmatpush1.bf16.msra.mxu0 %v1316
        %1335 = vmatprep.subr.bf16.mxu0 0
        %1336 = vmatpush1.bf16.msra.mxu0 %v1317
        %1337 = vmatprep.subr.bf16.mxu0 0
        %1338 = vmatpush1.bf16.msra.mxu0 %v1318
        %1339 = vmatprep.subr.bf16.mxu0 0
        %1340 = vmatpush1.bf16.msra.mxu0 %v1319
        %1341 = vmatprep.subr.bf16.mxu0 0
        %1342 = vmatpush1.bf16.msra.mxu0 %v1320
        %1343 = vmatprep.subr.bf16.mxu0 0
        %1344 = vmatpush1.bf16.msra.mxu0 %v1321
        %1345 = vmatprep.subr.bf16.mxu0 0
        %1346 = vmatpush1.bf16.msra.mxu0 %v1322
        %1347 = vmatprep.subr.bf16.mxu0 0
        %1348 = vmatpush1.bf16.msra.mxu0 0
        %1349 = vmatprep.subr.bf16.mxu0 0
        %1350 = vmatpush1.bf16.msra.mxu0 0
        %1351 = vmatprep.subr.bf16.mxu0 0
        %1352 = vmatpush1.bf16.msra.mxu0 0
        %1353 = vmatprep.subr.bf16.mxu0 0
        %1354 = vmatpush1.bf16.msra.mxu0 0
        %1355 = vmatprep.subr.bf16.mxu0 0
        %1356 = vmatpush1.bf16.msra.mxu0 0
        %1357 = vmatprep.subr.bf16.mxu0 0
        %1358 = vmatpush1.bf16.msra.mxu0 0
        %1359 = vmatprep.subr.bf16.mxu0 0
        %1360 = vmatpush1.bf16.msra.mxu0 0
        %1361 = vmatprep.subr.bf16.mxu0 0
        %1362 = vmatpush1.bf16.msra.mxu0 0
        %1363 = vmatprep.mubr.bf16.mxu0 0
        %1364 = vmatmul.mubr.bf16.gmra.mrb[0].mxu0 %v1265
        %v1365 = vpop.f32.mrb[0].mxu0
        %v1366 = vadd.f32 0.0, %v1365
        %v1367 = vpop.f32.mrb[0].mxu0
        %v1368 = vpop.f32.mrb[0].mxu0
        %v1369 = vadd.f32 0.0, %v1368
        %v1370 = vpop.f32.mrb[0].mxu0
        %1371 = vdwg.mxu0
        %v1372 = vadd.f32 %v1259, %v1366
        %v1373 = vadd.f32 %v1262, %v1369
        %v1374 = vlaneseq
        %v1375 = vshrl.u32 %v1374, 7
        %v1376 = vsub.s32 0, %v1375
        %v1377 = vrot.slane %v1024, %v1376
        %v1378 = vadd.f32 %v1372, %v1377
        %v1379 = vadd.f32 %v1373, %v1377
        %v1380 = vmax.f32 %v1378, 0.0
        %v1381 = vmax.f32 %v1379, 0.0
        %v1382 = vld [vmem:[%s3 + $0x3] sm:$0x1]
        %v1383 = vrot.slane %v1380, 6
        %v1384 = vrot.slane %v1381, 6
        %v1385 = vsel %vm1039, %v1383, %v1384
        %v1386 = vsel %vm1039, %v1384, %v1383
        %v1387 = vmul.f32 %v1386, %v1029
        %v1388 = vmul.f32 %v1385, %v1030
        %v1389 = vrot.slane %v1380, 2
        %v1390 = vrot.slane %v1381, 2
        %v1391 = vsel %vm1046, %v1389, %v1390
        %v1392 = vsel %vm1046, %v1390, %v1389
        %v1393 = vmul.f32 %v1391, %v1035
        %v1394 = vmul.f32 %v1392, %v1036
        %v1395 = vpack.c.bf16 %v1388, %v1387
        %s1396 = scalar_lea.vmem [#allocation7], 384
        %v1397 = vld [vmem:[%s1396] sm:$0xf]
        %v1398 = vld [vmem:[%s1396 + $0x4] sm:$0xf]
        %v1399 = vld [vmem:[%s1396 + $0x8] sm:$0xf]
        %v1400 = vld [vmem:[%s1396 + $0xc] sm:$0xf]
        %v1401 = vld [vmem:[%s1396 + $0x10] sm:$0xf]
        %v1402 = vld [vmem:[%s1396 + $0x14] sm:$0xf]
        %v1403 = vld [vmem:[%s1396 + $0x18] sm:$0xf]
        %v1404 = vld [vmem:[%s1396 + $0x1c] sm:$0xf]
        %v1405 = vld [vmem:[%s1396 + $0x20] sm:$0xf]
        %v1406 = vld [vmem:[%s1396 + $0x24] sm:$0xf]
        %v1407 = vld [vmem:[%s1396 + $0x28] sm:$0xf]
        %v1408 = vld [vmem:[%s1396 + $0x2c] sm:$0xf]
        %v1409 = vld [vmem:[%s1396 + $0x30] sm:$0xf]
        %v1410 = vld [vmem:[%s1396 + $0x34] sm:$0xf]
        %v1411 = vld [vmem:[%s1396 + $0x38] sm:$0xf]
        %v1412 = vld [vmem:[%s1396 + $0x3c] sm:$0xf]
        %v1413 = vpack.c.bf16 %v1381, %v1380
        %s1414 = scalar_lea.vmem [#allocation7], 448
        %v1415 = vld [vmem:[%s1414] sm:$0xf]
        %v1416 = vld [vmem:[%s1414 + $0x4] sm:$0xf]
        %v1417 = vld [vmem:[%s1414 + $0x8] sm:$0xf]
        %v1418 = vld [vmem:[%s1414 + $0xc] sm:$0xf]
        %v1419 = vld [vmem:[%s1414 + $0x10] sm:$0xf]
        %v1420 = vld [vmem:[%s1414 + $0x14] sm:$0xf]
        %v1421 = vld [vmem:[%s1414 + $0x18] sm:$0xf]
        %v1422 = vld [vmem:[%s1414 + $0x1c] sm:$0xf]
        %v1423 = vld [vmem:[%s1414 + $0x20] sm:$0xf]
        %v1424 = vld [vmem:[%s1414 + $0x24] sm:$0xf]
        %v1425 = vld [vmem:[%s1414 + $0x28] sm:$0xf]
        %v1426 = vld [vmem:[%s1414 + $0x2c] sm:$0xf]
        %v1427 = vld [vmem:[%s1414 + $0x30] sm:$0xf]
        %v1428 = vld [vmem:[%s1414 + $0x34] sm:$0xf]
        %v1429 = vld [vmem:[%s1414 + $0x38] sm:$0xf]
        %v1430 = vld [vmem:[%s1414 + $0x3c] sm:$0xf]
        %v1447 = vunpack.c.l.b16 %v1415
        %v1448 = vunpack.c.l.b16 %v1416
        %v1449 = vunpack.c.l.b16 %v1417
        %v1450 = vunpack.c.l.b16 %v1418
        %v1451 = vunpack.c.l.b16 %v1419
        %v1452 = vunpack.c.l.b16 %v1420
        %v1453 = vunpack.c.l.b16 %v1421
        %v1454 = vunpack.c.l.b16 %v1422
        %v1455 = vunpack.c.l.b16 %v1423
        %v1456 = vunpack.c.l.b16 %v1424
        %v1457 = vunpack.c.l.b16 %v1425
        %v1458 = vunpack.c.l.b16 %v1426
        %v1459 = vunpack.c.l.b16 %v1427
        %v1460 = vunpack.c.l.b16 %v1428
        %v1461 = vunpack.c.l.b16 %v1429
        %v1462 = vunpack.c.l.b16 %v1430
        %v1463 = vpack.c.b16 %v1448, %v1447
        %v1464 = vpack.c.b16 %v1450, %v1449
        %v1465 = vpack.c.b16 %v1452, %v1451
        %v1466 = vpack.c.b16 %v1454, %v1453
        %v1467 = vpack.c.b16 %v1456, %v1455
        %v1468 = vpack.c.b16 %v1458, %v1457
        %v1469 = vpack.c.b16 %v1460, %v1459
        %v1470 = vpack.c.b16 %v1462, %v1461
        %1479 = vmatprep.subr.bf16.mxu0 0
        %1480 = vmatpush1.bf16.msra.mxu0 %v1463
        %1481 = vmatprep.subr.bf16.mxu0 0
        %1482 = vmatpush1.bf16.msra.mxu0 %v1464
        %1483 = vmatprep.subr.bf16.mxu0 0
        %1484 = vmatpush1.bf16.msra.mxu0 %v1465
        %1485 = vmatprep.subr.bf16.mxu0 0
        %1486 = vmatpush1.bf16.msra.mxu0 %v1466
        %1487 = vmatprep.subr.bf16.mxu0 0
        %1488 = vmatpush1.bf16.msra.mxu0 %v1467
        %1489 = vmatprep.subr.bf16.mxu0 0
        %1490 = vmatpush1.bf16.msra.mxu0 %v1468
        %1491 = vmatprep.subr.bf16.mxu0 0
        %1492 = vmatpush1.bf16.msra.mxu0 %v1469
        %1493 = vmatprep.subr.bf16.mxu0 0
        %1494 = vmatpush1.bf16.msra.mxu0 %v1470
        %1495 = vmatprep.subr.bf16.mxu0 0
        %1496 = vmatpush1.bf16.msra.mxu0 0
        %1497 = vmatprep.subr.bf16.mxu0 0
        %1498 = vmatpush1.bf16.msra.mxu0 0
        %1499 = vmatprep.subr.bf16.mxu0 0
        %1500 = vmatpush1.bf16.msra.mxu0 0
        %1501 = vmatprep.subr.bf16.mxu0 0
        %1502 = vmatpush1.bf16.msra.mxu0 0
        %1503 = vmatprep.subr.bf16.mxu0 0
        %1504 = vmatpush1.bf16.msra.mxu0 0
        %1505 = vmatprep.subr.bf16.mxu0 0
        %1506 = vmatpush1.bf16.msra.mxu0 0
        %1507 = vmatprep.subr.bf16.mxu0 0
        %1508 = vmatpush1.bf16.msra.mxu0 0
        %1509 = vmatprep.subr.bf16.mxu0 0
        %1510 = vmatpush1.bf16.msra.mxu0 0
        %1511 = vmatprep.mubr.bf16.mxu0 0
        %1512 = vmatmul.mubr.bf16.gmra.mrb[0].mxu0 %v1413
        %v1513 = vpop.f32.mrb[0].mxu0
        %v1514 = vadd.f32 0.0, %v1513
        %v1515 = vpop.f32.mrb[0].mxu0
        %v1516 = vpop.f32.mrb[0].mxu0
        %v1517 = vadd.f32 0.0, %v1516
        %v1518 = vpop.f32.mrb[0].mxu0
        %1519 = vdwg.mxu0
        %v1536 = vunpack.c.l.b16 %v1397
        %v1537 = vunpack.c.l.b16 %v1398
        %v1538 = vunpack.c.l.b16 %v1399
        %v1539 = vunpack.c.l.b16 %v1400
        %v1540 = vunpack.c.l.b16 %v1401
        %v1541 = vunpack.c.l.b16 %v1402
        %v1542 = vunpack.c.l.b16 %v1403
        %v1543 = vunpack.c.l.b16 %v1404
        %v1544 = vunpack.c.l.b16 %v1405
        %v1545 = vunpack.c.l.b16 %v1406
        %v1546 = vunpack.c.l.b16 %v1407
        %v1547 = vunpack.c.l.b16 %v1408
        %v1548 = vunpack.c.l.b16 %v1409
        %v1549 = vunpack.c.l.b16 %v1410
        %v1550 = vunpack.c.l.b16 %v1411
        %v1551 = vunpack.c.l.b16 %v1412
        %v1552 = vpack.c.b16 %v1537, %v1536
        %v1553 = vpack.c.b16 %v1539, %v1538
        %v1554 = vpack.c.b16 %v1541, %v1540
        %v1555 = vpack.c.b16 %v1543, %v1542
        %v1556 = vpack.c.b16 %v1545, %v1544
        %v1557 = vpack.c.b16 %v1547, %v1546
        %v1558 = vpack.c.b16 %v1549, %v1548
        %v1559 = vpack.c.b16 %v1551, %v1550
        %1568 = vmatprep.subr.bf16.mxu0 0
        %1569 = vmatpush1.bf16.msra.mxu0 %v1552
        %1570 = vmatprep.subr.bf16.mxu0 0
        %1571 = vmatpush1.bf16.msra.mxu0 %v1553
        %1572 = vmatprep.subr.bf16.mxu0 0
        %1573 = vmatpush1.bf16.msra.mxu0 %v1554
        %1574 = vmatprep.subr.bf16.mxu0 0
        %1575 = vmatpush1.bf16.msra.mxu0 %v1555
        %1576 = vmatprep.subr.bf16.mxu0 0
        %1577 = vmatpush1.bf16.msra.mxu0 %v1556
        %1578 = vmatprep.subr.bf16.mxu0 0
        %1579 = vmatpush1.bf16.msra.mxu0 %v1557
        %1580 = vmatprep.subr.bf16.mxu0 0
        %1581 = vmatpush1.bf16.msra.mxu0 %v1558
        %1582 = vmatprep.subr.bf16.mxu0 0
        %1583 = vmatpush1.bf16.msra.mxu0 %v1559
        %1584 = vmatprep.subr.bf16.mxu0 0
        %1585 = vmatpush1.bf16.msra.mxu0 0
        %1586 = vmatprep.subr.bf16.mxu0 0
        %1587 = vmatpush1.bf16.msra.mxu0 0
        %1588 = vmatprep.subr.bf16.mxu0 0
        %1589 = vmatpush1.bf16.msra.mxu0 0
        %1590 = vmatprep.subr.bf16.mxu0 0
        %1591 = vmatpush1.bf16.msra.mxu0 0
        %1592 = vmatprep.subr.bf16.mxu0 0
        %1593 = vmatpush1.bf16.msra.mxu0 0
        %1594 = vmatprep.subr.bf16.mxu0 0
        %1595 = vmatpush1.bf16.msra.mxu0 0
        %1596 = vmatprep.subr.bf16.mxu0 0
        %1597 = vmatpush1.bf16.msra.mxu0 0
        %1598 = vmatprep.subr.bf16.mxu0 0
        %1599 = vmatpush1.bf16.msra.mxu0 0
        %1600 = vmatprep.mubr.bf16.mxu0 0
        %1601 = vmatmul.mubr.bf16.gmra.mrb[0].mxu0 %v1395
        %v1602 = vpop.f32.mrb[0].mxu0
        %v1603 = vadd.f32 %v1514, %v1602
        %v1604 = vpop.f32.mrb[0].mxu0
        %v1605 = vpop.f32.mrb[0].mxu0
        %v1606 = vadd.f32 %v1517, %v1605
        %v1607 = vpop.f32.mrb[0].mxu0
        %1608 = vdwg.mxu0
        %v1609 = vpack.c.bf16 %v1394, %v1393
        %s1610 = scalar_lea.vmem [#allocation7], 512
        %v1611 = vld [vmem:[%s1610] sm:$0xf]
        %v1612 = vld [vmem:[%s1610 + $0x4] sm:$0xf]
        %v1613 = vld [vmem:[%s1610 + $0x8] sm:$0xf]
        %v1614 = vld [vmem:[%s1610 + $0xc] sm:$0xf]
        %v1615 = vld [vmem:[%s1610 + $0x10] sm:$0xf]
        %v1616 = vld [vmem:[%s1610 + $0x14] sm:$0xf]
        %v1617 = vld [vmem:[%s1610 + $0x18] sm:$0xf]
        %v1618 = vld [vmem:[%s1610 + $0x1c] sm:$0xf]
        %v1619 = vld [vmem:[%s1610 + $0x20] sm:$0xf]
        %v1620 = vld [vmem:[%s1610 + $0x24] sm:$0xf]
        %v1621 = vld [vmem:[%s1610 + $0x28] sm:$0xf]
        %v1622 = vld [vmem:[%s1610 + $0x2c] sm:$0xf]
        %v1623 = vld [vmem:[%s1610 + $0x30] sm:$0xf]
        %v1624 = vld [vmem:[%s1610 + $0x34] sm:$0xf]
        %v1625 = vld [vmem:[%s1610 + $0x38] sm:$0xf]
        %v1626 = vld [vmem:[%s1610 + $0x3c] sm:$0xf]
        %v1643 = vunpack.c.l.b16 %v1611
        %v1644 = vunpack.c.l.b16 %v1612
        %v1645 = vunpack.c.l.b16 %v1613
        %v1646 = vunpack.c.l.b16 %v1614
        %v1647 = vunpack.c.l.b16 %v1615
        %v1648 = vunpack.c.l.b16 %v1616
        %v1649 = vunpack.c.l.b16 %v1617
        %v1650 = vunpack.c.l.b16 %v1618
        %v1651 = vunpack.c.l.b16 %v1619
        %v1652 = vunpack.c.l.b16 %v1620
        %v1653 = vunpack.c.l.b16 %v1621
        %v1654 = vunpack.c.l.b16 %v1622
        %v1655 = vunpack.c.l.b16 %v1623
        %v1656 = vunpack.c.l.b16 %v1624
        %v1657 = vunpack.c.l.b16 %v1625
        %v1658 = vunpack.c.l.b16 %v1626
        %v1659 = vpack.c.b16 %v1644, %v1643
        %v1660 = vpack.c.b16 %v1646, %v1645
        %v1661 = vpack.c.b16 %v1648, %v1647
        %v1662 = vpack.c.b16 %v1650, %v1649
        %v1663 = vpack.c.b16 %v1652, %v1651
        %v1664 = vpack.c.b16 %v1654, %v1653
        %v1665 = vpack.c.b16 %v1656, %v1655
        %v1666 = vpack.c.b16 %v1658, %v1657
        %1675 = vmatprep.subr.bf16.mxu0 0
        %1676 = vmatpush1.bf16.msra.mxu0 %v1659
        %1677 = vmatprep.subr.bf16.mxu0 0
        %1678 = vmatpush1.bf16.msra.mxu0 %v1660
        %1679 = vmatprep.subr.bf16.mxu0 0
        %1680 = vmatpush1.bf16.msra.mxu0 %v1661
        %1681 = vmatprep.subr.bf16.mxu0 0
        %1682 = vmatpush1.bf16.msra.mxu0 %v1662
        %1683 = vmatprep.subr.bf16.mxu0 0
        %1684 = vmatpush1.bf16.msra.mxu0 %v1663
        %1685 = vmatprep.subr.bf16.mxu0 0
        %1686 = vmatpush1.bf16.msra.mxu0 %v1664
        %1687 = vmatprep.subr.bf16.mxu0 0
        %1688 = vmatpush1.bf16.msra.mxu0 %v1665
        %1689 = vmatprep.subr.bf16.mxu0 0
        %1690 = vmatpush1.bf16.msra.mxu0 %v1666
        %1691 = vmatprep.subr.bf16.mxu0 0
        %1692 = vmatpush1.bf16.msra.mxu0 0
        %1693 = vmatprep.subr.bf16.mxu0 0
        %1694 = vmatpush1.bf16.msra.mxu0 0
        %1695 = vmatprep.subr.bf16.mxu0 0
        %1696 = vmatpush1.bf16.msra.mxu0 0
        %1697 = vmatprep.subr.bf16.mxu0 0
        %1698 = vmatpush1.bf16.msra.mxu0 0
        %1699 = vmatprep.subr.bf16.mxu0 0
        %1700 = vmatpush1.bf16.msra.mxu0 0
        %1701 = vmatprep.subr.bf16.mxu0 0
        %1702 = vmatpush1.bf16.msra.mxu0 0
        %1703 = vmatprep.subr.bf16.mxu0 0
        %1704 = vmatpush1.bf16.msra.mxu0 0
        %1705 = vmatprep.subr.bf16.mxu0 0
        %1706 = vmatpush1.bf16.msra.mxu0 0
        %1707 = vmatprep.mubr.bf16.mxu0 0
        %1708 = vmatmul.mubr.bf16.gmra.mrb[0].mxu0 %v1609
        %v1709 = vpop.f32.mrb[0].mxu0
        %v1710 = vadd.f32 0.0, %v1709
        %v1711 = vpop.f32.mrb[0].mxu0
        %v1712 = vpop.f32.mrb[0].mxu0
        %v1713 = vadd.f32 0.0, %v1712
        %v1714 = vpop.f32.mrb[0].mxu0
        %1715 = vdwg.mxu0
        %v1716 = vadd.f32 %v1603, %v1710
        %v1717 = vadd.f32 %v1606, %v1713
        %v1718 = vlaneseq
        %v1719 = vshrl.u32 %v1718, 7
        %v1720 = vsub.s32 0, %v1719
        %v1721 = vrot.slane %v1382, %v1720
        %v1722 = vadd.f32 %v1716, %v1721
        %v1723 = vadd.f32 %v1717, %v1721
        %v1724 = vmax.f32 %v1722, 0.0
        %v1725 = vmax.f32 %v1723, 0.0
        %v1726 = vadd.f32 %v1724, %v1022
        %v1727 = vadd.f32 %v1725, %v1023
        %v1728 = vmax.f32 %v1726, 0.0
        %v1729 = vmax.f32 %v1727, 0.0
        %v1730 = vld [vmem:[%s3 + $0x4] sm:$0x1]
        %vm1731 = vcmp.ge.s32.totalorder %v420, 4
        %vm1732 = vcmp.ge.s32.totalorder %v421, 4
        %v1733 = vsel %vm1731, 1, 0
        %v1734 = vsel %vm1732, 1, 0
        %v1735 = vcvt.s32.f32 %v1733
        %v1736 = vcvt.s32.f32 %v1734
        %vm1737 = vcmp.lt.s32.totalorder %v420, 12
        %vm1738 = vcmp.lt.s32.totalorder %v421, 12
        %v1739 = vsel %vm1737, 1, 0
        %v1740 = vsel %vm1738, 1, 0
        %v1741 = vcvt.s32.f32 %v1739
        %v1742 = vcvt.s32.f32 %v1740
        %v1743 = vrot.slane %v1728, 4
        %v1744 = vrot.slane %v1729, 4
        %vm1745 = vcmp.lt.s32.totalorder %v420, 4
        %v1746 = vsel %vm1745, %v1743, %v1744
        %v1747 = vsel %vm1745, %v1744, %v1743
        %v1748 = vmul.f32 %v1747, %v1735
        %v1749 = vmul.f32 %v1746, %v1736
        %v1750 = vmul.f32 %v1746, %v1741
        %v1751 = vmul.f32 %v1747, %v1742
        %v1752 = vpack.c.bf16 %v1749, %v1748
        %s1753 = scalar_lea.vmem [#allocation7], 576
        %v1754 = vld [vmem:[%s1753] sm:$0xf]
        %v1755 = vld [vmem:[%s1753 + $0x4] sm:$0xf]
        %v1756 = vld [vmem:[%s1753 + $0x8] sm:$0xf]
        %v1757 = vld [vmem:[%s1753 + $0xc] sm:$0xf]
        %v1758 = vld [vmem:[%s1753 + $0x10] sm:$0xf]
        %v1759 = vld [vmem:[%s1753 + $0x14] sm:$0xf]
        %v1760 = vld [vmem:[%s1753 + $0x18] sm:$0xf]
        %v1761 = vld [vmem:[%s1753 + $0x1c] sm:$0xf]
        %v1762 = vld [vmem:[%s1753 + $0x20] sm:$0xf]
        %v1763 = vld [vmem:[%s1753 + $0x24] sm:$0xf]
        %v1764 = vld [vmem:[%s1753 + $0x28] sm:$0xf]
        %v1765 = vld [vmem:[%s1753 + $0x2c] sm:$0xf]
        %v1766 = vld [vmem:[%s1753 + $0x30] sm:$0xf]
        %v1767 = vld [vmem:[%s1753 + $0x34] sm:$0xf]
        %v1768 = vld [vmem:[%s1753 + $0x38] sm:$0xf]
        %v1769 = vld [vmem:[%s1753 + $0x3c] sm:$0xf]
        %v1770 = vpack.c.bf16 %v1729, %v1728
        %s1771 = scalar_lea.vmem [#allocation7], 640
        %v1772 = vld [vmem:[%s1771] sm:$0xf]
        %v1773 = vld [vmem:[%s1771 + $0x4] sm:$0xf]
        %v1774 = vld [vmem:[%s1771 + $0x8] sm:$0xf]
        %v1775 = vld [vmem:[%s1771 + $0xc] sm:$0xf]
        %v1776 = vld [vmem:[%s1771 + $0x10] sm:$0xf]
        %v1777 = vld [vmem:[%s1771 + $0x14] sm:$0xf]
        %v1778 = vld [vmem:[%s1771 + $0x18] sm:$0xf]
        %v1779 = vld [vmem:[%s1771 + $0x1c] sm:$0xf]
        %v1780 = vld [vmem:[%s1771 + $0x20] sm:$0xf]
        %v1781 = vld [vmem:[%s1771 + $0x24] sm:$0xf]
        %v1782 = vld [vmem:[%s1771 + $0x28] sm:$0xf]
        %v1783 = vld [vmem:[%s1771 + $0x2c] sm:$0xf]
        %v1784 = vld [vmem:[%s1771 + $0x30] sm:$0xf]
        %v1785 = vld [vmem:[%s1771 + $0x34] sm:$0xf]
        %v1786 = vld [vmem:[%s1771 + $0x38] sm:$0xf]
        %v1787 = vld [vmem:[%s1771 + $0x3c] sm:$0xf]
        %v1804 = vunpack.c.l.b16 %v1772
        %v1805 = vunpack.c.l.b16 %v1773
        %v1806 = vunpack.c.l.b16 %v1774
        %v1807 = vunpack.c.l.b16 %v1775
        %v1808 = vunpack.c.l.b16 %v1776
        %v1809 = vunpack.c.l.b16 %v1777
        %v1810 = vunpack.c.l.b16 %v1778
        %v1811 = vunpack.c.l.b16 %v1779
        %v1812 = vunpack.c.l.b16 %v1780
        %v1813 = vunpack.c.l.b16 %v1781
        %v1814 = vunpack.c.l.b16 %v1782
        %v1815 = vunpack.c.l.b16 %v1783
        %v1816 = vunpack.c.l.b16 %v1784
        %v1817 = vunpack.c.l.b16 %v1785
        %v1818 = vunpack.c.l.b16 %v1786
        %v1819 = vunpack.c.l.b16 %v1787
        %v1820 = vpack.c.b16 %v1805, %v1804
        %v1821 = vpack.c.b16 %v1807, %v1806
        %v1822 = vpack.c.b16 %v1809, %v1808
        %v1823 = vpack.c.b16 %v1811, %v1810
        %v1824 = vpack.c.b16 %v1813, %v1812
        %v1825 = vpack.c.b16 %v1815, %v1814
        %v1826 = vpack.c.b16 %v1817, %v1816
        %v1827 = vpack.c.b16 %v1819, %v1818
        %1836 = vmatprep.subr.bf16.mxu0 0
        %1837 = vmatpush1.bf16.msra.mxu0 %v1820
        %1838 = vmatprep.subr.bf16.mxu0 0
        %1839 = vmatpush1.bf16.msra.mxu0 %v1821
        %1840 = vmatprep.subr.bf16.mxu0 0
        %1841 = vmatpush1.bf16.msra.mxu0 %v1822
        %1842 = vmatprep.subr.bf16.mxu0 0
        %1843 = vmatpush1.bf16.msra.mxu0 %v1823
        %1844 = vmatprep.subr.bf16.mxu0 0
        %1845 = vmatpush1.bf16.msra.mxu0 %v1824
        %1846 = vmatprep.subr.bf16.mxu0 0
        %1847 = vmatpush1.bf16.msra.mxu0 %v1825
        %1848 = vmatprep.subr.bf16.mxu0 0
        %1849 = vmatpush1.bf16.msra.mxu0 %v1826
        %1850 = vmatprep.subr.bf16.mxu0 0
        %1851 = vmatpush1.bf16.msra.mxu0 %v1827
        %1852 = vmatprep.subr.bf16.mxu0 0
        %1853 = vmatpush1.bf16.msra.mxu0 0
        %1854 = vmatprep.subr.bf16.mxu0 0
        %1855 = vmatpush1.bf16.msra.mxu0 0
        %1856 = vmatprep.subr.bf16.mxu0 0
        %1857 = vmatpush1.bf16.msra.mxu0 0
        %1858 = vmatprep.subr.bf16.mxu0 0
        %1859 = vmatpush1.bf16.msra.mxu0 0
        %1860 = vmatprep.subr.bf16.mxu0 0
        %1861 = vmatpush1.bf16.msra.mxu0 0
        %1862 = vmatprep.subr.bf16.mxu0 0
        %1863 = vmatpush1.bf16.msra.mxu0 0
        %1864 = vmatprep.subr.bf16.mxu0 0
        %1865 = vmatpush1.bf16.msra.mxu0 0
        %1866 = vmatprep.subr.bf16.mxu0 0
        %1867 = vmatpush1.bf16.msra.mxu0 0
        %1868 = vmatprep.mubr.bf16.mxu0 0
        %1869 = vmatmul.mubr.bf16.gmra.mrb[0].mxu0 %v1770
        %v1870 = vpop.f32.mrb[0].mxu0
        %v1871 = vadd.f32 0.0, %v1870
        %v1872 = vpop.f32.mrb[0].mxu0
        %v1873 = vpop.f32.mrb[0].mxu0
        %v1874 = vadd.f32 0.0, %v1873
        %v1875 = vpop.f32.mrb[0].mxu0
        %1876 = vdwg.mxu0
        %v1893 = vunpack.c.l.b16 %v1754
        %v1894 = vunpack.c.l.b16 %v1755
        %v1895 = vunpack.c.l.b16 %v1756
        %v1896 = vunpack.c.l.b16 %v1757
        %v1897 = vunpack.c.l.b16 %v1758
        %v1898 = vunpack.c.l.b16 %v1759
        %v1899 = vunpack.c.l.b16 %v1760
        %v1900 = vunpack.c.l.b16 %v1761
        %v1901 = vunpack.c.l.b16 %v1762
        %v1902 = vunpack.c.l.b16 %v1763
        %v1903 = vunpack.c.l.b16 %v1764
        %v1904 = vunpack.c.l.b16 %v1765
        %v1905 = vunpack.c.l.b16 %v1766
        %v1906 = vunpack.c.l.b16 %v1767
        %v1907 = vunpack.c.l.b16 %v1768
        %v1908 = vunpack.c.l.b16 %v1769
        %v1909 = vpack.c.b16 %v1894, %v1893
        %v1910 = vpack.c.b16 %v1896, %v1895
        %v1911 = vpack.c.b16 %v1898, %v1897
        %v1912 = vpack.c.b16 %v1900, %v1899
        %v1913 = vpack.c.b16 %v1902, %v1901
        %v1914 = vpack.c.b16 %v1904, %v1903
        %v1915 = vpack.c.b16 %v1906, %v1905
        %v1916 = vpack.c.b16 %v1908, %v1907
        %1925 = vmatprep.subr.bf16.mxu0 0
        %1926 = vmatpush1.bf16.msra.mxu0 %v1909
        %1927 = vmatprep.subr.bf16.mxu0 0
        %1928 = vmatpush1.bf16.msra.mxu0 %v1910
        %1929 = vmatprep.subr.bf16.mxu0 0
        %1930 = vmatpush1.bf16.msra.mxu0 %v1911
        %1931 = vmatprep.subr.bf16.mxu0 0
        %1932 = vmatpush1.bf16.msra.mxu0 %v1912
        %1933 = vmatprep.subr.bf16.mxu0 0
        %1934 = vmatpush1.bf16.msra.mxu0 %v1913
        %1935 = vmatprep.subr.bf16.mxu0 0
        %1936 = vmatpush1.bf16.msra.mxu0 %v1914
        %1937 = vmatprep.subr.bf16.mxu0 0
        %1938 = vmatpush1.bf16.msra.mxu0 %v1915
        %1939 = vmatprep.subr.bf16.mxu0 0
        %1940 = vmatpush1.bf16.msra.mxu0 %v1916
        %1941 = vmatprep.subr.bf16.mxu0 0
        %1942 = vmatpush1.bf16.msra.mxu0 0
        %1943 = vmatprep.subr.bf16.mxu0 0
        %1944 = vmatpush1.bf16.msra.mxu0 0
        %1945 = vmatprep.subr.bf16.mxu0 0
        %1946 = vmatpush1.bf16.msra.mxu0 0
        %1947 = vmatprep.subr.bf16.mxu0 0
        %1948 = vmatpush1.bf16.msra.mxu0 0
        %1949 = vmatprep.subr.bf16.mxu0 0
        %1950 = vmatpush1.bf16.msra.mxu0 0
        %1951 = vmatprep.subr.bf16.mxu0 0
        %1952 = vmatpush1.bf16.msra.mxu0 0
        %1953 = vmatprep.subr.bf16.mxu0 0
        %1954 = vmatpush1.bf16.msra.mxu0 0
        %1955 = vmatprep.subr.bf16.mxu0 0
        %1956 = vmatpush1.bf16.msra.mxu0 0
        %1957 = vmatprep.mubr.bf16.mxu0 0
        %1958 = vmatmul.mubr.bf16.gmra.mrb[0].mxu0 %v1752
        %v1959 = vpop.f32.mrb[0].mxu0
        %v1960 = vadd.f32 %v1871, %v1959
        %v1961 = vpop.f32.mrb[0].mxu0
        %v1962 = vpop.f32.mrb[0].mxu0
        %v1963 = vadd.f32 %v1874, %v1962
        %v1964 = vpop.f32.mrb[0].mxu0
        %1965 = vdwg.mxu0
        %v1966 = vpack.c.bf16 %v1751, %v1750
        %s1967 = scalar_lea.vmem [#allocation7], 704
        %v1968 = vld [vmem:[%s1967] sm:$0xf]
        %v1969 = vld [vmem:[%s1967 + $0x4] sm:$0xf]
        %v1970 = vld [vmem:[%s1967 + $0x8] sm:$0xf]
        %v1971 = vld [vmem:[%s1967 + $0xc] sm:$0xf]
        %v1972 = vld [vmem:[%s1967 + $0x10] sm:$0xf]
        %v1973 = vld [vmem:[%s1967 + $0x14] sm:$0xf]
        %v1974 = vld [vmem:[%s1967 + $0x18] sm:$0xf]
        %v1975 = vld [vmem:[%s1967 + $0x1c] sm:$0xf]
        %v1976 = vld [vmem:[%s1967 + $0x20] sm:$0xf]
        %v1977 = vld [vmem:[%s1967 + $0x24] sm:$0xf]
        %v1978 = vld [vmem:[%s1967 + $0x28] sm:$0xf]
        %v1979 = vld [vmem:[%s1967 + $0x2c] sm:$0xf]
        %v1980 = vld [vmem:[%s1967 + $0x30] sm:$0xf]
        %v1981 = vld [vmem:[%s1967 + $0x34] sm:$0xf]
        %v1982 = vld [vmem:[%s1967 + $0x38] sm:$0xf]
        %v1983 = vld [vmem:[%s1967 + $0x3c] sm:$0xf]
        %v2000 = vunpack.c.l.b16 %v1968
        %v2001 = vunpack.c.l.b16 %v1969
        %v2002 = vunpack.c.l.b16 %v1970
        %v2003 = vunpack.c.l.b16 %v1971
        %v2004 = vunpack.c.l.b16 %v1972
        %v2005 = vunpack.c.l.b16 %v1973
        %v2006 = vunpack.c.l.b16 %v1974
        %v2007 = vunpack.c.l.b16 %v1975
        %v2008 = vunpack.c.l.b16 %v1976
        %v2009 = vunpack.c.l.b16 %v1977
        %v2010 = vunpack.c.l.b16 %v1978
        %v2011 = vunpack.c.l.b16 %v1979
        %v2012 = vunpack.c.l.b16 %v1980
        %v2013 = vunpack.c.l.b16 %v1981
        %v2014 = vunpack.c.l.b16 %v1982
        %v2015 = vunpack.c.l.b16 %v1983
        %v2016 = vpack.c.b16 %v2001, %v2000
        %v2017 = vpack.c.b16 %v2003, %v2002
        %v2018 = vpack.c.b16 %v2005, %v2004
        %v2019 = vpack.c.b16 %v2007, %v2006
        %v2020 = vpack.c.b16 %v2009, %v2008
        %v2021 = vpack.c.b16 %v2011, %v2010
        %v2022 = vpack.c.b16 %v2013, %v2012
        %v2023 = vpack.c.b16 %v2015, %v2014
        %2032 = vmatprep.subr.bf16.mxu0 0
        %2033 = vmatpush1.bf16.msra.mxu0 %v2016
        %2034 = vmatprep.subr.bf16.mxu0 0
        %2035 = vmatpush1.bf16.msra.mxu0 %v2017
        %2036 = vmatprep.subr.bf16.mxu0 0
        %2037 = vmatpush1.bf16.msra.mxu0 %v2018
        %2038 = vmatprep.subr.bf16.mxu0 0
        %2039 = vmatpush1.bf16.msra.mxu0 %v2019
        %2040 = vmatprep.subr.bf16.mxu0 0
        %2041 = vmatpush1.bf16.msra.mxu0 %v2020
        %2042 = vmatprep.subr.bf16.mxu0 0
        %2043 = vmatpush1.bf16.msra.mxu0 %v2021
        %2044 = vmatprep.subr.bf16.mxu0 0
        %2045 = vmatpush1.bf16.msra.mxu0 %v2022
        %2046 = vmatprep.subr.bf16.mxu0 0
        %2047 = vmatpush1.bf16.msra.mxu0 %v2023
        %2048 = vmatprep.subr.bf16.mxu0 0
        %2049 = vmatpush1.bf16.msra.mxu0 0
        %2050 = vmatprep.subr.bf16.mxu0 0
        %2051 = vmatpush1.bf16.msra.mxu0 0
        %2052 = vmatprep.subr.bf16.mxu0 0
        %2053 = vmatpush1.bf16.msra.mxu0 0
        %2054 = vmatprep.subr.bf16.mxu0 0
        %2055 = vmatpush1.bf16.msra.mxu0 0
        %2056 = vmatprep.subr.bf16.mxu0 0
        %2057 = vmatpush1.bf16.msra.mxu0 0
        %2058 = vmatprep.subr.bf16.mxu0 0
        %2059 = vmatpush1.bf16.msra.mxu0 0
        %2060 = vmatprep.subr.bf16.mxu0 0
        %2061 = vmatpush1.bf16.msra.mxu0 0
        %2062 = vmatprep.subr.bf16.mxu0 0
        %2063 = vmatpush1.bf16.msra.mxu0 0
        %2064 = vmatprep.mubr.bf16.mxu0 0
        %2065 = vmatmul.mubr.bf16.gmra.mrb[0].mxu0 %v1966
        %v2066 = vpop.f32.mrb[0].mxu0
        %v2067 = vadd.f32 0.0, %v2066
        %v2068 = vpop.f32.mrb[0].mxu0
        %v2069 = vpop.f32.mrb[0].mxu0
        %v2070 = vadd.f32 0.0, %v2069
        %v2071 = vpop.f32.mrb[0].mxu0
        %2072 = vdwg.mxu0
        %v2073 = vadd.f32 %v1960, %v2067
        %v2074 = vadd.f32 %v1963, %v2070
        %v2075 = vlaneseq
        %v2076 = vshrl.u32 %v2075, 7
        %v2077 = vsub.s32 0, %v2076
        %v2078 = vrot.slane %v1730, %v2077
        %v2079 = vadd.f32 %v2073, %v2078
        %v2080 = vadd.f32 %v2074, %v2078
        %v2081 = vmax.f32 %v2079, 0.0
        %v2082 = vmax.f32 %v2080, 0.0
        %v2083 = vld [vmem:[%s3 + $0x5] sm:$0x1]
        %v2084 = vrot.slane %v2081, 4
        %v2085 = vrot.slane %v2082, 4
        %v2086 = vsel %vm1745, %v2084, %v2085
        %v2087 = vsel %vm1745, %v2085, %v2084
        %v2088 = vmul.f32 %v2087, %v1735
        %v2089 = vmul.f32 %v2086, %v1736
        %v2090 = vmul.f32 %v2086, %v1741
        %v2091 = vmul.f32 %v2087, %v1742
        %v2092 = vpack.c.bf16 %v2089, %v2088
        %s2093 = scalar_lea.vmem [#allocation7], 768
        %v2094 = vld [vmem:[%s2093] sm:$0xf]
        %v2095 = vld [vmem:[%s2093 + $0x4] sm:$0xf]
        %v2096 = vld [vmem:[%s2093 + $0x8] sm:$0xf]
        %v2097 = vld [vmem:[%s2093 + $0xc] sm:$0xf]
        %v2098 = vld [vmem:[%s2093 + $0x10] sm:$0xf]
        %v2099 = vld [vmem:[%s2093 + $0x14] sm:$0xf]
        %v2100 = vld [vmem:[%s2093 + $0x18] sm:$0xf]
        %v2101 = vld [vmem:[%s2093 + $0x1c] sm:$0xf]
        %v2102 = vld [vmem:[%s2093 + $0x20] sm:$0xf]
        %v2103 = vld [vmem:[%s2093 + $0x24] sm:$0xf]
        %v2104 = vld [vmem:[%s2093 + $0x28] sm:$0xf]
        %v2105 = vld [vmem:[%s2093 + $0x2c] sm:$0xf]
        %v2106 = vld [vmem:[%s2093 + $0x30] sm:$0xf]
        %v2107 = vld [vmem:[%s2093 + $0x34] sm:$0xf]
        %v2108 = vld [vmem:[%s2093 + $0x38] sm:$0xf]
        %v2109 = vld [vmem:[%s2093 + $0x3c] sm:$0xf]
        %v2110 = vpack.c.bf16 %v2082, %v2081
        %s2111 = scalar_lea.vmem [#allocation7], 832
        %v2112 = vld [vmem:[%s2111] sm:$0xf]
        %v2113 = vld [vmem:[%s2111 + $0x4] sm:$0xf]
        %v2114 = vld [vmem:[%s2111 + $0x8] sm:$0xf]
        %v2115 = vld [vmem:[%s2111 + $0xc] sm:$0xf]
        %v2116 = vld [vmem:[%s2111 + $0x10] sm:$0xf]
        %v2117 = vld [vmem:[%s2111 + $0x14] sm:$0xf]
        %v2118 = vld [vmem:[%s2111 + $0x18] sm:$0xf]
        %v2119 = vld [vmem:[%s2111 + $0x1c] sm:$0xf]
        %v2120 = vld [vmem:[%s2111 + $0x20] sm:$0xf]
        %v2121 = vld [vmem:[%s2111 + $0x24] sm:$0xf]
        %v2122 = vld [vmem:[%s2111 + $0x28] sm:$0xf]
        %v2123 = vld [vmem:[%s2111 + $0x2c] sm:$0xf]
        %v2124 = vld [vmem:[%s2111 + $0x30] sm:$0xf]
        %v2125 = vld [vmem:[%s2111 + $0x34] sm:$0xf]
        %v2126 = vld [vmem:[%s2111 + $0x38] sm:$0xf]
        %v2127 = vld [vmem:[%s2111 + $0x3c] sm:$0xf]
        %v2144 = vunpack.c.l.b16 %v2112
        %v2145 = vunpack.c.l.b16 %v2113
        %v2146 = vunpack.c.l.b16 %v2114
        %v2147 = vunpack.c.l.b16 %v2115
        %v2148 = vunpack.c.l.b16 %v2116
        %v2149 = vunpack.c.l.b16 %v2117
        %v2150 = vunpack.c.l.b16 %v2118
        %v2151 = vunpack.c.l.b16 %v2119
        %v2152 = vunpack.c.l.b16 %v2120
        %v2153 = vunpack.c.l.b16 %v2121
        %v2154 = vunpack.c.l.b16 %v2122
        %v2155 = vunpack.c.l.b16 %v2123
        %v2156 = vunpack.c.l.b16 %v2124
        %v2157 = vunpack.c.l.b16 %v2125
        %v2158 = vunpack.c.l.b16 %v2126
        %v2159 = vunpack.c.l.b16 %v2127
        %v2160 = vpack.c.b16 %v2145, %v2144
        %v2161 = vpack.c.b16 %v2147, %v2146
        %v2162 = vpack.c.b16 %v2149, %v2148
        %v2163 = vpack.c.b16 %v2151, %v2150
        %v2164 = vpack.c.b16 %v2153, %v2152
        %v2165 = vpack.c.b16 %v2155, %v2154
        %v2166 = vpack.c.b16 %v2157, %v2156
        %v2167 = vpack.c.b16 %v2159, %v2158
        %2176 = vmatprep.subr.bf16.mxu0 0
        %2177 = vmatpush1.bf16.msra.mxu0 %v2160
        %2178 = vmatprep.subr.bf16.mxu0 0
        %2179 = vmatpush1.bf16.msra.mxu0 %v2161
        %2180 = vmatprep.subr.bf16.mxu0 0
        %2181 = vmatpush1.bf16.msra.mxu0 %v2162
        %2182 = vmatprep.subr.bf16.mxu0 0
        %2183 = vmatpush1.bf16.msra.mxu0 %v2163
        %2184 = vmatprep.subr.bf16.mxu0 0
        %2185 = vmatpush1.bf16.msra.mxu0 %v2164
        %2186 = vmatprep.subr.bf16.mxu0 0
        %2187 = vmatpush1.bf16.msra.mxu0 %v2165
        %2188 = vmatprep.subr.bf16.mxu0 0
        %2189 = vmatpush1.bf16.msra.mxu0 %v2166
        %2190 = vmatprep.subr.bf16.mxu0 0
        %2191 = vmatpush1.bf16.msra.mxu0 %v2167
        %2192 = vmatprep.subr.bf16.mxu0 0
        %2193 = vmatpush1.bf16.msra.mxu0 0
        %2194 = vmatprep.subr.bf16.mxu0 0
        %2195 = vmatpush1.bf16.msra.mxu0 0
        %2196 = vmatprep.subr.bf16.mxu0 0
        %2197 = vmatpush1.bf16.msra.mxu0 0
        %2198 = vmatprep.subr.bf16.mxu0 0
        %2199 = vmatpush1.bf16.msra.mxu0 0
        %2200 = vmatprep.subr.bf16.mxu0 0
        %2201 = vmatpush1.bf16.msra.mxu0 0
        %2202 = vmatprep.subr.bf16.mxu0 0
        %2203 = vmatpush1.bf16.msra.mxu0 0
        %2204 = vmatprep.subr.bf16.mxu0 0
        %2205 = vmatpush1.bf16.msra.mxu0 0
        %2206 = vmatprep.subr.bf16.mxu0 0
        %2207 = vmatpush1.bf16.msra.mxu0 0
        %2208 = vmatprep.mubr.bf16.mxu0 0
        %2209 = vmatmul.mubr.bf16.gmra.mrb[0].mxu0 %v2110
        %v2210 = vpop.f32.mrb[0].mxu0
        %v2211 = vadd.f32 0.0, %v2210
        %v2212 = vpop.f32.mrb[0].mxu0
        %v2213 = vpop.f32.mrb[0].mxu0
        %v2214 = vadd.f32 0.0, %v2213
        %v2215 = vpop.f32.mrb[0].mxu0
        %2216 = vdwg.mxu0
        %v2233 = vunpack.c.l.b16 %v2094
        %v2234 = vunpack.c.l.b16 %v2095
        %v2235 = vunpack.c.l.b16 %v2096
        %v2236 = vunpack.c.l.b16 %v2097
        %v2237 = vunpack.c.l.b16 %v2098
        %v2238 = vunpack.c.l.b16 %v2099
        %v2239 = vunpack.c.l.b16 %v2100
        %v2240 = vunpack.c.l.b16 %v2101
        %v2241 = vunpack.c.l.b16 %v2102
        %v2242 = vunpack.c.l.b16 %v2103
        %v2243 = vunpack.c.l.b16 %v2104
        %v2244 = vunpack.c.l.b16 %v2105
        %v2245 = vunpack.c.l.b16 %v2106
        %v2246 = vunpack.c.l.b16 %v2107
        %v2247 = vunpack.c.l.b16 %v2108
        %v2248 = vunpack.c.l.b16 %v2109
        %v2249 = vpack.c.b16 %v2234, %v2233
        %v2250 = vpack.c.b16 %v2236, %v2235
        %v2251 = vpack.c.b16 %v2238, %v2237
        %v2252 = vpack.c.b16 %v2240, %v2239
        %v2253 = vpack.c.b16 %v2242, %v2241
        %v2254 = vpack.c.b16 %v2244, %v2243
        %v2255 = vpack.c.b16 %v2246, %v2245
        %v2256 = vpack.c.b16 %v2248, %v2247
        %2265 = vmatprep.subr.bf16.mxu0 0
        %2266 = vmatpush1.bf16.msra.mxu0 %v2249
        %2267 = vmatprep.subr.bf16.mxu0 0
        %2268 = vmatpush1.bf16.msra.mxu0 %v2250
        %2269 = vmatprep.subr.bf16.mxu0 0
        %2270 = vmatpush1.bf16.msra.mxu0 %v2251
        %2271 = vmatprep.subr.bf16.mxu0 0
        %2272 = vmatpush1.bf16.msra.mxu0 %v2252
        %2273 = vmatprep.subr.bf16.mxu0 0
        %2274 = vmatpush1.bf16.msra.mxu0 %v2253
        %2275 = vmatprep.subr.bf16.mxu0 0
        %2276 = vmatpush1.bf16.msra.mxu0 %v2254
        %2277 = vmatprep.subr.bf16.mxu0 0
        %2278 = vmatpush1.bf16.msra.mxu0 %v2255
        %2279 = vmatprep.subr.bf16.mxu0 0
        %2280 = vmatpush1.bf16.msra.mxu0 %v2256
        %2281 = vmatprep.subr.bf16.mxu0 0
        %2282 = vmatpush1.bf16.msra.mxu0 0
        %2283 = vmatprep.subr.bf16.mxu0 0
        %2284 = vmatpush1.bf16.msra.mxu0 0
        %2285 = vmatprep.subr.bf16.mxu0 0
        %2286 = vmatpush1.bf16.msra.mxu0 0
        %2287 = vmatprep.subr.bf16.mxu0 0
        %2288 = vmatpush1.bf16.msra.mxu0 0
        %2289 = vmatprep.subr.bf16.mxu0 0
        %2290 = vmatpush1.bf16.msra.mxu0 0
        %2291 = vmatprep.subr.bf16.mxu0 0
        %2292 = vmatpush1.bf16.msra.mxu0 0
        %2293 = vmatprep.subr.bf16.mxu0 0
        %2294 = vmatpush1.bf16.msra.mxu0 0
        %2295 = vmatprep.subr.bf16.mxu0 0
        %2296 = vmatpush1.bf16.msra.mxu0 0
        %2297 = vmatprep.mubr.bf16.mxu0 0
        %2298 = vmatmul.mubr.bf16.gmra.mrb[0].mxu0 %v2092
        %v2299 = vpop.f32.mrb[0].mxu0
        %v2300 = vadd.f32 %v2211, %v2299
        %v2301 = vpop.f32.mrb[0].mxu0
        %v2302 = vpop.f32.mrb[0].mxu0
        %v2303 = vadd.f32 %v2214, %v2302
        %v2304 = vpop.f32.mrb[0].mxu0
        %2305 = vdwg.mxu0
        %v2306 = vpack.c.bf16 %v2091, %v2090
        %s2307 = scalar_lea.vmem [#allocation7], 896
        %v2308 = vld [vmem:[%s2307] sm:$0xf]
        %v2309 = vld [vmem:[%s2307 + $0x4] sm:$0xf]
        %v2310 = vld [vmem:[%s2307 + $0x8] sm:$0xf]
        %v2311 = vld [vmem:[%s2307 + $0xc] sm:$0xf]
        %v2312 = vld [vmem:[%s2307 + $0x10] sm:$0xf]
        %v2313 = vld [vmem:[%s2307 + $0x14] sm:$0xf]
        %v2314 = vld [vmem:[%s2307 + $0x18] sm:$0xf]
        %v2315 = vld [vmem:[%s2307 + $0x1c] sm:$0xf]
        %v2316 = vld [vmem:[%s2307 + $0x20] sm:$0xf]
        %v2317 = vld [vmem:[%s2307 + $0x24] sm:$0xf]
        %v2318 = vld [vmem:[%s2307 + $0x28] sm:$0xf]
        %v2319 = vld [vmem:[%s2307 + $0x2c] sm:$0xf]
        %v2320 = vld [vmem:[%s2307 + $0x30] sm:$0xf]
        %v2321 = vld [vmem:[%s2307 + $0x34] sm:$0xf]
        %v2322 = vld [vmem:[%s2307 + $0x38] sm:$0xf]
        %v2323 = vld [vmem:[%s2307 + $0x3c] sm:$0xf]
        %v2340 = vunpack.c.l.b16 %v2308
        %v2341 = vunpack.c.l.b16 %v2309
        %v2342 = vunpack.c.l.b16 %v2310
        %v2343 = vunpack.c.l.b16 %v2311
        %v2344 = vunpack.c.l.b16 %v2312
        %v2345 = vunpack.c.l.b16 %v2313
        %v2346 = vunpack.c.l.b16 %v2314
        %v2347 = vunpack.c.l.b16 %v2315
        %v2348 = vunpack.c.l.b16 %v2316
        %v2349 = vunpack.c.l.b16 %v2317
        %v2350 = vunpack.c.l.b16 %v2318
        %v2351 = vunpack.c.l.b16 %v2319
        %v2352 = vunpack.c.l.b16 %v2320
        %v2353 = vunpack.c.l.b16 %v2321
        %v2354 = vunpack.c.l.b16 %v2322
        %v2355 = vunpack.c.l.b16 %v2323
        %v2356 = vpack.c.b16 %v2341, %v2340
        %v2357 = vpack.c.b16 %v2343, %v2342
        %v2358 = vpack.c.b16 %v2345, %v2344
        %v2359 = vpack.c.b16 %v2347, %v2346
        %v2360 = vpack.c.b16 %v2349, %v2348
        %v2361 = vpack.c.b16 %v2351, %v2350
        %v2362 = vpack.c.b16 %v2353, %v2352
        %v2363 = vpack.c.b16 %v2355, %v2354
        %2372 = vmatprep.subr.bf16.mxu0 0
        %2373 = vmatpush1.bf16.msra.mxu0 %v2356
        %2374 = vmatprep.subr.bf16.mxu0 0
        %2375 = vmatpush1.bf16.msra.mxu0 %v2357
        %2376 = vmatprep.subr.bf16.mxu0 0
        %2377 = vmatpush1.bf16.msra.mxu0 %v2358
        %2378 = vmatprep.subr.bf16.mxu0 0
        %2379 = vmatpush1.bf16.msra.mxu0 %v2359
        %2380 = vmatprep.subr.bf16.mxu0 0
        %2381 = vmatpush1.bf16.msra.mxu0 %v2360
        %2382 = vmatprep.subr.bf16.mxu0 0
        %2383 = vmatpush1.bf16.msra.mxu0 %v2361
        %2384 = vmatprep.subr.bf16.mxu0 0
        %2385 = vmatpush1.bf16.msra.mxu0 %v2362
        %2386 = vmatprep.subr.bf16.mxu0 0
        %2387 = vmatpush1.bf16.msra.mxu0 %v2363
        %2388 = vmatprep.subr.bf16.mxu0 0
        %2389 = vmatpush1.bf16.msra.mxu0 0
        %2390 = vmatprep.subr.bf16.mxu0 0
        %2391 = vmatpush1.bf16.msra.mxu0 0
        %2392 = vmatprep.subr.bf16.mxu0 0
        %2393 = vmatpush1.bf16.msra.mxu0 0
        %2394 = vmatprep.subr.bf16.mxu0 0
        %2395 = vmatpush1.bf16.msra.mxu0 0
        %2396 = vmatprep.subr.bf16.mxu0 0
        %2397 = vmatpush1.bf16.msra.mxu0 0
        %2398 = vmatprep.subr.bf16.mxu0 0
        %2399 = vmatpush1.bf16.msra.mxu0 0
        %2400 = vmatprep.subr.bf16.mxu0 0
        %2401 = vmatpush1.bf16.msra.mxu0 0
        %2402 = vmatprep.subr.bf16.mxu0 0
        %2403 = vmatpush1.bf16.msra.mxu0 0
        %2404 = vmatprep.mubr.bf16.mxu0 0
        %2405 = vmatmul.mubr.bf16.gmra.mrb[0].mxu0 %v2306
        %v2406 = vpop.f32.mrb[0].mxu0
        %v2407 = vadd.f32 0.0, %v2406
        %v2408 = vpop.f32.mrb[0].mxu0
        %v2409 = vpop.f32.mrb[0].mxu0
        %v2410 = vadd.f32 0.0, %v2409
        %v2411 = vpop.f32.mrb[0].mxu0
        %2412 = vdwg.mxu0
        %v2413 = vadd.f32 %v2300, %v2407
        %v2414 = vadd.f32 %v2303, %v2410
        %v2415 = vlaneseq
        %v2416 = vshrl.u32 %v2415, 7
        %v2417 = vsub.s32 0, %v2416
        %v2418 = vrot.slane %v2083, %v2417
        %v2419 = vadd.f32 %v2413, %v2418
        %v2420 = vadd.f32 %v2414, %v2418
        %v2421 = vmax.f32 %v2419, 0.0
        %v2422 = vmax.f32 %v2420, 0.0
        %v2423 = vadd.f32 %v2421, %v1728
        %v2424 = vadd.f32 %v2422, %v1729
        %v2425 = vmax.f32 %v2423, 0.0
        %v2426 = vmax.f32 %v2424, 0.0
        %v2427 = vld [vmem:[#allocation10] sm:$0xf]
        %v2428 = vld [vmem:[#allocation10 + $0x4] sm:$0xf]
        %v2429 = vld [vmem:[#allocation10 + $0x8] sm:$0xf]
        %v2430 = vld [vmem:[#allocation10 + $0xc] sm:$0xf]
        %v2431 = vld [vmem:[#allocation10 + $0x10] sm:$0xf]
        %v2432 = vld [vmem:[#allocation10 + $0x14] sm:$0xf]
        %v2433 = vld [vmem:[#allocation10 + $0x18] sm:$0xf]
        %v2434 = vld [vmem:[#allocation10 + $0x1c] sm:$0xf]
        %v2435 = vld [vmem:[#allocation10 + $0x20] sm:$0xf]
        %v2436 = vld [vmem:[#allocation10 + $0x24] sm:$0xf]
        %v2437 = vld [vmem:[#allocation10 + $0x28] sm:$0xf]
        %v2438 = vld [vmem:[#allocation10 + $0x2c] sm:$0xf]
        %v2439 = vld [vmem:[#allocation10 + $0x30] sm:$0xf]
        %v2440 = vld [vmem:[#allocation10 + $0x34] sm:$0xf]
        %v2441 = vld [vmem:[#allocation10 + $0x38] sm:$0xf]
        %v2442 = vld [vmem:[#allocation10 + $0x3c] sm:$0xf]
        %v2443 = vpack.c.bf16 %v2426, %v2425
        %v2444 = vld [vmem:[%s7] sm:$0x1]
        %v2445 = vlaneseq
        %v2446 = vshrl.u32 %v2445, 7
        %v2447 = vsub.s32 0, %v2446
        %v2448 = vrot.slane %v2444, %v2447
        %v2465 = vunpack.c.l.b16 %v2427
        %v2466 = vunpack.c.l.b16 %v2428
        %v2467 = vunpack.c.l.b16 %v2429
        %v2468 = vunpack.c.l.b16 %v2430
        %v2469 = vunpack.c.l.b16 %v2431
        %v2470 = vunpack.c.l.b16 %v2432
        %v2471 = vunpack.c.l.b16 %v2433
        %v2472 = vunpack.c.l.b16 %v2434
        %v2473 = vunpack.c.l.b16 %v2435
        %v2474 = vunpack.c.l.b16 %v2436
        %v2475 = vunpack.c.l.b16 %v2437
        %v2476 = vunpack.c.l.b16 %v2438
        %v2477 = vunpack.c.l.b16 %v2439
        %v2478 = vunpack.c.l.b16 %v2440
        %v2479 = vunpack.c.l.b16 %v2441
        %v2480 = vunpack.c.l.b16 %v2442
        %v2481 = vpack.c.b16 %v2466, %v2465
        %v2482 = vpack.c.b16 %v2468, %v2467
        %v2483 = vpack.c.b16 %v2470, %v2469
        %v2484 = vpack.c.b16 %v2472, %v2471
        %v2485 = vpack.c.b16 %v2474, %v2473
        %v2486 = vpack.c.b16 %v2476, %v2475
        %v2487 = vpack.c.b16 %v2478, %v2477
        %v2488 = vpack.c.b16 %v2480, %v2479
        %2497 = vmatprep.subr.bf16.mxu0 0
        %2498 = vmatpush1.bf16.msra.mxu0 %v2481
        %2499 = vmatprep.subr.bf16.mxu0 0
        %2500 = vmatpush1.bf16.msra.mxu0 %v2482
        %2501 = vmatprep.subr.bf16.mxu0 0
        %2502 = vmatpush1.bf16.msra.mxu0 %v2483
        %2503 = vmatprep.subr.bf16.mxu0 0
        %2504 = vmatpush1.bf16.msra.mxu0 %v2484
        %2505 = vmatprep.subr.bf16.mxu0 0
        %2506 = vmatpush1.bf16.msra.mxu0 %v2485
        %2507 = vmatprep.subr.bf16.mxu0 0
        %2508 = vmatpush1.bf16.msra.mxu0 %v2486
        %2509 = vmatprep.subr.bf16.mxu0 0
        %2510 = vmatpush1.bf16.msra.mxu0 %v2487
        %2511 = vmatprep.subr.bf16.mxu0 0
        %2512 = vmatpush1.bf16.msra.mxu0 %v2488
        %2513 = vmatprep.subr.bf16.mxu0 0
        %2514 = vmatpush1.bf16.msra.mxu0 0
        %2515 = vmatprep.subr.bf16.mxu0 0
        %2516 = vmatpush1.bf16.msra.mxu0 0
        %2517 = vmatprep.subr.bf16.mxu0 0
        %2518 = vmatpush1.bf16.msra.mxu0 0
        %2519 = vmatprep.subr.bf16.mxu0 0
        %2520 = vmatpush1.bf16.msra.mxu0 0
        %2521 = vmatprep.subr.bf16.mxu0 0
        %2522 = vmatpush1.bf16.msra.mxu0 0
        %2523 = vmatprep.subr.bf16.mxu0 0
        %2524 = vmatpush1.bf16.msra.mxu0 0
        %2525 = vmatprep.subr.bf16.mxu0 0
        %2526 = vmatpush1.bf16.msra.mxu0 0
        %2527 = vmatprep.subr.bf16.mxu0 0
        %2528 = vmatpush1.bf16.msra.mxu0 0
        %2529 = vmatprep.mubr.bf16.mxu0 0
        %2530 = vmatmul.mubr.bf16.gmra.mrb[0].mxu0 %v2443
        %v2531 = vpop.f32.mrb[0].mxu0
        %v2532 = vadd.f32 %v2448, %v2531
        %v2533 = vpop.f32.mrb[0].mxu0
        %v2534 = vpop.f32.mrb[0].mxu0
        %v2535 = vadd.f32 %v2448, %v2534
        %v2536 = vpop.f32.mrb[0].mxu0
        %2537 = vdwg.mxu0
        %s2538 = scalar_lea.vmem [#allocation10], 64
        %v2539 = vld [vmem:[%s2538] sm:$0xf]
        %v2540 = vld [vmem:[%s2538 + $0x4] sm:$0xf]
        %v2541 = vld [vmem:[%s2538 + $0x8] sm:$0xf]
        %v2542 = vld [vmem:[%s2538 + $0xc] sm:$0xf]
        %v2543 = vld [vmem:[%s2538 + $0x10] sm:$0xf]
        %v2544 = vld [vmem:[%s2538 + $0x14] sm:$0xf]
        %v2545 = vld [vmem:[%s2538 + $0x18] sm:$0xf]
        %v2546 = vld [vmem:[%s2538 + $0x1c] sm:$0xf]
        %v2547 = vld [vmem:[%s2538 + $0x20] sm:$0xf]
        %v2548 = vld [vmem:[%s2538 + $0x24] sm:$0xf]
        %v2549 = vld [vmem:[%s2538 + $0x28] sm:$0xf]
        %v2550 = vld [vmem:[%s2538 + $0x2c] sm:$0xf]
        %v2551 = vld [vmem:[%s2538 + $0x30] sm:$0xf]
        %v2552 = vld [vmem:[%s2538 + $0x34] sm:$0xf]
        %v2553 = vld [vmem:[%s2538 + $0x38] sm:$0xf]
        %v2554 = vld [vmem:[%s2538 + $0x3c] sm:$0xf]
        %v2555 = vpack.c.bf16 %v2535, %v2532
        %v2556 = vld [vmem:[%s7 + $0x1] sm:$0x1]
        %v2557 = vlaneseq
        %v2558 = vshrl.u32 %v2557, 7
        %v2559 = vsub.s32 0, %v2558
        %v2560 = vrot.slane %v2556, %v2559
        %v2577 = vunpack.c.l.b16 %v2539
        %v2578 = vunpack.c.l.b16 %v2540
        %v2579 = vunpack.c.l.b16 %v2541
        %v2580 = vunpack.c.l.b16 %v2542
        %v2581 = vunpack.c.l.b16 %v2543
        %v2582 = vunpack.c.l.b16 %v2544
        %v2583 = vunpack.c.l.b16 %v2545
        %v2584 = vunpack.c.l.b16 %v2546
        %v2585 = vunpack.c.l.b16 %v2547
        %v2586 = vunpack.c.l.b16 %v2548
        %v2587 = vunpack.c.l.b16 %v2549
        %v2588 = vunpack.c.l.b16 %v2550
        %v2589 = vunpack.c.l.b16 %v2551
        %v2590 = vunpack.c.l.b16 %v2552
        %v2591 = vunpack.c.l.b16 %v2553
        %v2592 = vunpack.c.l.b16 %v2554
        %v2593 = vpack.c.b16 %v2578, %v2577
        %v2594 = vpack.c.b16 %v2580, %v2579
        %v2595 = vpack.c.b16 %v2582, %v2581
        %v2596 = vpack.c.b16 %v2584, %v2583
        %v2597 = vpack.c.b16 %v2586, %v2585
        %v2598 = vpack.c.b16 %v2588, %v2587
        %v2599 = vpack.c.b16 %v2590, %v2589
        %v2600 = vpack.c.b16 %v2592, %v2591
        %2609 = vmatprep.subr.bf16.mxu0 0
        %2610 = vmatpush1.bf16.msra.mxu0 %v2593
        %2611 = vmatprep.subr.bf16.mxu0 0
        %2612 = vmatpush1.bf16.msra.mxu0 %v2594
        %2613 = vmatprep.subr.bf16.mxu0 0
        %2614 = vmatpush1.bf16.msra.mxu0 %v2595
        %2615 = vmatprep.subr.bf16.mxu0 0
        %2616 = vmatpush1.bf16.msra.mxu0 %v2596
        %2617 = vmatprep.subr.bf16.mxu0 0
        %2618 = vmatpush1.bf16.msra.mxu0 %v2597
        %2619 = vmatprep.subr.bf16.mxu0 0
        %2620 = vmatpush1.bf16.msra.mxu0 %v2598
        %2621 = vmatprep.subr.bf16.mxu0 0
        %2622 = vmatpush1.bf16.msra.mxu0 %v2599
        %2623 = vmatprep.subr.bf16.mxu0 0
        %2624 = vmatpush1.bf16.msra.mxu0 %v2600
        %2625 = vmatprep.subr.bf16.mxu0 0
        %2626 = vmatpush1.bf16.msra.mxu0 0
        %2627 = vmatprep.subr.bf16.mxu0 0
        %2628 = vmatpush1.bf16.msra.mxu0 0
        %2629 = vmatprep.subr.bf16.mxu0 0
        %2630 = vmatpush1.bf16.msra.mxu0 0
        %2631 = vmatprep.subr.bf16.mxu0 0
        %2632 = vmatpush1.bf16.msra.mxu0 0
        %2633 = vmatprep.subr.bf16.mxu0 0
        %2634 = vmatpush1.bf16.msra.mxu0 0
        %2635 = vmatprep.subr.bf16.mxu0 0
        %2636 = vmatpush1.bf16.msra.mxu0 0
        %2637 = vmatprep.subr.bf16.mxu0 0
        %2638 = vmatpush1.bf16.msra.mxu0 0
        %2639 = vmatprep.subr.bf16.mxu0 0
        %2640 = vmatpush1.bf16.msra.mxu0 0
        %2641 = vmatprep.mubr.bf16.mxu0 0
        %2642 = vmatmul.mubr.bf16.gmra.mrb[0].mxu0 %v2555
        %v2643 = vpop.f32.mrb[0].mxu0
        %v2644 = vadd.f32 %v2560, %v2643
        %v2645 = vpop.f32.mrb[0].mxu0
        %v2646 = vpop.f32.mrb[0].mxu0
        %v2647 = vadd.f32 %v2560, %v2646
        %v2648 = vpop.f32.mrb[0].mxu0
        %2649 = vdwg.mxu0
        %s2650 = scalar_lea.vmem [#allocation10], 128
        %v2651 = vld [vmem:[%s2650] sm:$0xf]
        %v2652 = vld [vmem:[%s2650 + $0x4] sm:$0xf]
        %v2653 = vld [vmem:[%s2650 + $0x8] sm:$0xf]
        %v2654 = vld [vmem:[%s2650 + $0xc] sm:$0xf]
        %v2655 = vld [vmem:[%s2650 + $0x10] sm:$0xf]
        %v2656 = vld [vmem:[%s2650 + $0x14] sm:$0xf]
        %v2657 = vld [vmem:[%s2650 + $0x18] sm:$0xf]
        %v2658 = vld [vmem:[%s2650 + $0x1c] sm:$0xf]
        %v2659 = vld [vmem:[%s2650 + $0x20] sm:$0xf]
        %v2660 = vld [vmem:[%s2650 + $0x24] sm:$0xf]
        %v2661 = vld [vmem:[%s2650 + $0x28] sm:$0xf]
        %v2662 = vld [vmem:[%s2650 + $0x2c] sm:$0xf]
        %v2663 = vld [vmem:[%s2650 + $0x30] sm:$0xf]
        %v2664 = vld [vmem:[%s2650 + $0x34] sm:$0xf]
        %v2665 = vld [vmem:[%s2650 + $0x38] sm:$0xf]
        %v2666 = vld [vmem:[%s2650 + $0x3c] sm:$0xf]
        %v2667 = vpack.c.bf16 %v2647, %v2644
        %v2668 = vld [vmem:[%s7 + $0x2] sm:$0x1]
        %v2669 = vlaneseq
        %v2670 = vshrl.u32 %v2669, 7
        %v2671 = vsub.s32 0, %v2670
        %v2672 = vrot.slane %v2668, %v2671
        %v2689 = vunpack.c.l.b16 %v2651
        %v2690 = vunpack.c.l.b16 %v2652
        %v2691 = vunpack.c.l.b16 %v2653
        %v2692 = vunpack.c.l.b16 %v2654
        %v2693 = vunpack.c.l.b16 %v2655
        %v2694 = vunpack.c.l.b16 %v2656
        %v2695 = vunpack.c.l.b16 %v2657
        %v2696 = vunpack.c.l.b16 %v2658
        %v2697 = vunpack.c.l.b16 %v2659
        %v2698 = vunpack.c.l.b16 %v2660
        %v2699 = vunpack.c.l.b16 %v2661
        %v2700 = vunpack.c.l.b16 %v2662
        %v2701 = vunpack.c.l.b16 %v2663
        %v2702 = vunpack.c.l.b16 %v2664
        %v2703 = vunpack.c.l.b16 %v2665
        %v2704 = vunpack.c.l.b16 %v2666
        %v2705 = vpack.c.b16 %v2690, %v2689
        %v2706 = vpack.c.b16 %v2692, %v2691
        %v2707 = vpack.c.b16 %v2694, %v2693
        %v2708 = vpack.c.b16 %v2696, %v2695
        %v2709 = vpack.c.b16 %v2698, %v2697
        %v2710 = vpack.c.b16 %v2700, %v2699
        %v2711 = vpack.c.b16 %v2702, %v2701
        %v2712 = vpack.c.b16 %v2704, %v2703
        %2721 = vmatprep.subr.bf16.mxu0 0
        %2722 = vmatpush1.bf16.msra.mxu0 %v2705
        %2723 = vmatprep.subr.bf16.mxu0 0
        %2724 = vmatpush1.bf16.msra.mxu0 %v2706
        %2725 = vmatprep.subr.bf16.mxu0 0
        %2726 = vmatpush1.bf16.msra.mxu0 %v2707
        %2727 = vmatprep.subr.bf16.mxu0 0
        %2728 = vmatpush1.bf16.msra.mxu0 %v2708
        %2729 = vmatprep.subr.bf16.mxu0 0
        %2730 = vmatpush1.bf16.msra.mxu0 %v2709
        %2731 = vmatprep.subr.bf16.mxu0 0
        %2732 = vmatpush1.bf16.msra.mxu0 %v2710
        %2733 = vmatprep.subr.bf16.mxu0 0
        %2734 = vmatpush1.bf16.msra.mxu0 %v2711
        %2735 = vmatprep.subr.bf16.mxu0 0
        %2736 = vmatpush1.bf16.msra.mxu0 %v2712
        %2737 = vmatprep.subr.bf16.mxu0 0
        %2738 = vmatpush1.bf16.msra.mxu0 0
        %2739 = vmatprep.subr.bf16.mxu0 0
        %2740 = vmatpush1.bf16.msra.mxu0 0
        %2741 = vmatprep.subr.bf16.mxu0 0
        %2742 = vmatpush1.bf16.msra.mxu0 0
        %2743 = vmatprep.subr.bf16.mxu0 0
        %2744 = vmatpush1.bf16.msra.mxu0 0
        %2745 = vmatprep.subr.bf16.mxu0 0
        %2746 = vmatpush1.bf16.msra.mxu0 0
        %2747 = vmatprep.subr.bf16.mxu0 0
        %2748 = vmatpush1.bf16.msra.mxu0 0
        %2749 = vmatprep.subr.bf16.mxu0 0
        %2750 = vmatpush1.bf16.msra.mxu0 0
        %2751 = vmatprep.subr.bf16.mxu0 0
        %2752 = vmatpush1.bf16.msra.mxu0 0
        %2753 = vmatprep.mubr.bf16.mxu0 0
        %2754 = vmatmul.mubr.bf16.gmra.mrb[0].mxu0 %v2667
        %v2755 = vpop.f32.mrb[0].mxu0
        %v2756 = vadd.f32 %v2672, %v2755
        %v2757 = vpop.f32.mrb[0].mxu0
        %v2758 = vpop.f32.mrb[0].mxu0
        %v2759 = vadd.f32 %v2672, %v2758
        %v2760 = vpop.f32.mrb[0].mxu0
        %2761 = vdwg.mxu0
        %v2762 = vmul.f32 %v2756, 0.5
        %v2763 = vmul.f32 %v2759, 0.5
        %v2764 = vmul.f32 %v2756, 0.70710677
        %v2765 = vmul.f32 %v2759, 0.70710677
        %v2766 = vand.u32 2147483647, %v2764
        %v2767 = vand.u32 2147483647, %v2765
        %v2768 = vmul.f32 %v2766, 0.3275911
        %v2769 = vmul.f32 %v2767, 0.3275911
        %v2770 = vadd.f32 %v2768, 1.0
        %v2771 = vadd.f32 %v2769, 1.0
        %v2772 = vrcp.pop %v2770
        %v2773 = vmul.f32 1.0, %v2772
        %v2774 = vrcp.pop %v2771
        %v2775 = vmul.f32 1.0, %v2774
        %v2776 = vmul.f32 %v2773, 1.0614054
        %v2777 = vmul.f32 %v2775, 1.0614054
        %v2778 = vadd.f32 %v2776, -1.4531521
        %v2779 = vadd.f32 %v2777, -1.4531521
        %v2780 = vmul.f32 %v2778, %v2773
        %v2781 = vmul.f32 %v2779, %v2775
        %v2782 = vadd.f32 %v2780, 1.4214138
        %v2783 = vadd.f32 %v2781, 1.4214138
        %v2784 = vmul.f32 %v2782, %v2773
        %v2785 = vmul.f32 %v2783, %v2775
        %v2786 = vadd.f32 %v2784, -0.28449672
        %v2787 = vadd.f32 %v2785, -0.28449672
        %v2788 = vmul.f32 %v2786, %v2773
        %v2789 = vmul.f32 %v2787, %v2775
        %v2790 = vadd.f32 %v2788, 0.2548296
        %v2791 = vadd.f32 %v2789, 0.2548296
        %v2792 = vmul.f32 %v2790, %v2773
        %v2793 = vmul.f32 %v2791, %v2775
        %v2794 = vsub.f32 0.0, %v2766
        %v2795 = vsub.f32 0.0, %v2767
        %v2796 = vmul.f32 %v2794, %v2766
        %v2797 = vmul.f32 %v2795, %v2767
        %v2798 = vmul.f32 %v2796, 1.442695
        %v2799 = vpow.pop %v2798
        %v2800 = vmul.f32 %v2797, 1.442695
        %v2801 = vpow.pop %v2800
        %v2802 = vmul.f32 %v2792, %v2799
        %v2803 = vmul.f32 %v2793, %v2801
        %v2804 = vsub.f32 1.0, %v2802
        %v2805 = vsub.f32 1.0, %v2803
        %vm2806 = vcmp.lt.f32.partialorder %v2764, 0.0
        %vm2807 = vcmp.lt.f32.partialorder %v2765, 0.0
        %v2808 = vsub.f32 0.0, %v2804
        %v2809 = vsub.f32 0.0, %v2805
        %v2810 = vsel %vm2806, %v2808, %v2804
        %v2811 = vsel %vm2807, %v2809, %v2805
        %v2812 = vadd.f32 %v2810, 1.0
        %v2813 = vadd.f32 %v2811, 1.0
        %v2814 = vmul.f32 %v2762, %v2812
        %v2815 = vmul.f32 %v2763, %v2813
        %s2816 = scalar_lea.vmem [#allocation10], 192
        %v2817 = vld [vmem:[%s2816] sm:$0xf]
        %v2818 = vld [vmem:[%s2816 + $0x4] sm:$0xf]
        %v2819 = vld [vmem:[%s2816 + $0x8] sm:$0xf]
        %v2820 = vld [vmem:[%s2816 + $0xc] sm:$0xf]
        %v2821 = vld [vmem:[%s2816 + $0x10] sm:$0xf]
        %v2822 = vld [vmem:[%s2816 + $0x14] sm:$0xf]
        %v2823 = vld [vmem:[%s2816 + $0x18] sm:$0xf]
        %v2824 = vld [vmem:[%s2816 + $0x1c] sm:$0xf]
        %v2825 = vld [vmem:[%s2816 + $0x20] sm:$0xf]
        %v2826 = vld [vmem:[%s2816 + $0x24] sm:$0xf]
        %v2827 = vld [vmem:[%s2816 + $0x28] sm:$0xf]
        %v2828 = vld [vmem:[%s2816 + $0x2c] sm:$0xf]
        %v2829 = vld [vmem:[%s2816 + $0x30] sm:$0xf]
        %v2830 = vld [vmem:[%s2816 + $0x34] sm:$0xf]
        %v2831 = vld [vmem:[%s2816 + $0x38] sm:$0xf]
        %v2832 = vld [vmem:[%s2816 + $0x3c] sm:$0xf]
        %v2833 = vpack.c.bf16 %v2815, %v2814
        %v2834 = vld [vmem:[%s7 + $0x3] sm:$0x1]
        %v2835 = vlaneseq
        %v2836 = vshrl.u32 %v2835, 7
        %v2837 = vsub.s32 0, %v2836
        %v2838 = vrot.slane %v2834, %v2837
        %v2855 = vunpack.c.l.b16 %v2817
        %v2856 = vunpack.c.l.b16 %v2818
        %v2857 = vunpack.c.l.b16 %v2819
        %v2858 = vunpack.c.l.b16 %v2820
        %v2859 = vunpack.c.l.b16 %v2821
        %v2860 = vunpack.c.l.b16 %v2822
        %v2861 = vunpack.c.l.b16 %v2823
        %v2862 = vunpack.c.l.b16 %v2824
        %v2863 = vunpack.c.l.b16 %v2825
        %v2864 = vunpack.c.l.b16 %v2826
        %v2865 = vunpack.c.l.b16 %v2827
        %v2866 = vunpack.c.l.b16 %v2828
        %v2867 = vunpack.c.l.b16 %v2829
        %v2868 = vunpack.c.l.b16 %v2830
        %v2869 = vunpack.c.l.b16 %v2831
        %v2870 = vunpack.c.l.b16 %v2832
        %v2871 = vpack.c.b16 %v2856, %v2855
        %v2872 = vpack.c.b16 %v2858, %v2857
        %v2873 = vpack.c.b16 %v2860, %v2859
        %v2874 = vpack.c.b16 %v2862, %v2861
        %v2875 = vpack.c.b16 %v2864, %v2863
        %v2876 = vpack.c.b16 %v2866, %v2865
        %v2877 = vpack.c.b16 %v2868, %v2867
        %v2878 = vpack.c.b16 %v2870, %v2869
        %2887 = vmatprep.subr.bf16.mxu0 0
        %2888 = vmatpush1.bf16.msra.mxu0 %v2871
        %2889 = vmatprep.subr.bf16.mxu0 0
        %2890 = vmatpush1.bf16.msra.mxu0 %v2872
        %2891 = vmatprep.subr.bf16.mxu0 0
        %2892 = vmatpush1.bf16.msra.mxu0 %v2873
        %2893 = vmatprep.subr.bf16.mxu0 0
        %2894 = vmatpush1.bf16.msra.mxu0 %v2874
        %2895 = vmatprep.subr.bf16.mxu0 0
        %2896 = vmatpush1.bf16.msra.mxu0 %v2875
        %2897 = vmatprep.subr.bf16.mxu0 0
        %2898 = vmatpush1.bf16.msra.mxu0 %v2876
        %2899 = vmatprep.subr.bf16.mxu0 0
        %2900 = vmatpush1.bf16.msra.mxu0 %v2877
        %2901 = vmatprep.subr.bf16.mxu0 0
        %2902 = vmatpush1.bf16.msra.mxu0 %v2878
        %2903 = vmatprep.subr.bf16.mxu0 0
        %2904 = vmatpush1.bf16.msra.mxu0 0
        %2905 = vmatprep.subr.bf16.mxu0 0
        %2906 = vmatpush1.bf16.msra.mxu0 0
        %2907 = vmatprep.subr.bf16.mxu0 0
        %2908 = vmatpush1.bf16.msra.mxu0 0
        %2909 = vmatprep.subr.bf16.mxu0 0
        %2910 = vmatpush1.bf16.msra.mxu0 0
        %2911 = vmatprep.subr.bf16.mxu0 0
        %2912 = vmatpush1.bf16.msra.mxu0 0
        %2913 = vmatprep.subr.bf16.mxu0 0
        %2914 = vmatpush1.bf16.msra.mxu0 0
        %2915 = vmatprep.subr.bf16.mxu0 0
        %2916 = vmatpush1.bf16.msra.mxu0 0
        %2917 = vmatprep.subr.bf16.mxu0 0
        %2918 = vmatpush1.bf16.msra.mxu0 0
        %2919 = vmatprep.mubr.bf16.mxu0 0
        %2920 = vmatmul.mubr.bf16.gmra.mrb[0].mxu0 %v2833
        %v2921 = vpop.f32.mrb[0].mxu0
        %v2922 = vadd.f32 %v2838, %v2921
        %v2923 = vpop.f32.mrb[0].mxu0
        %v2924 = vpop.f32.mrb[0].mxu0
        %v2925 = vadd.f32 %v2838, %v2924
        %v2926 = vpop.f32.mrb[0].mxu0
        %2927 = vdwg.mxu0
        %v2928 = vadd.f32 %v2922, %v2532
        %v2929 = vadd.f32 %v2925, %v2535
        %v2930 = vmul.f32 %v2928, %v415
        %v2931 = vmul.f32 %v2929, %v415
        %2932 = vadd.xlane.f32.xlu0 %v2930
        %v2933 = vpop.xlane.xlu0 %2932
        %2934 = vadd.xlane.f32.xlu0 %v2931
        %v2935 = vpop.xlane.xlu0 %2934
        %v2936 = vmul.f32 %v2933, 0.0625
        %v2937 = vmul.f32 %v2935, 0.0625
        %v2938 = vsub.f32 %v2928, %v2936
        %v2939 = vsub.f32 %v2929, %v2937
        %v2940 = vmul.f32 %v2938, %v415
        %v2941 = vmul.f32 %v2939, %v415
        %v2942 = vmul.f32 %v2940, %v2940
        %v2943 = vmul.f32 %v2941, %v2941
        %2944 = vadd.xlane.f32.xlu0 %v2942
        %v2945 = vpop.xlane.xlu0 %2944
        %2946 = vadd.xlane.f32.xlu0 %v2943
        %v2947 = vpop.xlane.xlu0 %2946
        %v2948 = vmul.f32 %v2945, 0.0625
        %v2949 = vmul.f32 %v2947, 0.0625
        %v2950 = vld [vmem:[%s8] sm:$0x1]
        %v2951 = vld [vmem:[%s8 + $0x1] sm:$0x1]
        %v2952 = vadd.f32 %v2948, 1e-05
        %v2953 = vadd.f32 %v2949, 1e-05
        %v2954 = vrsqrt.pop %v2952
        %v2955 = vrsqrt.pop %v2953
        %v2956 = vmul.f32 %v2940, %v2954
        %v2957 = vmul.f32 %v2941, %v2955
        %v2958 = vlaneseq
        %v2959 = vshrl.u32 %v2958, 7
        %v2960 = vsub.s32 0, %v2959
        %v2961 = vrot.slane %v2950, %v2960
        %v2962 = vmul.f32 %v2956, %v2961
        %v2963 = vmul.f32 %v2957, %v2961
        %v2964 = vlaneseq
        %v2965 = vshrl.u32 %v2964, 7
        %v2966 = vsub.s32 0, %v2965
        %v2967 = vrot.slane %v2951, %v2966
        %v2968 = vadd.f32 %v2962, %v2967
        %v2969 = vadd.f32 %v2963, %v2967
        %s2970 = scalar_lea.vmem [#allocation10], 256
        %v2971 = vld [vmem:[%s2970] sm:$0xf]
        %v2972 = vld [vmem:[%s2970 + $0x4] sm:$0xf]
        %v2973 = vld [vmem:[%s2970 + $0x8] sm:$0xf]
        %v2974 = vld [vmem:[%s2970 + $0xc] sm:$0xf]
        %v2975 = vld [vmem:[%s2970 + $0x10] sm:$0xf]
        %v2976 = vld [vmem:[%s2970 + $0x14] sm:$0xf]
        %v2977 = vld [vmem:[%s2970 + $0x18] sm:$0xf]
        %v2978 = vld [vmem:[%s2970 + $0x1c] sm:$0xf]
        %v2979 = vld [vmem:[%s2970 + $0x20] sm:$0xf]
        %v2980 = vld [vmem:[%s2970 + $0x24] sm:$0xf]
        %v2981 = vld [vmem:[%s2970 + $0x28] sm:$0xf]
        %v2982 = vld [vmem:[%s2970 + $0x2c] sm:$0xf]
        %v2983 = vld [vmem:[%s2970 + $0x30] sm:$0xf]
        %v2984 = vld [vmem:[%s2970 + $0x34] sm:$0xf]
        %v2985 = vld [vmem:[%s2970 + $0x38] sm:$0xf]
        %v2986 = vld [vmem:[%s2970 + $0x3c] sm:$0xf]
        %v2987 = vpack.c.bf16 %v2969, %v2968
        %v2988 = vld [vmem:[%s7 + $0x4] sm:$0x1]
        %v2989 = vlaneseq
        %v2990 = vshrl.u32 %v2989, 7
        %v2991 = vsub.s32 0, %v2990
        %v2992 = vrot.slane %v2988, %v2991
        %v3009 = vunpack.c.l.b16 %v2971
        %v3010 = vunpack.c.l.b16 %v2972
        %v3011 = vunpack.c.l.b16 %v2973
        %v3012 = vunpack.c.l.b16 %v2974
        %v3013 = vunpack.c.l.b16 %v2975
        %v3014 = vunpack.c.l.b16 %v2976
        %v3015 = vunpack.c.l.b16 %v2977
        %v3016 = vunpack.c.l.b16 %v2978
        %v3017 = vunpack.c.l.b16 %v2979
        %v3018 = vunpack.c.l.b16 %v2980
        %v3019 = vunpack.c.l.b16 %v2981
        %v3020 = vunpack.c.l.b16 %v2982
        %v3021 = vunpack.c.l.b16 %v2983
        %v3022 = vunpack.c.l.b16 %v2984
        %v3023 = vunpack.c.l.b16 %v2985
        %v3024 = vunpack.c.l.b16 %v2986
        %v3025 = vpack.c.b16 %v3010, %v3009
        %v3026 = vpack.c.b16 %v3012, %v3011
        %v3027 = vpack.c.b16 %v3014, %v3013
        %v3028 = vpack.c.b16 %v3016, %v3015
        %v3029 = vpack.c.b16 %v3018, %v3017
        %v3030 = vpack.c.b16 %v3020, %v3019
        %v3031 = vpack.c.b16 %v3022, %v3021
        %v3032 = vpack.c.b16 %v3024, %v3023
        %3041 = vmatprep.subr.bf16.mxu0 0
        %3042 = vmatpush1.bf16.msra.mxu0 %v3025
        %3043 = vmatprep.subr.bf16.mxu0 0
        %3044 = vmatpush1.bf16.msra.mxu0 %v3026
        %3045 = vmatprep.subr.bf16.mxu0 0
        %3046 = vmatpush1.bf16.msra.mxu0 %v3027
        %3047 = vmatprep.subr.bf16.mxu0 0
        %3048 = vmatpush1.bf16.msra.mxu0 %v3028
        %3049 = vmatprep.subr.bf16.mxu0 0
        %3050 = vmatpush1.bf16.msra.mxu0 %v3029
        %3051 = vmatprep.subr.bf16.mxu0 0
        %3052 = vmatpush1.bf16.msra.mxu0 %v3030
        %3053 = vmatprep.subr.bf16.mxu0 0
        %3054 = vmatpush1.bf16.msra.mxu0 %v3031
        %3055 = vmatprep.subr.bf16.mxu0 0
        %3056 = vmatpush1.bf16.msra.mxu0 %v3032
        %3057 = vmatprep.subr.bf16.mxu0 0
        %3058 = vmatpush1.bf16.msra.mxu0 0
        %3059 = vmatprep.subr.bf16.mxu0 0
        %3060 = vmatpush1.bf16.msra.mxu0 0
        %3061 = vmatprep.subr.bf16.mxu0 0
        %3062 = vmatpush1.bf16.msra.mxu0 0
        %3063 = vmatprep.subr.bf16.mxu0 0
        %3064 = vmatpush1.bf16.msra.mxu0 0
        %3065 = vmatprep.subr.bf16.mxu0 0
        %3066 = vmatpush1.bf16.msra.mxu0 0
        %3067 = vmatprep.subr.bf16.mxu0 0
        %3068 = vmatpush1.bf16.msra.mxu0 0
        %3069 = vmatprep.subr.bf16.mxu0 0
        %3070 = vmatpush1.bf16.msra.mxu0 0
        %3071 = vmatprep.subr.bf16.mxu0 0
        %3072 = vmatpush1.bf16.msra.mxu0 0
        %3073 = vmatprep.mubr.bf16.mxu0 0
        %3074 = vmatmul.mubr.bf16.gmra.mrb[0].mxu0 %v2987
        %v3075 = vpop.f32.mrb[0].mxu0
        %v3076 = vadd.f32 %v2992, %v3075
        %v3077 = vpop.f32.mrb[0].mxu0
        %v3078 = vpop.f32.mrb[0].mxu0
        %v3079 = vadd.f32 %v2992, %v3078
        %v3080 = vpop.f32.mrb[0].mxu0
        %3081 = vdwg.mxu0
        %v3082 = vmul.u32 %v420, 16
        %vm3083 = vcmp.ge.s32.totalorder %v412, %v3082
        %v3084 = vadd.s32 %v3082, 16
        %vm3085 = vcmp.lt.s32.totalorder %v412, %v3084
        %vm3086 = vmand %vm3083, %vm3085
        %v3087 = vsel %vm3086, 1, 0
        %v3088 = vcvt.s32.f32 %v3087
        %v3089 = vmul.f32 %v3088, 0.0625
        %v3091 = vsel %vm438, %v3089, 0
        %3093 = vmatprep.subr.mxu0 0.0
        %3094 = vmatpush1.msra.mxu0 %v3076
        %3095 = vmatprep.subr.mxu0 0.0
        %3096 = vmatpush1.msra.mxu0 %v3079
        %3097 = vmatprep.subr.mxu0 0.0
        %3098 = vmatpush1.msra.mxu0 0.0
        %3099 = vmatprep.subr.mxu0 0.0
        %3100 = vmatpush1.msra.mxu0 0.0
        %3101 = vmatprep.subr.mxu0 0.0
        %3102 = vmatpush1.msra.mxu0 0.0
        %3103 = vmatprep.subr.mxu0 0.0
        %3104 = vmatpush1.msra.mxu0 0.0
        %3105 = vmatprep.subr.mxu0 0.0
        %3106 = vmatpush1.msra.mxu0 0.0
        %3107 = vmatprep.subr.mxu0 0.0
        %3108 = vmatpush1.msra.mxu0 0.0
        %3109 = vmatprep.subr.mxu0 0.0
        %3110 = vmatpush1.msra.mxu0 0.0
        %3111 = vmatprep.subr.mxu0 0.0
        %3112 = vmatpush1.msra.mxu0 0.0
        %3113 = vmatprep.subr.mxu0 0.0
        %3114 = vmatpush1.msra.mxu0 0.0
        %3115 = vmatprep.subr.mxu0 0.0
        %3116 = vmatpush1.msra.mxu0 0.0
        %3117 = vmatprep.subr.mxu0 0.0
        %3118 = vmatpush1.msra.mxu0 0.0
        %3119 = vmatprep.subr.mxu0 0.0
        %3120 = vmatpush1.msra.mxu0 0.0
        %3121 = vmatprep.subr.mxu0 0.0
        %3122 = vmatpush1.msra.mxu0 0.0
        %3123 = vmatprep.subr.mxu0 0.0
        %3124 = vmatpush1.msra.mxu0 0.0
        %3125 = vmatprep.subr.mxu0 0.0
        %3126 = vmatpush1.msra.mxu0 0.0
        %3127 = vmatprep.subr.mxu0 0.0
        %3128 = vmatpush1.msra.mxu0 0.0
        %3129 = vmatprep.subr.mxu0 0.0
        %3130 = vmatpush1.msra.mxu0 0.0
        %3131 = vmatprep.subr.mxu0 0.0
        %3132 = vmatpush1.msra.mxu0 0.0
        %3133 = vmatprep.subr.mxu0 0.0
        %3134 = vmatpush1.msra.mxu0 0.0
        %3135 = vmatprep.subr.mxu0 0.0
        %3136 = vmatpush1.msra.mxu0 0.0
        %3137 = vmatprep.subr.mxu0 0.0
        %3138 = vmatpush1.msra.mxu0 0.0
        %3139 = vmatprep.subr.mxu0 0.0
        %3140 = vmatpush1.msra.mxu0 0.0
        %3141 = vmatprep.subr.mxu0 0.0
        %3142 = vmatpush1.msra.mxu0 0.0
        %3143 = vmatprep.subr.mxu0 0.0
        %3144 = vmatpush1.msra.mxu0 0.0
        %3145 = vmatprep.subr.mxu0 0.0
        %3146 = vmatpush1.msra.mxu0 0.0
        %3147 = vmatprep.subr.mxu0 0.0
        %3148 = vmatpush1.msra.mxu0 0.0
        %3149 = vmatprep.subr.mxu0 0.0
        %3150 = vmatpush1.msra.mxu0 0.0
        %3151 = vmatprep.subr.mxu0 0.0
        %3152 = vmatpush1.msra.mxu0 0.0
        %3153 = vmatprep.subr.mxu0 0.0
        %3154 = vmatpush1.msra.mxu0 0.0
        %3155 = vmatprep.subr.mxu0 0.0
        %3156 = vmatpush1.msra.mxu0 0.0
        %3157 = vmatprep.mubr.f32.mxu0 0.0
        %3158 = vmatmul.mubr.f32.gmra.mrb[0].mxu0 %v3091
        %v3159 = vpop.f32.mrb[0].mxu0
        %v3160 = vadd.f32 0.0, %v3159
        %v3161 = vpop.f32.mrb[0].mxu0
        %3162 = vdwg.mxu0
        %s3163 = scalar_lea.vmem [#allocation10], 320
        %v3164 = vld [vmem:[%s3163] sm:$0xf]
        %v3165 = vld [vmem:[%s3163 + $0x4] sm:$0xf]
        %v3166 = vld [vmem:[%s3163 + $0x8] sm:$0xf]
        %v3167 = vld [vmem:[%s3163 + $0xc] sm:$0xf]
        %v3168 = vld [vmem:[%s3163 + $0x10] sm:$0xf]
        %v3169 = vld [vmem:[%s3163 + $0x14] sm:$0xf]
        %v3170 = vld [vmem:[%s3163 + $0x18] sm:$0xf]
        %v3171 = vld [vmem:[%s3163 + $0x1c] sm:$0xf]
        %v3172 = vld [vmem:[%s3163 + $0x20] sm:$0xf]
        %v3173 = vld [vmem:[%s3163 + $0x24] sm:$0xf]
        %v3174 = vld [vmem:[%s3163 + $0x28] sm:$0xf]
        %v3175 = vld [vmem:[%s3163 + $0x2c] sm:$0xf]
        %v3176 = vld [vmem:[%s3163 + $0x30] sm:$0xf]
        %v3177 = vld [vmem:[%s3163 + $0x34] sm:$0xf]
        %v3178 = vld [vmem:[%s3163 + $0x38] sm:$0xf]
        %v3179 = vld [vmem:[%s3163 + $0x3c] sm:$0xf]
        %v3180 = vpack.c.bf16 %v3160, %v3160
        %v3181 = vld [vmem:[%s7 + $0x5] sm:$0x1]
        %v3198 = vunpack.c.l.b16 %v3164
        %v3199 = vunpack.c.l.b16 %v3165
        %v3200 = vunpack.c.l.b16 %v3166
        %v3201 = vunpack.c.l.b16 %v3167
        %v3202 = vunpack.c.l.b16 %v3168
        %v3203 = vunpack.c.l.b16 %v3169
        %v3204 = vunpack.c.l.b16 %v3170
        %v3205 = vunpack.c.l.b16 %v3171
        %v3206 = vunpack.c.l.b16 %v3172
        %v3207 = vunpack.c.l.b16 %v3173
        %v3208 = vunpack.c.l.b16 %v3174
        %v3209 = vunpack.c.l.b16 %v3175
        %v3210 = vunpack.c.l.b16 %v3176
        %v3211 = vunpack.c.l.b16 %v3177
        %v3212 = vunpack.c.l.b16 %v3178
        %v3213 = vunpack.c.l.b16 %v3179
        %v3214 = vpack.c.b16 %v3199, %v3198
        %v3215 = vpack.c.b16 %v3201, %v3200
        %v3216 = vpack.c.b16 %v3203, %v3202
        %v3217 = vpack.c.b16 %v3205, %v3204
        %v3218 = vpack.c.b16 %v3207, %v3206
        %v3219 = vpack.c.b16 %v3209, %v3208
        %v3220 = vpack.c.b16 %v3211, %v3210
        %v3221 = vpack.c.b16 %v3213, %v3212
        %3230 = vmatprep.subr.bf16.mxu0 0
        %3231 = vmatpush1.bf16.msra.mxu0 %v3214
        %3232 = vmatprep.subr.bf16.mxu0 0
        %3233 = vmatpush1.bf16.msra.mxu0 %v3215
        %3234 = vmatprep.subr.bf16.mxu0 0
        %3235 = vmatpush1.bf16.msra.mxu0 %v3216
        %3236 = vmatprep.subr.bf16.mxu0 0
        %3237 = vmatpush1.bf16.msra.mxu0 %v3217
        %3238 = vmatprep.subr.bf16.mxu0 0
        %3239 = vmatpush1.bf16.msra.mxu0 %v3218
        %3240 = vmatprep.subr.bf16.mxu0 0
        %3241 = vmatpush1.bf16.msra.mxu0 %v3219
        %3242 = vmatprep.subr.bf16.mxu0 0
        %3243 = vmatpush1.bf16.msra.mxu0 %v3220
        %3244 = vmatprep.subr.bf16.mxu0 0
        %3245 = vmatpush1.bf16.msra.mxu0 %v3221
        %3246 = vmatprep.subr.bf16.mxu0 0
        %3247 = vmatpush1.bf16.msra.mxu0 0
        %3248 = vmatprep.subr.bf16.mxu0 0
        %3249 = vmatpush1.bf16.msra.mxu0 0
        %3250 = vmatprep.subr.bf16.mxu0 0
        %3251 = vmatpush1.bf16.msra.mxu0 0
        %3252 = vmatprep.subr.bf16.mxu0 0
        %3253 = vmatpush1.bf16.msra.mxu0 0
        %3254 = vmatprep.subr.bf16.mxu0 0
        %3255 = vmatpush1.bf16.msra.mxu0 0
        %3256 = vmatprep.subr.bf16.mxu0 0
        %3257 = vmatpush1.bf16.msra.mxu0 0
        %3258 = vmatprep.subr.bf16.mxu0 0
        %3259 = vmatpush1.bf16.msra.mxu0 0
        %3260 = vmatprep.subr.bf16.mxu0 0
        %3261 = vmatpush1.bf16.msra.mxu0 0
        %3262 = vmatprep.mubr.bf16.mxu0 0
        %3263 = vmatmul.mubr.bf16.gmra.mrb[0].mxu0 %v3180
        %v3264 = vpop.f32.mrb[0].mxu0
        %v3265 = vadd.f32 %v3181, %v3264
        %v3266 = vpop.f32.mrb[0].mxu0
        %v3267 = vpop.f32.mrb[0].mxu0
        %v3268 = vpop.f32.mrb[0].mxu0
        %3269 = vdwg.mxu0
        %v3270 = vmul.f32 %v3265, %v418
        %vm3271 = vcmask 1040384
        %v3272 = vsel %vm3271, %v3270, 0.0
        %3273 = vadd.xlane.f32.xlu0 %v3272
        %v3274 = vpop.xlane.xlu0 %3273
        %v3275 = vmul.f32 %v3274, 0.03125
        %v3276 = vsub.f32 %v3265, %v3275
        %v3277 = vmul.f32 %v3276, %v418
        %v3278 = vmul.f32 %v3277, %v3277
        %v3279 = vsel %vm3271, %v3278, 0.0
        %3280 = vadd.xlane.f32.xlu0 %v3279
        %v3281 = vpop.xlane.xlu0 %3280
        %v3282 = vmul.f32 %v3281, 0.03125
        %v3283 = vld [vmem:[%s8 + $0x2] sm:$0x1]
        %v3284 = vld [vmem:[%s8 + $0x3] sm:$0x1]
        %v3285 = vadd.f32 %v3282, 1e-05
        %v3286 = vrsqrt.pop %v3285
        %v3287 = vmul.f32 %v3277, %v3286
        %v3288 = vmul.f32 %v3287, %v3283
        %v3289 = vadd.f32 %v3288, %v3284
        %v3290 = vmul.f32 %v3289, 0.5
        %v3291 = vmul.f32 %v3289, 0.70710677
        %v3292 = vand.u32 2147483647, %v3291
        %v3293 = vmul.f32 %v3292, 0.3275911
        %v3294 = vadd.f32 %v3293, 1.0
        %v3295 = vrcp.pop %v3294
        %v3296 = vmul.f32 1.0, %v3295
        %v3297 = vmul.f32 %v3296, 1.0614054
        %v3298 = vadd.f32 %v3297, -1.4531521
        %v3299 = vmul.f32 %v3298, %v3296
        %v3300 = vadd.f32 %v3299, 1.4214138
        %v3301 = vmul.f32 %v3300, %v3296
        %v3302 = vadd.f32 %v3301, -0.28449672
        %v3303 = vmul.f32 %v3302, %v3296
        %v3304 = vadd.f32 %v3303, 0.2548296
        %v3305 = vmul.f32 %v3304, %v3296
        %v3306 = vsub.f32 0.0, %v3292
        %v3307 = vmul.f32 %v3306, %v3292
        %v3308 = vmul.f32 %v3307, 1.442695
        %v3309 = vpow.pop %v3308
        %v3310 = vmul.f32 %v3305, %v3309
        %v3311 = vsub.f32 1.0, %v3310
        %vm3312 = vcmp.lt.f32.partialorder %v3291, 0.0
        %v3313 = vsub.f32 0.0, %v3311
        %v3314 = vsel %vm3312, %v3313, %v3311
        %v3315 = vadd.f32 %v3314, 1.0
        %v3316 = vmul.f32 %v3290, %v3315
        %s3317 = scalar_lea.vmem [#allocation10], 384
        %v3318 = vld [vmem:[%s3317] sm:$0xf]
        %v3319 = vld [vmem:[%s3317 + $0x4] sm:$0xf]
        %v3320 = vld [vmem:[%s3317 + $0x8] sm:$0xf]
        %v3321 = vld [vmem:[%s3317 + $0xc] sm:$0xf]
        %v3322 = vld [vmem:[%s3317 + $0x10] sm:$0xf]
        %v3323 = vld [vmem:[%s3317 + $0x14] sm:$0xf]
        %v3324 = vld [vmem:[%s3317 + $0x18] sm:$0xf]
        %v3325 = vld [vmem:[%s3317 + $0x1c] sm:$0xf]
        %v3326 = vld [vmem:[%s3317 + $0x20] sm:$0xf]
        %v3327 = vld [vmem:[%s3317 + $0x24] sm:$0xf]
        %v3328 = vld [vmem:[%s3317 + $0x28] sm:$0xf]
        %v3329 = vld [vmem:[%s3317 + $0x2c] sm:$0xf]
        %v3330 = vld [vmem:[%s3317 + $0x30] sm:$0xf]
        %v3331 = vld [vmem:[%s3317 + $0x34] sm:$0xf]
        %v3332 = vld [vmem:[%s3317 + $0x38] sm:$0xf]
        %v3333 = vld [vmem:[%s3317 + $0x3c] sm:$0xf]
        %v3334 = vpack.c.bf16 %v3316, %v3316
        %v3335 = vld [vmem:[%s7 + $0x6] sm:$0x1]
        %v3352 = vunpack.c.l.b16 %v3318
        %v3353 = vunpack.c.l.b16 %v3319
        %v3354 = vunpack.c.l.b16 %v3320
        %v3355 = vunpack.c.l.b16 %v3321
        %v3356 = vunpack.c.l.b16 %v3322
        %v3357 = vunpack.c.l.b16 %v3323
        %v3358 = vunpack.c.l.b16 %v3324
        %v3359 = vunpack.c.l.b16 %v3325
        %v3360 = vunpack.c.l.b16 %v3326
        %v3361 = vunpack.c.l.b16 %v3327
        %v3362 = vunpack.c.l.b16 %v3328
        %v3363 = vunpack.c.l.b16 %v3329
        %v3364 = vunpack.c.l.b16 %v3330
        %v3365 = vunpack.c.l.b16 %v3331
        %v3366 = vunpack.c.l.b16 %v3332
        %v3367 = vunpack.c.l.b16 %v3333
        %v3368 = vpack.c.b16 %v3353, %v3352
        %v3369 = vpack.c.b16 %v3355, %v3354
        %v3370 = vpack.c.b16 %v3357, %v3356
        %v3371 = vpack.c.b16 %v3359, %v3358
        %v3372 = vpack.c.b16 %v3361, %v3360
        %v3373 = vpack.c.b16 %v3363, %v3362
        %v3374 = vpack.c.b16 %v3365, %v3364
        %v3375 = vpack.c.b16 %v3367, %v3366
        %3384 = vmatprep.subr.bf16.mxu0 0
        %3385 = vmatpush1.bf16.msra.mxu0 %v3368
        %3386 = vmatprep.subr.bf16.mxu0 0
        %3387 = vmatpush1.bf16.msra.mxu0 %v3369
        %3388 = vmatprep.subr.bf16.mxu0 0
        %3389 = vmatpush1.bf16.msra.mxu0 %v3370
        %3390 = vmatprep.subr.bf16.mxu0 0
        %3391 = vmatpush1.bf16.msra.mxu0 %v3371
        %3392 = vmatprep.subr.bf16.mxu0 0
        %3393 = vmatpush1.bf16.msra.mxu0 %v3372
        %3394 = vmatprep.subr.bf16.mxu0 0
        %3395 = vmatpush1.bf16.msra.mxu0 %v3373
        %3396 = vmatprep.subr.bf16.mxu0 0
        %3397 = vmatpush1.bf16.msra.mxu0 %v3374
        %3398 = vmatprep.subr.bf16.mxu0 0
        %3399 = vmatpush1.bf16.msra.mxu0 %v3375
        %3400 = vmatprep.subr.bf16.mxu0 0
        %3401 = vmatpush1.bf16.msra.mxu0 0
        %3402 = vmatprep.subr.bf16.mxu0 0
        %3403 = vmatpush1.bf16.msra.mxu0 0
        %3404 = vmatprep.subr.bf16.mxu0 0
        %3405 = vmatpush1.bf16.msra.mxu0 0
        %3406 = vmatprep.subr.bf16.mxu0 0
        %3407 = vmatpush1.bf16.msra.mxu0 0
        %3408 = vmatprep.subr.bf16.mxu0 0
        %3409 = vmatpush1.bf16.msra.mxu0 0
        %3410 = vmatprep.subr.bf16.mxu0 0
        %3411 = vmatpush1.bf16.msra.mxu0 0
        %3412 = vmatprep.subr.bf16.mxu0 0
        %3413 = vmatpush1.bf16.msra.mxu0 0
        %3414 = vmatprep.subr.bf16.mxu0 0
        %3415 = vmatpush1.bf16.msra.mxu0 0
        %3416 = vmatprep.mubr.bf16.mxu0 0
        %3417 = vmatmul.mubr.bf16.gmra.mrb[0].mxu0 %v3334
        %v3418 = vpop.f32.mrb[0].mxu0
        %v3419 = vadd.f32 %v3335, %v3418
        %v3420 = vpop.f32.mrb[0].mxu0
        %v3421 = vpop.f32.mrb[0].mxu0
        %v3422 = vpop.f32.mrb[0].mxu0
        %3423 = vdwg.mxu0
        %3424 = vst [vmem:[%s407] sm:$0x1] %v3419
        %s3425 = sand.u32 %s230, 1
        %s3426 = scalar_lea.sflag [#allocation4], %s3425
        %s3427 = sand.u32 %s230, 1
        %s3428 = scalar_lea.vmem [#allocation11], %s3427
        // Predicated region
        $region77: #{tpu_custom_call.1} parent=55 // pred_check
          %p3429 = pneg %p240
        $region78: #{tpu_custom_call.1} parent=55 // pred_check_branch
          %3431 = sbr.rel (%p3429) target = $region80
        $region79: #{tpu_custom_call.1} parent=55 // pred_region
          %s3433 = ssub.s32 16, 16
          %3434 = vsyncadd %s3426, %s3433
          %s3435 = smul.addr %s28, 16
          %s3436 = scalar_lea.hbm %s9, %s3435
          %s3438 = sshll.u32 %s3428, 4
          %s3439 = int_to_ptr.vmem [resolvable:$true] %s3438
          %3441 = dma.vmem_to_hbm [thread:$0]  %s3439, 16, %s3436, %s3426
        $region80: #{tpu_custom_call.1} parent=55 // pred_fallthru
          _
      $region56: #{tpu_custom_call.1} parent=5 // pred_fallthru
        _
      %p3442 = scmp.le.s32.totalorder 2, %s23
      // Predicated region
      $region81: #{tpu_custom_call.1} parent=5 // pred_check
        %p3443 = pneg %p3442
      $region82: #{tpu_custom_call.1} parent=5 // pred_check_branch
        %3445 = sbr.rel (%p3443) target = $region84
      $region83: #{tpu_custom_call.1} parent=5 // pred_region
        %s3446 = ssub.s32 %s23, 2
        // Predicated region
        $region85: #{tpu_custom_call.1} parent=83 // pred_check
          %p3447 = pneg %p246
        $region86: #{tpu_custom_call.1} parent=83 // pred_check_branch
          %3449 = sbr.rel (%p3447) target = $region88
        $region87: #{tpu_custom_call.1} parent=83 // pred_region
          %s3450 = sand.u32 %s231, 1
          %s3451 = scalar_lea.sflag [#allocation4], %s3450
          %s3452 = sand.u32 %s231, 1
          %s3453 = scalar_lea.vmem [#allocation11], %s3452
          %3454 = dma.done %s3451, 16
        $region88: #{tpu_custom_call.1} parent=83 // pred_fallthru
          _
      $region84: #{tpu_custom_call.1} parent=5 // pred_fallthru
        _
    $region6: #{tpu_custom_call.1} parent=1 // loop_footer
      %s27 = sadd.s32 1, %s23
    $region7: #{tpu_custom_call.1} parent=1 // loop_footer_branch
      %22 = sbr.rel target = $region3
    $region8: #{tpu_custom_call.1} parent=1 // loop_exit
      _
    %3455 = vsyncpa [#allocation3], 1
    %s3456 = scalar_lea.sflag [#allocation3], 1
    %3457 = vsyncpa %s3456, 1
    %3458 = vsyncpa [#allocation6], 1
    %3459 = vsyncpa [#allocation9], 1
    %3460 = vsyncpa [#allocation4], 1
    %s3461 = scalar_lea.sflag [#allocation4], 1
    %3462 = vsyncpa %s3461, 1

</llo_original>
